<compile_context>
chip_gen: v6e
topology: v6e:2x2x1
jax: 0.10.0
libtpu: 0.0.40
codegen_flags: <defaults>
</compile_context>

<pallas_src>
import functools

import jax
import jax.numpy as jnp
from jax.experimental import pallas as pl
from jax.experimental.pallas import tpu as pltpu

EPS = 1e-5


# ---------------------------------------------------------------------------
# Fused kernel: gate + conv1 + conv2 + conv3 + shortcut + gated residual + relu
# Grid: (B,).
# ---------------------------------------------------------------------------
def _fused_kernel(x_ref, w1_ref, b1_ref, w2c_ref, b2_ref, w3_ref, b3_ref,
                  fc1w_ref, fc1b_ref, fc2w_ref, fc2b_ref, *rest,
                  H, W, stride, OH, OW, has_sc, wide_k):
    rest = list(rest)
    if has_sc:
        wsc_ref, bsc_ref = rest[:2]
        rest = rest[2:]
    o_ref, gate_ref, h1p_ref = rest[:3]
    pat_ref = rest[3] if wide_k else None

    P = OH * OW
    cin = x_ref.shape[-1]
    planes = w1_ref.shape[-1]

    x = x_ref[0]                                       # (H, W, cin) bf16
    x2 = x.reshape(H * W, cin)

    # ---- gate branch: global avg pool (f32 accum) -> fc1+relu -> fc2 -> hard one-hot ----
    pooled = jnp.sum(x2.astype(jnp.float32), axis=0, keepdims=True) * (1.0 / (H * W))
    hfc = jnp.maximum(
        jnp.dot(pooled, fc1w_ref[...], preferred_element_type=jnp.float32)
        + fc1b_ref[...], 0.0)
    logits = (jnp.dot(hfc, fc2w_ref[...], preferred_element_type=jnp.float32)
              + fc2b_ref[...])
    g1 = (logits[:, 1:2] > logits[:, 0:1]).astype(jnp.float32)       # (1, 1) == w[:, 1]
    gate_ref[0] = g1

    # ---- conv1 (1x1, BN folded) + relu, written into a zero-ringed VMEM halo scratch.
    # The full scratch is zeroed every grid step (cheap VMEM-only store) so each grid
    # step is independent -> safe under "parallel"/megacore splitting.
    h1p_ref[...] = jnp.zeros_like(h1p_ref)
    h1 = jnp.maximum(
        jnp.dot(x2, w1_ref[...], preferred_element_type=jnp.float32) + b1_ref[...], 0.0)
    h1p_ref[1:H + 1, 1:W + 1, :] = h1.reshape(H, W, planes).astype(h1p_ref.dtype)

    # ---- conv2 (3x3, stride, BN folded) + relu ----
    if stride == 2:
        # even/odd phase split: the strided gather is done 4x (once per row/col phase),
        # the 9 taps are then cheap contiguous slices of the phase slabs.
        h1p_full = h1p_ref[...]
        Hp, Wp = H + 2, W + 2
        phases = {}
        for rp in range(2):
            for cp in range(2):
                nr = (Hp - rp + 1) // 2
                nc = (Wp - cp + 1) // 2
                phases[(rp, cp)] = jax.lax.slice(
                    h1p_full, (rp, cp, 0),
                    (rp + (nr - 1) * 2 + 1, cp + (nc - 1) * 2 + 1, planes),
                    (2, 2, 1))
    elif stride > 2:
        h1p_full = h1p_ref[...]

    def tap(dh, dw):
        if stride == 1:
            return h1p_ref[dh:dh + OH, dw:dw + OW, :].reshape(P, planes)
        elif stride == 2:
            ph = phases[(dh % 2, dw % 2)]
            return ph[dh // 2:dh // 2 + OH, dw // 2:dw // 2 + OW, :].reshape(P, planes)
        else:
            return jax.lax.slice(
                h1p_full, (dh, dw, 0),
                (dh + (OH - 1) * stride + 1, dw + (OW - 1) * stride + 1, planes),
                (stride, stride, 1)).reshape(P, planes)

    if wide_k:
        # Pack the 9 shifted taps into a (P, 9*planes) slab -> ONE K=9*planes matmul,
        # which fills the 256-wide MXU far better than 9 K=planes dots and removes
        # the 8 full-size f32 VPU accumulate adds.
        for dh in range(3):
            for dw in range(3):
                k = 3 * dh + dw
                pat_ref[:, k * planes:(k + 1) * planes] = tap(dh, dw)
        acc2 = jnp.dot(pat_ref[...], w2c_ref[...], preferred_element_type=jnp.float32)
    else:
        acc2 = jnp.zeros((P, planes), jnp.float32)
        for dh in range(3):
            for dw in range(3):
                k = 3 * dh + dw
                acc2 = acc2 + jnp.dot(tap(dh, dw),
                                      w2c_ref[k * planes:(k + 1) * planes, :],
                                      preferred_element_type=jnp.float32)
    y2 = jnp.maximum(acc2 + b2_ref[...], 0.0).astype(jnp.bfloat16)   # (P, planes)

    # ---- conv3 (1x1, BN folded) ----
    out3 = jnp.dot(y2, w3_ref[...], preferred_element_type=jnp.float32) + b3_ref[...]

    # ---- shortcut ----
    if has_sc:
        if stride == 1:
            xv = x2
        else:
            xv = jax.lax.slice(
                x, (0, 0, 0),
                ((OH - 1) * stride + 1, (OW - 1) * stride + 1, cin),
                (stride, stride, 1)).reshape(P, cin)
        sc = (jnp.dot(xv, wsc_ref[...], preferred_element_type=jnp.float32)
              + bsc_ref[...])
    else:
        sc = x2.astype(jnp.float32)      # identity shortcut (stride==1, cin==exp*planes)

    # ---- gated residual add + relu, bf16 store ----
    o_ref[0] = jnp.maximum(sc + out3 * g1, 0.0).astype(o_ref.dtype)


# ---------------------------------------------------------------------------
# Parameters (deterministic, synthetic; BN running stats folded on the host)
# ---------------------------------------------------------------------------
def fold_bn(key, c):
    kg, kb, km, kv = jax.random.split(key, 4)
    gamma = 1.0 + 0.1 * jax.random.normal(kg, (c,), jnp.float32)
    beta = 0.1 * jax.random.normal(kb, (c,), jnp.float32)
    mean = 0.1 * jax.random.normal(km, (c,), jnp.float32)
    var = jax.random.uniform(kv, (c,), jnp.float32, 0.5, 1.5)
    scale = gamma / jnp.sqrt(var + EPS)
    bias = beta - mean * scale
    return scale.reshape(1, c), bias.reshape(1, c)


def init_params(key, in_planes, planes, expansion, stride):
    cexp = expansion * planes
    ks = jax.random.split(key, 12)
    p = {}
    p["conv1_w"] = 0.1 * jax.random.normal(ks[0], (in_planes, planes), jnp.float32)
    p["bn1"] = fold_bn(ks[1], planes)
    p["conv2_w"] = 0.1 * jax.random.normal(ks[2], (9, planes, planes), jnp.float32)
    p["bn2"] = fold_bn(ks[3], planes)
    p["conv3_w"] = 0.1 * jax.random.normal(ks[4], (planes, cexp), jnp.float32)
    p["bn3"] = fold_bn(ks[5], cexp)
    p["has_shortcut_conv"] = (stride != 1) or (in_planes != cexp)
    if p["has_shortcut_conv"]:
        p["sc_w"] = 0.1 * jax.random.normal(ks[6], (in_planes, cexp), jnp.float32)
        p["sc_bn"] = fold_bn(ks[7], cexp)
    p["fc1_w"] = 0.1 * jax.random.normal(ks[8], (in_planes, 16), jnp.float32)
    p["fc1_b"] = 0.1 * jax.random.normal(ks[9], (1, 16), jnp.float32)
    p["fc2_w"] = 0.1 * jax.random.normal(ks[10], (16, 2), jnp.float32)
    p["fc2_b"] = jnp.array([[0.1, 2.0]], jnp.float32)    # fc2.bias.data = [0.1, 2]
    return p


# ---------------------------------------------------------------------------
# Forward (matches Weighted_Bottleneck.forward)
# ---------------------------------------------------------------------------
def weighted_bottleneck_forward(params, x_nchw, *, planes, expansion, stride=1):
    B, cin, H, W = x_nchw.shape
    cexp = expansion * planes
    OH = (H + 2 - 3) // stride + 1
    OW = (W + 2 - 3) // stride + 1
    P = OH * OW
    has_sc = params["has_shortcut_conv"]
    wide_k = planes <= 128            # single K=9*planes conv2 matmul when it fits

    # NCHW -> NHWC (channels on the lane axis), bf16 for the MXU; no host-side halo pad.
    # TODO(synk): keep NHWC end-to-end in the surrounding model to drop these transposes.
    x = jnp.transpose(x_nchw, (0, 2, 3, 1)).astype(jnp.bfloat16)

    # fold BN scales into conv weights (host side); biases stay f32 epilogue adds
    w1f = (params["conv1_w"] * params["bn1"][0]).astype(jnp.bfloat16)
    b1 = params["bn1"][1]
    w2c = (params["conv2_w"] * params["bn2"][0]).astype(jnp.bfloat16)
    w2c = w2c.reshape(9 * planes, planes)            # rows grouped by tap k = 3*dh+dw
    b2 = params["bn2"][1]
    w3f = (params["conv3_w"] * params["bn3"][0]).astype(jnp.bfloat16)
    b3 = params["bn3"][1]

    in_specs = [
        pl.BlockSpec((1, H, W, cin), lambda b: (b, 0, 0, 0)),
        pl.BlockSpec((cin, planes), lambda b: (0, 0)),
        pl.BlockSpec((1, planes), lambda b: (0, 0)),
        pl.BlockSpec((9 * planes, planes), lambda b: (0, 0)),
        pl.BlockSpec((1, planes), lambda b: (0, 0)),
        pl.BlockSpec((planes, cexp), lambda b: (0, 0)),
        pl.BlockSpec((1, cexp), lambda b: (0, 0)),
        pl.BlockSpec((cin, 16), lambda b: (0, 0)),
        pl.BlockSpec((1, 16), lambda b: (0, 0)),
        pl.BlockSpec((16, 2), lambda b: (0, 0)),
        pl.BlockSpec((1, 2), lambda b: (0, 0)),
    ]
    args = [x, w1f, b1, w2c, b2, w3f, b3,
            params["fc1_w"], params["fc1_b"], params["fc2_w"], params["fc2_b"]]
    if has_sc:
        wscf = (params["sc_w"] * params["sc_bn"][0]).astype(jnp.bfloat16)
        bsc = params["sc_bn"][1]
        in_specs += [pl.BlockSpec((cin, cexp), lambda b: (0, 0)),
                     pl.BlockSpec((1, cexp), lambda b: (0, 0))]
        args += [wscf, bsc]

    out_shape = (jax.ShapeDtypeStruct((B, P, cexp), jnp.bfloat16),     # bf16 writeback
                 jax.ShapeDtypeStruct((B, 1, 1), jnp.float32))         # gate scalar
    out_specs = (pl.BlockSpec((1, P, cexp), lambda b: (b, 0, 0)),
                 pl.BlockSpec((1, 1, 1), lambda b: (b, 0, 0)))

    scratch_shapes = [pltpu.VMEM((H + 2, W + 2, planes), jnp.bfloat16)]   # halo scratch
    if wide_k:
        scratch_shapes.append(pltpu.VMEM((P, 9 * planes), jnp.bfloat16))  # conv2 patches

    # VMEM limit derived from the actual per-block footprint (<= 64 MiB on v7x).
    bf2, f4 = 2, 4
    est = (2 * H * W * cin * bf2                      # input block (double buffered)
           + (H + 2) * (W + 2) * planes * bf2         # halo scratch
           + P * 9 * planes * bf2                     # conv2 patch slab
           + P * planes * (f4 + bf2)                  # conv2 accumulator + y2
           + 2 * P * cexp * f4                        # conv3 out + shortcut (f32)
           + 3 * P * cexp * bf2                       # output block (dbl buf) + store temp
           + 2 * bf2 * (cin * planes + 9 * planes * planes
                        + planes * cexp + cin * cexp + 16 * (cin + 4)))
    vmem_limit = int(min(64 * 1024 * 1024, max(32 * 1024 * 1024, 2 * est)))

    out, gate = pl.pallas_call(
        functools.partial(_fused_kernel, H=H, W=W, stride=stride,
                          OH=OH, OW=OW, has_sc=has_sc, wide_k=wide_k),
        out_shape=out_shape,
        grid=(B,),
        in_specs=in_specs,
        out_specs=out_specs,
        scratch_shapes=scratch_shapes,
        compiler_params=pltpu.CompilerParams(
            dimension_semantics=("parallel",),   # B >= 2 keeps both v7x TCs busy
            vmem_limit_bytes=vmem_limit),
    )(*args)

    out = jnp.transpose(out.reshape(B, OH, OW, cexp), (0, 3, 1, 2)).astype(jnp.float32)
    return out, gate.reshape(B, 1, 1)


# ---------------------------------------------------------------------------
# Pure-JAX f32 reference (loose-tolerance sanity check)
# ---------------------------------------------------------------------------
def _reference_forward(params, x_nchw, *, planes, expansion, stride):
    x = jnp.transpose(x_nchw, (0, 2, 3, 1)).astype(jnp.float32)      # NHWC
    B, H, W, cin = x.shape
    s1, o1 = params["bn1"]; s2, o2 = params["bn2"]; s3, o3 = params["bn3"]

    pooled = jnp.mean(x, axis=(1, 2))                                # (B, cin)
    h = jax.nn.relu(pooled @ params["fc1_w"] + params["fc1_b"])
    logits = h @ params["fc2_w"] + params["fc2_b"]
    g1 = (logits[:, 1] > logits[:, 0]).astype(jnp.float32)           # (B,)

    out1 = jax.nn.relu(jnp.einsum("bhwc,cd->bhwd", x, params["conv1_w"]) * s1 + o1)
    w_hwio = params["conv2_w"].reshape(3, 3, planes, planes)
    out2 = jax.lax.conv_general_dilated(
        out1, w_hwio, window_strides=(stride, stride), padding=((1, 1), (1, 1)),
        dimension_numbers=("NHWC", "HWIO", "NHWC"))
    out2 = jax.nn.relu(out2 * s2 + o2)
    out3 = jnp.einsum("bhwc,cd->bhwd", out2, params["conv3_w"]) * s3 + o3
    if params["has_shortcut_conv"]:
        xs = x[:, ::stride, ::stride, :]
        sc = (jnp.einsum("bhwc,cd->bhwd", xs, params["sc_w"])
              * params["sc_bn"][0] + params["sc_bn"][1])
    else:
        sc = x
    out = jax.nn.relu(sc + out3 * g1[:, None, None, None])
    return jnp.transpose(out, (0, 3, 1, 2)), g1.reshape(B, 1, 1)


if __name__ == "__main__":
    B, in_planes, planes, expansion, stride = 2, 4, 8, 2, 1
    H = W = 16
    key = jax.random.PRNGKey(0)
    kx, kp = jax.random.split(key)
    x = jax.random.normal(kx, (B, in_planes, H, W), jnp.float32)     # NCHW, like PyTorch
    params = init_params(kp, in_planes, planes, expansion, stride)

    out, gate_w = weighted_bottleneck_forward(
        params, x, planes=planes, expansion=expansion, stride=stride)
    out = jax.block_until_ready(out)
    gate_w = jax.block_until_ready(gate_w)

    assert out.shape == (B, expansion * planes, H, W)
    assert gate_w.shape == (B, 1, 1)

    # sanity check vs. pure-JAX f32 reference (kernel runs bf16 -> loose tolerance)
    ref_out, ref_gate = _reference_forward(
        params, x, planes=planes, expansion=expansion, stride=stride)
    max_err = float(jnp.max(jnp.abs(out - ref_out)))
    assert max_err < 1e-1, f"max abs error vs reference: {max_err}"
    # gate margin is ~1.9 from fc2 bias [0.1, 2.0], so bf16 pooling cannot flip it here
    assert bool(jnp.all(gate_w == ref_gate)), "gate mismatch vs reference"

    print("KERNEL_OK")
</pallas_src>

<mosaic_0001>
module attributes {stable_mosaic.version = 11 : i64} {
  func.func @_fused_kernel(%arg0: i32, %arg1: memref<1x16x16x4xbf16, #tpu.memory_space<vmem>>, %arg2: memref<4x8xbf16, #tpu.memory_space<vmem>>, %arg3: memref<1x8xf32, #tpu.memory_space<vmem>>, %arg4: memref<72x8xbf16, #tpu.memory_space<vmem>>, %arg5: memref<1x8xf32, #tpu.memory_space<vmem>>, %arg6: memref<8x16xbf16, #tpu.memory_space<vmem>>, %arg7: memref<1x16xf32, #tpu.memory_space<vmem>>, %arg8: memref<4x16xf32, #tpu.memory_space<vmem>>, %arg9: memref<1x16xf32, #tpu.memory_space<vmem>>, %arg10: memref<16x2xf32, #tpu.memory_space<vmem>>, %arg11: memref<1x2xf32, #tpu.memory_space<vmem>>, %arg12: memref<4x16xbf16, #tpu.memory_space<vmem>>, %arg13: memref<1x16xf32, #tpu.memory_space<vmem>>, %arg14: memref<1x256x16xbf16, #tpu.memory_space<vmem>>, %arg15: memref<1x1x1xf32, #tpu.memory_space<vmem>>, %arg16: memref<18x18x8xbf16, #tpu.memory_space<vmem>>, %arg17: memref<256x72xbf16, #tpu.memory_space<vmem>>) attributes {dimension_semantics = [#tpu.dimension_semantics<parallel>], iteration_bounds = array<i64: 2>, scalar_prefetch = 0 : i64, scratch_operands = 2 : i64, tpu.core_type = #tpu.core_type<tc>, window_params = [{transform_indices = @transform_0, window_bounds = array<i64: 1, 16, 16, 4>}, {pipeline_mode = #tpu.pipeline_mode<synchronous>, transform_indices = @transform_1, window_bounds = array<i64: 4, 8>}, {pipeline_mode = #tpu.pipeline_mode<synchronous>, transform_indices = @transform_2, window_bounds = array<i64: 1, 8>}, {pipeline_mode = #tpu.pipeline_mode<synchronous>, transform_indices = @transform_3, window_bounds = array<i64: 72, 8>}, {pipeline_mode = #tpu.pipeline_mode<synchronous>, transform_indices = @transform_4, window_bounds = array<i64: 1, 8>}, {pipeline_mode = #tpu.pipeline_mode<synchronous>, transform_indices = @transform_5, window_bounds = array<i64: 8, 16>}, {pipeline_mode = #tpu.pipeline_mode<synchronous>, transform_indices = @transform_6, window_bounds = array<i64: 1, 16>}, {pipeline_mode = #tpu.pipeline_mode<synchronous>, transform_indices = @transform_7, window_bounds = array<i64: 4, 16>}, {pipeline_mode = #tpu.pipeline_mode<synchronous>, transform_indices = @transform_8, window_bounds = array<i64: 1, 16>}, {pipeline_mode = #tpu.pipeline_mode<synchronous>, transform_indices = @transform_9, window_bounds = array<i64: 16, 2>}, {pipeline_mode = #tpu.pipeline_mode<synchronous>, transform_indices = @transform_10, window_bounds = array<i64: 1, 2>}, {pipeline_mode = #tpu.pipeline_mode<synchronous>, transform_indices = @transform_11, window_bounds = array<i64: 4, 16>}, {pipeline_mode = #tpu.pipeline_mode<synchronous>, transform_indices = @transform_12, window_bounds = array<i64: 1, 16>}, {transform_indices = @transform_13, window_bounds = array<i64: 1, 256, 16>}, {transform_indices = @transform_14, window_bounds = array<i64: 1, 1, 1>}]} {
    %c0 = arith.constant 0 : index
    %c0_0 = arith.constant 0 : index
    %c0_1 = arith.constant 0 : index
    %c0_2 = arith.constant 0 : index
    %0 = vector.load %arg1[%c0, %c0_0, %c0_1, %c0_2] : memref<1x16x16x4xbf16, #tpu.memory_space<vmem>>, vector<1x16x16x4xbf16>
    %1 = vector.shape_cast %0 : vector<1x16x16x4xbf16> to vector<16x16x4xbf16>
    %2 = vector.shape_cast %1 : vector<16x16x4xbf16> to vector<256x4xbf16>
    %3 = arith.extf %2 : vector<256x4xbf16> to vector<256x4xf32>
    %cst = arith.constant dense<0.000000e+00> : vector<4xf32>
    %4 = vector.multi_reduction <add>, %3, %cst [0] : vector<256x4xf32> to vector<4xf32>
    %5 = vector.shape_cast %4 : vector<4xf32> to vector<1x4xf32>
    %cst_3 = arith.constant 3.906250e-03 : f32
    %6 = vector.broadcast %cst_3 : f32 to vector<1x4xf32>
    %7 = arith.mulf %5, %6 : vector<1x4xf32>
    %c0_4 = arith.constant 0 : index
    %c0_5 = arith.constant 0 : index
    %8 = vector.load %arg8[%c0_4, %c0_5] : memref<4x16xf32, #tpu.memory_space<vmem>>, vector<4x16xf32>
    %cst_6 = arith.constant dense<0.000000e+00> : vector<1x16xf32>
    %9 = tpu.matmul %7, %8, %cst_6 {dimension_numbers = #tpu.dot_dimension_numbers<[1], [0], [0], [1], [0, 0, 1, 1], [], []>} : vector<1x4xf32>, vector<4x16xf32>, vector<1x16xf32> -> vector<1x16xf32>
    %c0_7 = arith.constant 0 : index
    %c0_8 = arith.constant 0 : index
    %10 = vector.load %arg9[%c0_7, %c0_8] : memref<1x16xf32, #tpu.memory_space<vmem>>, vector<1x16xf32>
    %11 = arith.addf %9, %10 : vector<1x16xf32>
    %cst_9 = arith.constant 0.000000e+00 : f32
    %12 = vector.broadcast %cst_9 : f32 to vector<1x16xf32>
    %13 = arith.maximumf %11, %12 : vector<1x16xf32>
    %c0_10 = arith.constant 0 : index
    %c0_11 = arith.constant 0 : index
    %14 = vector.load %arg10[%c0_10, %c0_11] : memref<16x2xf32, #tpu.memory_space<vmem>>, vector<16x2xf32>
    %cst_12 = arith.constant dense<0.000000e+00> : vector<1x2xf32>
    %15 = tpu.matmul %13, %14, %cst_12 {dimension_numbers = #tpu.dot_dimension_numbers<[1], [0], [0], [1], [0, 0, 1, 1], [], []>} : vector<1x16xf32>, vector<16x2xf32>, vector<1x2xf32> -> vector<1x2xf32>
    %c0_13 = arith.constant 0 : index
    %c0_14 = arith.constant 0 : index
    %16 = vector.load %arg11[%c0_13, %c0_14] : memref<1x2xf32, #tpu.memory_space<vmem>>, vector<1x2xf32>
    %17 = arith.addf %15, %16 : vector<1x2xf32>
    %18 = vector.extract_strided_slice %17 {offsets = [0, 1], sizes = [1, 1], strides = [1, 1]} : vector<1x2xf32> to vector<1x1xf32>
    %19 = vector.extract_strided_slice %17 {offsets = [0, 0], sizes = [1, 1], strides = [1, 1]} : vector<1x2xf32> to vector<1x1xf32>
    %20 = arith.cmpf ogt, %18, %19 : vector<1x1xf32>
    %21 = arith.extui %20 : vector<1x1xi1> to vector<1x1xi32>
    %22 = arith.sitofp %21 : vector<1x1xi32> to vector<1x1xf32>
    %c0_15 = arith.constant 0 : index
    %c0_16 = arith.constant 0 : index
    %c0_17 = arith.constant 0 : index
    %23 = vector.load %arg15[%c0_15, %c0_16, %c0_17] : memref<1x1x1xf32, #tpu.memory_space<vmem>>, vector<1x1x1xf32>
    %24 = vector.shape_cast %23 : vector<1x1x1xf32> to vector<1x1xf32>
    %25 = vector.shape_cast %22 : vector<1x1xf32> to vector<1x1x1xf32>
    tpu.vector_store %arg15[%c0_15, %c0_16, %c0_17], %25 {strides = array<i32>} : memref<1x1x1xf32, #tpu.memory_space<vmem>>, vector<1x1x1xf32>,
    %cst_18 = arith.constant 0.000000e+00 : bf16
    %26 = vector.broadcast %cst_18 : bf16 to vector<18x18x8xbf16>
    %c0_19 = arith.constant 0 : index
    %c0_20 = arith.constant 0 : index
    %c0_21 = arith.constant 0 : index
    %27 = vector.load %arg16[%c0_19, %c0_20, %c0_21] : memref<18x18x8xbf16, #tpu.memory_space<vmem>>, vector<18x18x8xbf16>
    tpu.vector_store %arg16[%c0_19, %c0_20, %c0_21], %26 {strides = array<i32>} : memref<18x18x8xbf16, #tpu.memory_space<vmem>>, vector<18x18x8xbf16>,
    %c0_22 = arith.constant 0 : index
    %c0_23 = arith.constant 0 : index
    %28 = vector.load %arg2[%c0_22, %c0_23] : memref<4x8xbf16, #tpu.memory_space<vmem>>, vector<4x8xbf16>
    %cst_24 = arith.constant dense<0.000000e+00> : vector<256x8xf32>
    %29 = tpu.matmul %2, %28, %cst_24 {dimension_numbers = #tpu.dot_dimension_numbers<[1], [0], [0], [1], [0, 0, 1, 1], [], []>} : vector<256x4xbf16>, vector<4x8xbf16>, vector<256x8xf32> -> vector<256x8xf32>
    %c0_25 = arith.constant 0 : index
    %c0_26 = arith.constant 0 : index
    %30 = vector.load %arg3[%c0_25, %c0_26] : memref<1x8xf32, #tpu.memory_space<vmem>>, vector<1x8xf32>
    %31 = vector.broadcast %30 : vector<1x8xf32> to vector<256x8xf32>
    %32 = arith.addf %29, %31 : vector<256x8xf32>
    %cst_27 = arith.constant 0.000000e+00 : f32
    %33 = vector.broadcast %cst_27 : f32 to vector<256x8xf32>
    %34 = arith.maximumf %32, %33 : vector<256x8xf32>
    %35 = vector.shape_cast %34 : vector<256x8xf32> to vector<16x16x8xf32>
    %36 = arith.truncf %35 : vector<16x16x8xf32> to vector<16x16x8xbf16>
    %c1 = arith.constant 1 : index
    %c1_28 = arith.constant 1 : index
    %c0_29 = arith.constant 0 : index
    %37 = vector.load %arg16[%c1, %c1_28, %c0_29] : memref<18x18x8xbf16, #tpu.memory_space<vmem>>, vector<16x16x8xbf16>
    tpu.vector_store %arg16[%c1, %c1_28, %c0_29], %36 {strides = array<i32>} : memref<18x18x8xbf16, #tpu.memory_space<vmem>>, vector<16x16x8xbf16>,
    %c0_30 = arith.constant 0 : index
    %c0_31 = arith.constant 0 : index
    %c0_32 = arith.constant 0 : index
    %38 = vector.load %arg16[%c0_30, %c0_31, %c0_32] : memref<18x18x8xbf16, #tpu.memory_space<vmem>>, vector<16x16x8xbf16>
    %39 = vector.shape_cast %38 : vector<16x16x8xbf16> to vector<256x8xbf16>
    %c0_33 = arith.constant 0 : index
    %c0_34 = arith.constant 0 : index
    %40 = vector.load %arg17[%c0_33, %c0_34] : memref<256x72xbf16, #tpu.memory_space<vmem>>, vector<256x8xbf16>
    tpu.vector_store %arg17[%c0_33, %c0_34], %39 {strides = array<i32>} : memref<256x72xbf16, #tpu.memory_space<vmem>>, vector<256x8xbf16>,
    %c0_35 = arith.constant 0 : index
    %c1_36 = arith.constant 1 : index
    %c0_37 = arith.constant 0 : index
    %41 = vector.load %arg16[%c0_35, %c1_36, %c0_37] : memref<18x18x8xbf16, #tpu.memory_space<vmem>>, vector<16x16x8xbf16>
    %42 = vector.shape_cast %41 : vector<16x16x8xbf16> to vector<256x8xbf16>
    %c0_38 = arith.constant 0 : index
    %c8 = arith.constant 8 : index
    %43 = vector.load %arg17[%c0_38, %c8] : memref<256x72xbf16, #tpu.memory_space<vmem>>, vector<256x8xbf16>
    tpu.vector_store %arg17[%c0_38, %c8], %42 {strides = array<i32>} : memref<256x72xbf16, #tpu.memory_space<vmem>>, vector<256x8xbf16>,
    %c0_39 = arith.constant 0 : index
    %c2 = arith.constant 2 : index
    %c0_40 = arith.constant 0 : index
    %44 = vector.load %arg16[%c0_39, %c2, %c0_40] : memref<18x18x8xbf16, #tpu.memory_space<vmem>>, vector<16x16x8xbf16>
    %45 = vector.shape_cast %44 : vector<16x16x8xbf16> to vector<256x8xbf16>
    %c0_41 = arith.constant 0 : index
    %c16 = arith.constant 16 : index
    %46 = vector.load %arg17[%c0_41, %c16] : memref<256x72xbf16, #tpu.memory_space<vmem>>, vector<256x8xbf16>
    tpu.vector_store %arg17[%c0_41, %c16], %45 {strides = array<i32>} : memref<256x72xbf16, #tpu.memory_space<vmem>>, vector<256x8xbf16>,
    %c1_42 = arith.constant 1 : index
    %c0_43 = arith.constant 0 : index
    %c0_44 = arith.constant 0 : index
    %47 = vector.load %arg16[%c1_42, %c0_43, %c0_44] : memref<18x18x8xbf16, #tpu.memory_space<vmem>>, vector<16x16x8xbf16>
    %48 = vector.shape_cast %47 : vector<16x16x8xbf16> to vector<256x8xbf16>
    %c0_45 = arith.constant 0 : index
    %c24 = arith.constant 24 : index
    %49 = vector.load %arg17[%c0_45, %c24] : memref<256x72xbf16, #tpu.memory_space<vmem>>, vector<256x8xbf16>
    tpu.vector_store %arg17[%c0_45, %c24], %48 {strides = array<i32>} : memref<256x72xbf16, #tpu.memory_space<vmem>>, vector<256x8xbf16>,
    %c1_46 = arith.constant 1 : index
    %c1_47 = arith.constant 1 : index
    %c0_48 = arith.constant 0 : index
    %50 = vector.load %arg16[%c1_46, %c1_47, %c0_48] : memref<18x18x8xbf16, #tpu.memory_space<vmem>>, vector<16x16x8xbf16>
    %51 = vector.shape_cast %50 : vector<16x16x8xbf16> to vector<256x8xbf16>
    %c0_49 = arith.constant 0 : index
    %c32 = arith.constant 32 : index
    %52 = vector.load %arg17[%c0_49, %c32] : memref<256x72xbf16, #tpu.memory_space<vmem>>, vector<256x8xbf16>
    tpu.vector_store %arg17[%c0_49, %c32], %51 {strides = array<i32>} : memref<256x72xbf16, #tpu.memory_space<vmem>>, vector<256x8xbf16>,
    %c1_50 = arith.constant 1 : index
    %c2_51 = arith.constant 2 : index
    %c0_52 = arith.constant 0 : index
    %53 = vector.load %arg16[%c1_50, %c2_51, %c0_52] : memref<18x18x8xbf16, #tpu.memory_space<vmem>>, vector<16x16x8xbf16>
    %54 = vector.shape_cast %53 : vector<16x16x8xbf16> to vector<256x8xbf16>
    %c0_53 = arith.constant 0 : index
    %c40 = arith.constant 40 : index
    %55 = vector.load %arg17[%c0_53, %c40] : memref<256x72xbf16, #tpu.memory_space<vmem>>, vector<256x8xbf16>
    tpu.vector_store %arg17[%c0_53, %c40], %54 {strides = array<i32>} : memref<256x72xbf16, #tpu.memory_space<vmem>>, vector<256x8xbf16>,
    %c2_54 = arith.constant 2 : index
    %c0_55 = arith.constant 0 : index
    %c0_56 = arith.constant 0 : index
    %56 = vector.load %arg16[%c2_54, %c0_55, %c0_56] : memref<18x18x8xbf16, #tpu.memory_space<vmem>>, vector<16x16x8xbf16>
    %57 = vector.shape_cast %56 : vector<16x16x8xbf16> to vector<256x8xbf16>
    %c0_57 = arith.constant 0 : index
    %c48 = arith.constant 48 : index
    %58 = vector.load %arg17[%c0_57, %c48] : memref<256x72xbf16, #tpu.memory_space<vmem>>, vector<256x8xbf16>
    tpu.vector_store %arg17[%c0_57, %c48], %57 {strides = array<i32>} : memref<256x72xbf16, #tpu.memory_space<vmem>>, vector<256x8xbf16>,
    %c2_58 = arith.constant 2 : index
    %c1_59 = arith.constant 1 : index
    %c0_60 = arith.constant 0 : index
    %59 = vector.load %arg16[%c2_58, %c1_59, %c0_60] : memref<18x18x8xbf16, #tpu.memory_space<vmem>>, vector<16x16x8xbf16>
    %60 = vector.shape_cast %59 : vector<16x16x8xbf16> to vector<256x8xbf16>
    %c0_61 = arith.constant 0 : index
    %c56 = arith.constant 56 : index
    %61 = vector.load %arg17[%c0_61, %c56] : memref<256x72xbf16, #tpu.memory_space<vmem>>, vector<256x8xbf16>
    tpu.vector_store %arg17[%c0_61, %c56], %60 {strides = array<i32>} : memref<256x72xbf16, #tpu.memory_space<vmem>>, vector<256x8xbf16>,
    %c2_62 = arith.constant 2 : index
    %c2_63 = arith.constant 2 : index
    %c0_64 = arith.constant 0 : index
    %62 = vector.load %arg16[%c2_62, %c2_63, %c0_64] : memref<18x18x8xbf16, #tpu.memory_space<vmem>>, vector<16x16x8xbf16>
    %63 = vector.shape_cast %62 : vector<16x16x8xbf16> to vector<256x8xbf16>
    %c0_65 = arith.constant 0 : index
    %c64 = arith.constant 64 : index
    %64 = vector.load %arg17[%c0_65, %c64] : memref<256x72xbf16, #tpu.memory_space<vmem>>, vector<256x8xbf16>
    tpu.vector_store %arg17[%c0_65, %c64], %63 {strides = array<i32>} : memref<256x72xbf16, #tpu.memory_space<vmem>>, vector<256x8xbf16>,
    %c0_66 = arith.constant 0 : index
    %c0_67 = arith.constant 0 : index
    %65 = vector.load %arg17[%c0_66, %c0_67] : memref<256x72xbf16, #tpu.memory_space<vmem>>, vector<256x72xbf16>
    %c0_68 = arith.constant 0 : index
    %c0_69 = arith.constant 0 : index
    %66 = vector.load %arg4[%c0_68, %c0_69] : memref<72x8xbf16, #tpu.memory_space<vmem>>, vector<72x8xbf16>
    %cst_70 = arith.constant dense<0.000000e+00> : vector<256x8xf32>
    %67 = tpu.matmul %65, %66, %cst_70 {dimension_numbers = #tpu.dot_dimension_numbers<[1], [0], [0], [1], [0, 0, 1, 1], [], []>} : vector<256x72xbf16>, vector<72x8xbf16>, vector<256x8xf32> -> vector<256x8xf32>
    %c0_71 = arith.constant 0 : index
    %c0_72 = arith.constant 0 : index
    %68 = vector.load %arg5[%c0_71, %c0_72] : memref<1x8xf32, #tpu.memory_space<vmem>>, vector<1x8xf32>
    %69 = vector.broadcast %68 : vector<1x8xf32> to vector<256x8xf32>
    %70 = arith.addf %67, %69 : vector<256x8xf32>
    %cst_73 = arith.constant 0.000000e+00 : f32
    %71 = vector.broadcast %cst_73 : f32 to vector<256x8xf32>
    %72 = arith.maximumf %70, %71 : vector<256x8xf32>
    %73 = arith.truncf %72 : vector<256x8xf32> to vector<256x8xbf16>
    %c0_74 = arith.constant 0 : index
    %c0_75 = arith.constant 0 : index
    %74 = vector.load %arg6[%c0_74, %c0_75] : memref<8x16xbf16, #tpu.memory_space<vmem>>, vector<8x16xbf16>
    %cst_76 = arith.constant dense<0.000000e+00> : vector<256x16xf32>
    %75 = tpu.matmul %73, %74, %cst_76 {dimension_numbers = #tpu.dot_dimension_numbers<[1], [0], [0], [1], [0, 0, 1, 1], [], []>} : vector<256x8xbf16>, vector<8x16xbf16>, vector<256x16xf32> -> vector<256x16xf32>
    %c0_77 = arith.constant 0 : index
    %c0_78 = arith.constant 0 : index
    %76 = vector.load %arg7[%c0_77, %c0_78] : memref<1x16xf32, #tpu.memory_space<vmem>>, vector<1x16xf32>
    %77 = vector.broadcast %76 : vector<1x16xf32> to vector<256x16xf32>
    %78 = arith.addf %75, %77 : vector<256x16xf32>
    %c0_79 = arith.constant 0 : index
    %c0_80 = arith.constant 0 : index
    %79 = vector.load %arg12[%c0_79, %c0_80] : memref<4x16xbf16, #tpu.memory_space<vmem>>, vector<4x16xbf16>
    %cst_81 = arith.constant dense<0.000000e+00> : vector<256x16xf32>
    %80 = tpu.matmul %2, %79, %cst_81 {dimension_numbers = #tpu.dot_dimension_numbers<[1], [0], [0], [1], [0, 0, 1, 1], [], []>} : vector<256x4xbf16>, vector<4x16xbf16>, vector<256x16xf32> -> vector<256x16xf32>
    %c0_82 = arith.constant 0 : index
    %c0_83 = arith.constant 0 : index
    %81 = vector.load %arg13[%c0_82, %c0_83] : memref<1x16xf32, #tpu.memory_space<vmem>>, vector<1x16xf32>
    %82 = vector.broadcast %81 : vector<1x16xf32> to vector<256x16xf32>
    %83 = arith.addf %80, %82 : vector<256x16xf32>
    %84 = vector.broadcast %22 : vector<1x1xf32> to vector<256x16xf32>
    %85 = arith.mulf %78, %84 : vector<256x16xf32>
    %86 = arith.addf %83, %85 : vector<256x16xf32>
    %cst_84 = arith.constant 0.000000e+00 : f32
    %87 = vector.broadcast %cst_84 : f32 to vector<256x16xf32>
    %88 = arith.maximumf %86, %87 : vector<256x16xf32>
    %89 = arith.truncf %88 : vector<256x16xf32> to vector<256x16xbf16>
    %c0_85 = arith.constant 0 : index
    %c0_86 = arith.constant 0 : index
    %c0_87 = arith.constant 0 : index
    %90 = vector.load %arg14[%c0_85, %c0_86, %c0_87] : memref<1x256x16xbf16, #tpu.memory_space<vmem>>, vector<1x256x16xbf16>
    %91 = vector.shape_cast %90 : vector<1x256x16xbf16> to vector<256x16xbf16>
    %92 = vector.shape_cast %89 : vector<256x16xbf16> to vector<1x256x16xbf16>
    tpu.vector_store %arg14[%c0_85, %c0_86, %c0_87], %92 {strides = array<i32>} : memref<1x256x16xbf16, #tpu.memory_space<vmem>>, vector<1x256x16xbf16>,
    return
  }
  func.func @transform_0(%arg0: i32) -> (i32, i32, i32, i32) {
    %c0_i32 = arith.constant 0 : i32
    %c0_i32_0 = arith.constant 0 : i32
    %c0_i32_1 = arith.constant 0 : i32
    %c0_i32_2 = arith.constant 0 : i32
    return %arg0, %c0_i32, %c0_i32_0, %c0_i32_1 : i32, i32, i32, i32
  }
  func.func @transform_1(%arg0: i32) -> (i32, i32) {
    %c0_i32 = arith.constant 0 : i32
    %c0_i32_0 = arith.constant 0 : i32
    %c0_i32_1 = arith.constant 0 : i32
    return %c0_i32, %c0_i32_0 : i32, i32
  }
  func.func @transform_2(%arg0: i32) -> (i32, i32) {
    %c0_i32 = arith.constant 0 : i32
    %c0_i32_0 = arith.constant 0 : i32
    %c0_i32_1 = arith.constant 0 : i32
    return %c0_i32, %c0_i32_0 : i32, i32
  }
  func.func @transform_3(%arg0: i32) -> (i32, i32) {
    %c0_i32 = arith.constant 0 : i32
    %c0_i32_0 = arith.constant 0 : i32
    %c0_i32_1 = arith.constant 0 : i32
    return %c0_i32, %c0_i32_0 : i32, i32
  }
  func.func @transform_4(%arg0: i32) -> (i32, i32) {
    %c0_i32 = arith.constant 0 : i32
    %c0_i32_0 = arith.constant 0 : i32
    %c0_i32_1 = arith.constant 0 : i32
    return %c0_i32, %c0_i32_0 : i32, i32
  }
  func.func @transform_5(%arg0: i32) -> (i32, i32) {
    %c0_i32 = arith.constant 0 : i32
    %c0_i32_0 = arith.constant 0 : i32
    %c0_i32_1 = arith.constant 0 : i32
    return %c0_i32, %c0_i32_0 : i32, i32
  }
  func.func @transform_6(%arg0: i32) -> (i32, i32) {
    %c0_i32 = arith.constant 0 : i32
    %c0_i32_0 = arith.constant 0 : i32
    %c0_i32_1 = arith.constant 0 : i32
    return %c0_i32, %c0_i32_0 : i32, i32
  }
  func.func @transform_7(%arg0: i32) -> (i32, i32) {
    %c0_i32 = arith.constant 0 : i32
    %c0_i32_0 = arith.constant 0 : i32
    %c0_i32_1 = arith.constant 0 : i32
    return %c0_i32, %c0_i32_0 : i32, i32
  }
  func.func @transform_8(%arg0: i32) -> (i32, i32) {
    %c0_i32 = arith.constant 0 : i32
    %c0_i32_0 = arith.constant 0 : i32
    %c0_i32_1 = arith.constant 0 : i32
    return %c0_i32, %c0_i32_0 : i32, i32
  }
  func.func @transform_9(%arg0: i32) -> (i32, i32) {
    %c0_i32 = arith.constant 0 : i32
    %c0_i32_0 = arith.constant 0 : i32
    %c0_i32_1 = arith.constant 0 : i32
    return %c0_i32, %c0_i32_0 : i32, i32
  }
  func.func @transform_10(%arg0: i32) -> (i32, i32) {
    %c0_i32 = arith.constant 0 : i32
    %c0_i32_0 = arith.constant 0 : i32
    %c0_i32_1 = arith.constant 0 : i32
    return %c0_i32, %c0_i32_0 : i32, i32
  }
  func.func @transform_11(%arg0: i32) -> (i32, i32) {
    %c0_i32 = arith.constant 0 : i32
    %c0_i32_0 = arith.constant 0 : i32
    %c0_i32_1 = arith.constant 0 : i32
    return %c0_i32, %c0_i32_0 : i32, i32
  }
  func.func @transform_12(%arg0: i32) -> (i32, i32) {
    %c0_i32 = arith.constant 0 : i32
    %c0_i32_0 = arith.constant 0 : i32
    %c0_i32_1 = arith.constant 0 : i32
    return %c0_i32, %c0_i32_0 : i32, i32
  }
  func.func @transform_13(%arg0: i32) -> (i32, i32, i32) {
    %c0_i32 = arith.constant 0 : i32
    %c0_i32_0 = arith.constant 0 : i32
    %c0_i32_1 = arith.constant 0 : i32
    return %arg0, %c0_i32, %c0_i32_0 : i32, i32, i32
  }
  func.func @transform_14(%arg0: i32) -> (i32, i32, i32) {
    %c0_i32 = arith.constant 0 : i32
    %c0_i32_0 = arith.constant 0 : i32
    %c0_i32_1 = arith.constant 0 : i32
    return %arg0, %c0_i32, %c0_i32_0 : i32, i32, i32
  }
}

</mosaic_0001>

<llo_original>
// kernel: tpu_custom_call.1
$region0: #{tpu_custom_call.1}
  #allocation0 [shape = 'u32[]', space=smem, size = 0x4, offset = 0x4, fixed_abs, tag = 'smem constant byte address 0x4 - core index']
  #allocation1 [shape = 'u32[144,128]{1,0:T(1,128)}', space=vmem, size = 0x12000, scoped, tag = 'internal scratch']
  #allocation2 [shape = 'bf16[18,18,8]{2,1,0:T(8,128)(2,1)}', space=vmem, size = 0x1b000, scoped, tag = 'scratch operand']
  #allocation3 [shape = 'bf16[256,72]{1,0:T(8,128)(2,1)}', space=vmem, size = 0x10000, scoped, tag = 'scratch operand']
  %s0 = inlined_call_operand.vmem [shape: bf16[2,16,16,4], index: 0, kind: input, shape index: {}]
  %s1 = inlined_call_operand.vmem [shape: bf16[4,8], index: 1, kind: input, shape index: {}]
  %s2 = inlined_call_operand.vmem [shape: f32[1,8], index: 2, kind: input, shape index: {}]
  %s3 = inlined_call_operand.vmem [shape: bf16[72,8], index: 3, kind: input, shape index: {}]
  %s4 = inlined_call_operand.vmem [shape: f32[1,8], index: 4, kind: input, shape index: {}]
  %s5 = inlined_call_operand.vmem [shape: bf16[8,16], index: 5, kind: input, shape index: {}]
  %s6 = inlined_call_operand.vmem [shape: f32[1,16], index: 6, kind: input, shape index: {}]
  %s7 = inlined_call_operand.vmem [shape: f32[4,16], index: 7, kind: input, shape index: {}]
  %s8 = inlined_call_operand.vmem [shape: f32[1,16], index: 8, kind: input, shape index: {}]
  %s9 = inlined_call_operand.vmem [shape: f32[16,2], index: 9, kind: input, shape index: {}]
  %s10 = inlined_call_operand.vmem [shape: f32[1,2], index: 10, kind: input, shape index: {}]
  %s11 = inlined_call_operand.vmem [shape: bf16[4,16], index: 11, kind: input, shape index: {}]
  %s12 = inlined_call_operand.vmem [shape: f32[1,16], index: 12, kind: input, shape index: {}]
  %s13 = inlined_call_operand.vmem [shape: bf16[2,256,16], index: 13, kind: output, shape index: {0}]
  %s14 = inlined_call_operand.vmem [shape: f32[2,1,1], index: 14, kind: output, shape index: {1}]
  %15 = xla_tuple %s13, %s14
  %s16 = sld [smem:[#allocation0]]
  $region93: #{tpu_custom_call.1} parent=0
    _
  %s18 = ssub.s32 1, %s16
  %s19 = scalar_select 0, %s18, %s16
  loop: start=0, step=1, limit=4
  $region2: #{tpu_custom_call.1} parent=0 // loop_pre_header
    _
  $region3: #{tpu_custom_call.1} parent=0 // loop_header
    %s21 = sphi 0, %s25
    %p22 = scmp.ge.s32.totalorder %s21, 4
    %s31 = sphi 0, %s33
    %s34 = sphi 0, %s31
    %s35 = sphi 0, %s34
    %s51 = sphi 0, %s35
    %s55 = sphi 0, %s55
    %s57 = sphi 0, %s55
    %s58 = sphi 0, %s57
    %s72 = sphi 0, %s58
    %s76 = sphi 0, %s76
    %s78 = sphi 0, %s76
    %s79 = sphi 0, %s78
    %s93 = sphi 0, %s79
    %s97 = sphi 0, %s97
    %s99 = sphi 0, %s97
    %s100 = sphi 0, %s99
    %s114 = sphi 0, %s100
    %s118 = sphi 0, %s118
    %s120 = sphi 0, %s118
    %s121 = sphi 0, %s120
    %s135 = sphi 0, %s121
    %s139 = sphi 0, %s139
    %s141 = sphi 0, %s139
    %s142 = sphi 0, %s141
    %s156 = sphi 0, %s142
    %s160 = sphi 0, %s160
    %s162 = sphi 0, %s160
    %s163 = sphi 0, %s162
    %s177 = sphi 0, %s163
    %s181 = sphi 0, %s181
    %s183 = sphi 0, %s181
    %s184 = sphi 0, %s183
    %s198 = sphi 0, %s184
    %s202 = sphi 0, %s202
    %s204 = sphi 0, %s202
    %s205 = sphi 0, %s204
    %s219 = sphi 0, %s205
    %s223 = sphi 0, %s223
    %s225 = sphi 0, %s223
    %s226 = sphi 0, %s225
    %s240 = sphi 0, %s226
    %s244 = sphi 0, %s244
    %s246 = sphi 0, %s244
    %s247 = sphi 0, %s246
    %s261 = sphi 0, %s247
    %s265 = sphi 0, %s265
    %s267 = sphi 0, %s265
    %s268 = sphi 0, %s267
    %s282 = sphi 0, %s268
    %s286 = sphi 0, %s286
    %s288 = sphi 0, %s286
    %s289 = sphi 0, %s288
    %s303 = sphi 0, %s289
    %s309 = sphi 0, %s311
    %s312 = sphi 0, %s309
    %s313 = sphi 0, %s312
    %s329 = sphi 0, %s313
    %s335 = sphi 0, %s337
    %s338 = sphi 0, %s335
    %s339 = sphi 0, %s338
    %s355 = sphi 0, %s339
  $region4: #{tpu_custom_call.1} parent=0 // loop_header_branch
    %24 = sbr.rel (%p22) target = $region8
  $region5: #{tpu_custom_call.1} parent=0 // loop_body
    %s26 = ssub.s32 %s21, 1
    %s27 = ssub.s32 %s21, 2
    %s28 = sadd.s32 %s21, 1
    %s29 = ssub.s32 %s21, %s28
    %p30 = scmp.eq.s32.totalorder %s29, 0
    %s32 = sadd.s32 %s31, 1
    %s33 = scalar_select %p30, %s31, %s32
    %p36 = pneg %p30
    %p37 = scmp.eq.s32.totalorder %s21, 1
    %p38 = por %p36, %p37
    %p39 = scmp.ne.s32.totalorder %s31, %s34
    %p40 = scmp.eq.s32.totalorder %s21, 0
    %p41 = por %p39, %p40
    %p42 = scmp.ne.s32.totalorder %s31, %s34
    %p43 = scmp.eq.s32.totalorder %s26, 1
    %p44 = por %p42, %p43
    %p45 = scmp.ne.s32.totalorder %s34, %s35
    %p46 = scmp.eq.s32.totalorder %s26, 0
    %p47 = por %p45, %p46
    %p48 = scmp.ne.s32.totalorder %s34, %s35
    %p49 = scmp.eq.s32.totalorder %s27, 1
    %p50 = por %p48, %p49
    %p52 = scmp.ne.s32.totalorder %s35, %s51
    %p53 = scmp.eq.s32.totalorder %s27, 0
    %p54 = por %p52, %p53
    %s56 = sadd.s32 %s55, 1
    %p59 = scmp.eq.s32.totalorder %s21, 1
    %p60 = scmp.ne.s32.totalorder %s55, %s57
    %p61 = scmp.eq.s32.totalorder %s21, 0
    %p62 = por %p60, %p61
    %p63 = scmp.ne.s32.totalorder %s55, %s57
    %p64 = scmp.eq.s32.totalorder %s26, 1
    %p65 = por %p63, %p64
    %p66 = scmp.ne.s32.totalorder %s57, %s58
    %p67 = scmp.eq.s32.totalorder %s26, 0
    %p68 = por %p66, %p67
    %p69 = scmp.ne.s32.totalorder %s57, %s58
    %p70 = scmp.eq.s32.totalorder %s27, 1
    %p71 = por %p69, %p70
    %p73 = scmp.ne.s32.totalorder %s58, %s72
    %p74 = scmp.eq.s32.totalorder %s27, 0
    %p75 = por %p73, %p74
    %s77 = sadd.s32 %s76, 1
    %p80 = scmp.eq.s32.totalorder %s21, 1
    %p81 = scmp.ne.s32.totalorder %s76, %s78
    %p82 = scmp.eq.s32.totalorder %s21, 0
    %p83 = por %p81, %p82
    %p84 = scmp.ne.s32.totalorder %s76, %s78
    %p85 = scmp.eq.s32.totalorder %s26, 1
    %p86 = por %p84, %p85
    %p87 = scmp.ne.s32.totalorder %s78, %s79
    %p88 = scmp.eq.s32.totalorder %s26, 0
    %p89 = por %p87, %p88
    %p90 = scmp.ne.s32.totalorder %s78, %s79
    %p91 = scmp.eq.s32.totalorder %s27, 1
    %p92 = por %p90, %p91
    %p94 = scmp.ne.s32.totalorder %s79, %s93
    %p95 = scmp.eq.s32.totalorder %s27, 0
    %p96 = por %p94, %p95
    %s98 = sadd.s32 %s97, 1
    %p101 = scmp.eq.s32.totalorder %s21, 1
    %p102 = scmp.ne.s32.totalorder %s97, %s99
    %p103 = scmp.eq.s32.totalorder %s21, 0
    %p104 = por %p102, %p103
    %p105 = scmp.ne.s32.totalorder %s97, %s99
    %p106 = scmp.eq.s32.totalorder %s26, 1
    %p107 = por %p105, %p106
    %p108 = scmp.ne.s32.totalorder %s99, %s100
    %p109 = scmp.eq.s32.totalorder %s26, 0
    %p110 = por %p108, %p109
    %p111 = scmp.ne.s32.totalorder %s99, %s100
    %p112 = scmp.eq.s32.totalorder %s27, 1
    %p113 = por %p111, %p112
    %p115 = scmp.ne.s32.totalorder %s100, %s114
    %p116 = scmp.eq.s32.totalorder %s27, 0
    %p117 = por %p115, %p116
    %s119 = sadd.s32 %s118, 1
    %p122 = scmp.eq.s32.totalorder %s21, 1
    %p123 = scmp.ne.s32.totalorder %s118, %s120
    %p124 = scmp.eq.s32.totalorder %s21, 0
    %p125 = por %p123, %p124
    %p126 = scmp.ne.s32.totalorder %s118, %s120
    %p127 = scmp.eq.s32.totalorder %s26, 1
    %p128 = por %p126, %p127
    %p129 = scmp.ne.s32.totalorder %s120, %s121
    %p130 = scmp.eq.s32.totalorder %s26, 0
    %p131 = por %p129, %p130
    %p132 = scmp.ne.s32.totalorder %s120, %s121
    %p133 = scmp.eq.s32.totalorder %s27, 1
    %p134 = por %p132, %p133
    %p136 = scmp.ne.s32.totalorder %s121, %s135
    %p137 = scmp.eq.s32.totalorder %s27, 0
    %p138 = por %p136, %p137
    %s140 = sadd.s32 %s139, 1
    %p143 = scmp.eq.s32.totalorder %s21, 1
    %p144 = scmp.ne.s32.totalorder %s139, %s141
    %p145 = scmp.eq.s32.totalorder %s21, 0
    %p146 = por %p144, %p145
    %p147 = scmp.ne.s32.totalorder %s139, %s141
    %p148 = scmp.eq.s32.totalorder %s26, 1
    %p149 = por %p147, %p148
    %p150 = scmp.ne.s32.totalorder %s141, %s142
    %p151 = scmp.eq.s32.totalorder %s26, 0
    %p152 = por %p150, %p151
    %p153 = scmp.ne.s32.totalorder %s141, %s142
    %p154 = scmp.eq.s32.totalorder %s27, 1
    %p155 = por %p153, %p154
    %p157 = scmp.ne.s32.totalorder %s142, %s156
    %p158 = scmp.eq.s32.totalorder %s27, 0
    %p159 = por %p157, %p158
    %s161 = sadd.s32 %s160, 1
    %p164 = scmp.eq.s32.totalorder %s21, 1
    %p165 = scmp.ne.s32.totalorder %s160, %s162
    %p166 = scmp.eq.s32.totalorder %s21, 0
    %p167 = por %p165, %p166
    %p168 = scmp.ne.s32.totalorder %s160, %s162
    %p169 = scmp.eq.s32.totalorder %s26, 1
    %p170 = por %p168, %p169
    %p171 = scmp.ne.s32.totalorder %s162, %s163
    %p172 = scmp.eq.s32.totalorder %s26, 0
    %p173 = por %p171, %p172
    %p174 = scmp.ne.s32.totalorder %s162, %s163
    %p175 = scmp.eq.s32.totalorder %s27, 1
    %p176 = por %p174, %p175
    %p178 = scmp.ne.s32.totalorder %s163, %s177
    %p179 = scmp.eq.s32.totalorder %s27, 0
    %p180 = por %p178, %p179
    %s182 = sadd.s32 %s181, 1
    %p185 = scmp.eq.s32.totalorder %s21, 1
    %p186 = scmp.ne.s32.totalorder %s181, %s183
    %p187 = scmp.eq.s32.totalorder %s21, 0
    %p188 = por %p186, %p187
    %p189 = scmp.ne.s32.totalorder %s181, %s183
    %p190 = scmp.eq.s32.totalorder %s26, 1
    %p191 = por %p189, %p190
    %p192 = scmp.ne.s32.totalorder %s183, %s184
    %p193 = scmp.eq.s32.totalorder %s26, 0
    %p194 = por %p192, %p193
    %p195 = scmp.ne.s32.totalorder %s183, %s184
    %p196 = scmp.eq.s32.totalorder %s27, 1
    %p197 = por %p195, %p196
    %p199 = scmp.ne.s32.totalorder %s184, %s198
    %p200 = scmp.eq.s32.totalorder %s27, 0
    %p201 = por %p199, %p200
    %s203 = sadd.s32 %s202, 1
    %p206 = scmp.eq.s32.totalorder %s21, 1
    %p207 = scmp.ne.s32.totalorder %s202, %s204
    %p208 = scmp.eq.s32.totalorder %s21, 0
    %p209 = por %p207, %p208
    %p210 = scmp.ne.s32.totalorder %s202, %s204
    %p211 = scmp.eq.s32.totalorder %s26, 1
    %p212 = por %p210, %p211
    %p213 = scmp.ne.s32.totalorder %s204, %s205
    %p214 = scmp.eq.s32.totalorder %s26, 0
    %p215 = por %p213, %p214
    %p216 = scmp.ne.s32.totalorder %s204, %s205
    %p217 = scmp.eq.s32.totalorder %s27, 1
    %p218 = por %p216, %p217
    %p220 = scmp.ne.s32.totalorder %s205, %s219
    %p221 = scmp.eq.s32.totalorder %s27, 0
    %p222 = por %p220, %p221
    %s224 = sadd.s32 %s223, 1
    %p227 = scmp.eq.s32.totalorder %s21, 1
    %p228 = scmp.ne.s32.totalorder %s223, %s225
    %p229 = scmp.eq.s32.totalorder %s21, 0
    %p230 = por %p228, %p229
    %p231 = scmp.ne.s32.totalorder %s223, %s225
    %p232 = scmp.eq.s32.totalorder %s26, 1
    %p233 = por %p231, %p232
    %p234 = scmp.ne.s32.totalorder %s225, %s226
    %p235 = scmp.eq.s32.totalorder %s26, 0
    %p236 = por %p234, %p235
    %p237 = scmp.ne.s32.totalorder %s225, %s226
    %p238 = scmp.eq.s32.totalorder %s27, 1
    %p239 = por %p237, %p238
    %p241 = scmp.ne.s32.totalorder %s226, %s240
    %p242 = scmp.eq.s32.totalorder %s27, 0
    %p243 = por %p241, %p242
    %s245 = sadd.s32 %s244, 1
    %p248 = scmp.eq.s32.totalorder %s21, 1
    %p249 = scmp.ne.s32.totalorder %s244, %s246
    %p250 = scmp.eq.s32.totalorder %s21, 0
    %p251 = por %p249, %p250
    %p252 = scmp.ne.s32.totalorder %s244, %s246
    %p253 = scmp.eq.s32.totalorder %s26, 1
    %p254 = por %p252, %p253
    %p255 = scmp.ne.s32.totalorder %s246, %s247
    %p256 = scmp.eq.s32.totalorder %s26, 0
    %p257 = por %p255, %p256
    %p258 = scmp.ne.s32.totalorder %s246, %s247
    %p259 = scmp.eq.s32.totalorder %s27, 1
    %p260 = por %p258, %p259
    %p262 = scmp.ne.s32.totalorder %s247, %s261
    %p263 = scmp.eq.s32.totalorder %s27, 0
    %p264 = por %p262, %p263
    %s266 = sadd.s32 %s265, 1
    %p269 = scmp.eq.s32.totalorder %s21, 1
    %p270 = scmp.ne.s32.totalorder %s265, %s267
    %p271 = scmp.eq.s32.totalorder %s21, 0
    %p272 = por %p270, %p271
    %p273 = scmp.ne.s32.totalorder %s265, %s267
    %p274 = scmp.eq.s32.totalorder %s26, 1
    %p275 = por %p273, %p274
    %p276 = scmp.ne.s32.totalorder %s267, %s268
    %p277 = scmp.eq.s32.totalorder %s26, 0
    %p278 = por %p276, %p277
    %p279 = scmp.ne.s32.totalorder %s267, %s268
    %p280 = scmp.eq.s32.totalorder %s27, 1
    %p281 = por %p279, %p280
    %p283 = scmp.ne.s32.totalorder %s268, %s282
    %p284 = scmp.eq.s32.totalorder %s27, 0
    %p285 = por %p283, %p284
    %s287 = sadd.s32 %s286, 1
    %p290 = scmp.eq.s32.totalorder %s21, 1
    %p291 = scmp.ne.s32.totalorder %s286, %s288
    %p292 = scmp.eq.s32.totalorder %s21, 0
    %p293 = por %p291, %p292
    %p294 = scmp.ne.s32.totalorder %s286, %s288
    %p295 = scmp.eq.s32.totalorder %s26, 1
    %p296 = por %p294, %p295
    %p297 = scmp.ne.s32.totalorder %s288, %s289
    %p298 = scmp.eq.s32.totalorder %s26, 0
    %p299 = por %p297, %p298
    %p300 = scmp.ne.s32.totalorder %s288, %s289
    %p301 = scmp.eq.s32.totalorder %s27, 1
    %p302 = por %p300, %p301
    %p304 = scmp.ne.s32.totalorder %s289, %s303
    %p305 = scmp.eq.s32.totalorder %s27, 0
    %p306 = por %p304, %p305
    %s307 = ssub.s32 %s21, %s28
    %p308 = scmp.eq.s32.totalorder %s307, 0
    %s310 = sadd.s32 %s309, 1
    %s311 = scalar_select %p308, %s309, %s310
    %p314 = pneg %p308
    %p315 = scmp.eq.s32.totalorder %s21, 1
    %p316 = por %p314, %p315
    %p317 = scmp.ne.s32.totalorder %s309, %s312
    %p318 = scmp.eq.s32.totalorder %s21, 0
    %p319 = por %p317, %p318
    %p320 = scmp.ne.s32.totalorder %s309, %s312
    %p321 = scmp.eq.s32.totalorder %s26, 1
    %p322 = por %p320, %p321
    %p323 = scmp.ne.s32.totalorder %s312, %s313
    %p324 = scmp.eq.s32.totalorder %s26, 0
    %p325 = por %p323, %p324
    %p326 = scmp.ne.s32.totalorder %s312, %s313
    %p327 = scmp.eq.s32.totalorder %s27, 1
    %p328 = por %p326, %p327
    %p330 = scmp.ne.s32.totalorder %s313, %s329
    %p331 = scmp.eq.s32.totalorder %s27, 0
    %p332 = por %p330, %p331
    %s333 = ssub.s32 %s21, %s28
    %p334 = scmp.eq.s32.totalorder %s333, 0
    %s336 = sadd.s32 %s335, 1
    %s337 = scalar_select %p334, %s335, %s336
    %p340 = pneg %p334
    %p341 = scmp.eq.s32.totalorder %s21, 1
    %p342 = por %p340, %p341
    %p343 = scmp.ne.s32.totalorder %s335, %s338
    %p344 = scmp.eq.s32.totalorder %s21, 0
    %p345 = por %p343, %p344
    %p346 = scmp.ne.s32.totalorder %s335, %s338
    %p347 = scmp.eq.s32.totalorder %s26, 1
    %p348 = por %p346, %p347
    %p349 = scmp.ne.s32.totalorder %s338, %s339
    %p350 = scmp.eq.s32.totalorder %s26, 0
    %p351 = por %p349, %p350
    %p352 = scmp.ne.s32.totalorder %s338, %s339
    %p353 = scmp.eq.s32.totalorder %s27, 1
    %p354 = por %p352, %p353
    %p356 = scmp.ne.s32.totalorder %s339, %s355
    %p357 = scmp.eq.s32.totalorder %s27, 0
    %p358 = por %p356, %p357
    %p359 = scmp.le.s32.totalorder 1, %s21
    %p360 = scmp.lt.s32.totalorder %s21, 3
    %p361 = pnand %p359, %p360
    %p362 = pneg %p361
    // Predicated region
    $region9: #{tpu_custom_call.1} parent=5 // pred_check
      _
    $region10: #{tpu_custom_call.1} parent=5 // pred_check_branch
      %364 = sbr.rel (%p361) target = $region12
    $region11: #{tpu_custom_call.1} parent=5 // pred_region
      %s365 = ssub.s32 %s21, 1
      // Predicated region
      $region13: #{tpu_custom_call.1} parent=11 // pred_check
        %p366 = pneg %p68
      $region14: #{tpu_custom_call.1} parent=11 // pred_check_branch
        %368 = sbr.rel (%p366) target = $region16
      $region15: #{tpu_custom_call.1} parent=11 // pred_region
        _
      $region16: #{tpu_custom_call.1} parent=11 // pred_fallthru
        _
      // Predicated region
      $region17: #{tpu_custom_call.1} parent=11 // pred_check
        %p369 = pneg %p89
      $region18: #{tpu_custom_call.1} parent=11 // pred_check_branch
        %371 = sbr.rel (%p369) target = $region20
      $region19: #{tpu_custom_call.1} parent=11 // pred_region
        _
      $region20: #{tpu_custom_call.1} parent=11 // pred_fallthru
        _
      // Predicated region
      $region21: #{tpu_custom_call.1} parent=11 // pred_check
        %p372 = pneg %p110
      $region22: #{tpu_custom_call.1} parent=11 // pred_check_branch
        %374 = sbr.rel (%p372) target = $region24
      $region23: #{tpu_custom_call.1} parent=11 // pred_region
        _
      $region24: #{tpu_custom_call.1} parent=11 // pred_fallthru
        _
      // Predicated region
      $region25: #{tpu_custom_call.1} parent=11 // pred_check
        %p375 = pneg %p131
      $region26: #{tpu_custom_call.1} parent=11 // pred_check_branch
        %377 = sbr.rel (%p375) target = $region28
      $region27: #{tpu_custom_call.1} parent=11 // pred_region
        _
      $region28: #{tpu_custom_call.1} parent=11 // pred_fallthru
        _
      // Predicated region
      $region29: #{tpu_custom_call.1} parent=11 // pred_check
        %p378 = pneg %p152
      $region30: #{tpu_custom_call.1} parent=11 // pred_check_branch
        %380 = sbr.rel (%p378) target = $region32
      $region31: #{tpu_custom_call.1} parent=11 // pred_region
        _
      $region32: #{tpu_custom_call.1} parent=11 // pred_fallthru
        _
      // Predicated region
      $region33: #{tpu_custom_call.1} parent=11 // pred_check
        %p381 = pneg %p173
      $region34: #{tpu_custom_call.1} parent=11 // pred_check_branch
        %383 = sbr.rel (%p381) target = $region36
      $region35: #{tpu_custom_call.1} parent=11 // pred_region
        _
      $region36: #{tpu_custom_call.1} parent=11 // pred_fallthru
        _
      // Predicated region
      $region37: #{tpu_custom_call.1} parent=11 // pred_check
        %p384 = pneg %p194
      $region38: #{tpu_custom_call.1} parent=11 // pred_check_branch
        %386 = sbr.rel (%p384) target = $region40
      $region39: #{tpu_custom_call.1} parent=11 // pred_region
        _
      $region40: #{tpu_custom_call.1} parent=11 // pred_fallthru
        _
      // Predicated region
      $region41: #{tpu_custom_call.1} parent=11 // pred_check
        %p387 = pneg %p215
      $region42: #{tpu_custom_call.1} parent=11 // pred_check_branch
        %389 = sbr.rel (%p387) target = $region44
      $region43: #{tpu_custom_call.1} parent=11 // pred_region
        _
      $region44: #{tpu_custom_call.1} parent=11 // pred_fallthru
        _
      // Predicated region
      $region45: #{tpu_custom_call.1} parent=11 // pred_check
        %p390 = pneg %p236
      $region46: #{tpu_custom_call.1} parent=11 // pred_check_branch
        %392 = sbr.rel (%p390) target = $region48
      $region47: #{tpu_custom_call.1} parent=11 // pred_region
        _
      $region48: #{tpu_custom_call.1} parent=11 // pred_fallthru
        _
      // Predicated region
      $region49: #{tpu_custom_call.1} parent=11 // pred_check
        %p393 = pneg %p257
      $region50: #{tpu_custom_call.1} parent=11 // pred_check_branch
        %395 = sbr.rel (%p393) target = $region52
      $region51: #{tpu_custom_call.1} parent=11 // pred_region
        _
      $region52: #{tpu_custom_call.1} parent=11 // pred_fallthru
        _
      // Predicated region
      $region53: #{tpu_custom_call.1} parent=11 // pred_check
        %p396 = pneg %p278
      $region54: #{tpu_custom_call.1} parent=11 // pred_check_branch
        %398 = sbr.rel (%p396) target = $region56
      $region55: #{tpu_custom_call.1} parent=11 // pred_region
        _
      $region56: #{tpu_custom_call.1} parent=11 // pred_fallthru
        _
      // Predicated region
      $region57: #{tpu_custom_call.1} parent=11 // pred_check
        %p399 = pneg %p299
      $region58: #{tpu_custom_call.1} parent=11 // pred_check_branch
        %401 = sbr.rel (%p399) target = $region60
      $region59: #{tpu_custom_call.1} parent=11 // pred_region
        _
      $region60: #{tpu_custom_call.1} parent=11 // pred_fallthru
        _
    $region12: #{tpu_custom_call.1} parent=5 // pred_fallthru
      _
    %p402 = scmp.lt.s32.totalorder %s21, 2
    // Predicated region
    $region61: #{tpu_custom_call.1} parent=5 // pred_check
      %p403 = pneg %p402
    $region62: #{tpu_custom_call.1} parent=5 // pred_check_branch
      %405 = sbr.rel (%p403) target = $region64
    $region63: #{tpu_custom_call.1} parent=5 // pred_region
      // Predicated region
      $region65: #{tpu_custom_call.1} parent=63 // pred_check
        %p406 = pneg %p41
      $region66: #{tpu_custom_call.1} parent=63 // pred_check_branch
        %408 = sbr.rel (%p406) target = $region68
      $region67: #{tpu_custom_call.1} parent=63 // pred_region
        %p409 = scmp.lt.s32.totalorder %s21, 1
        %s410 = scalar_select %p409, %s21, 1
        %s411 = smul.addr %s410, 32
        %s412 = smul.addr %s411, 4
        %s413 = scalar_lea.vmem %s0, %s412
      $region68: #{tpu_custom_call.1} parent=63 // pred_fallthru
        _
    $region64: #{tpu_custom_call.1} parent=5 // pred_fallthru
      _
    %p414 = scmp.le.s32.totalorder 1, %s21
    %p415 = scmp.lt.s32.totalorder %s21, 3
    %p416 = pnand %p414, %p415
    %p417 = pneg %p416
    // Predicated region
    $region69: #{tpu_custom_call.1} parent=5 // pred_check
      _
    $region70: #{tpu_custom_call.1} parent=5 // pred_check_branch
      %419 = sbr.rel (%p416) target = $region72
    $region71: #{tpu_custom_call.1} parent=5 // pred_region
      %s420 = ssub.s32 %s21, 1
      %p421 = scmp.lt.s32.totalorder %s26, 1
      %s422 = scalar_select %p421, %s26, 1
      %s423 = smul.addr %s422, 32
      %s424 = smul.addr %s423, 4
      %s425 = scalar_lea.vmem %s0, %s424
      %p426 = pneg %p47
      %p427 = pneg %p44
      %p428 = pneg %p68
      %p429 = pneg %p65
      %p430 = pneg %p89
      %p431 = pneg %p86
      %p432 = pneg %p110
      %p433 = pneg %p107
      %p434 = pneg %p131
      %p435 = pneg %p128
      %p436 = pneg %p152
      %p437 = pneg %p149
      %p438 = pneg %p173
      %p439 = pneg %p170
      %p440 = pneg %p194
      %p441 = pneg %p191
      %p442 = pneg %p215
      %p443 = pneg %p212
      %p444 = pneg %p236
      %p445 = pneg %p233
      %p446 = pneg %p257
      %p447 = pneg %p254
      %p448 = pneg %p278
      %p449 = pneg %p275
      %p450 = pneg %p299
      %p451 = pneg %p296
      %p452 = pneg %p325
      %p453 = pneg %p322
      %p454 = scmp.lt.s32.totalorder %s26, 1
      %s455 = scalar_select %p454, %s26, 1
      %s456 = smul.addr %s455, 32
      %s457 = smul.addr %s456, 4
      %s458 = scalar_lea.vmem %s13, %s457
      %p459 = pneg %p351
      %p460 = pneg %p348
      %p461 = scmp.lt.s32.totalorder %s26, 1
      %s462 = scalar_select %p461, %s26, 1
      %s463 = scalar_lea.vmem %s14, %s462
      %p464 = scmp.lt.s32.totalorder %s26, 1
      %s465 = scalar_select %p464, %s26, 1
      %s466 = smul.addr %s465, 32
      %s467 = smul.addr %s466, 4
      %s468 = scalar_lea.vmem %s0, %s467
      %p469 = scmp.lt.s32.totalorder %s26, 1
      %s470 = scalar_select %p469, %s26, 1
      %s471 = smul.addr %s470, 32
      %s472 = smul.addr %s471, 4
      %s473 = scalar_lea.vmem %s13, %s472
      %p474 = scmp.lt.s32.totalorder %s26, 1
      %s475 = scalar_select %p474, %s26, 1
      %s476 = scalar_lea.vmem %s14, %s475
      %v478 = vld [vmem:[%s468] sm:$0xf]
      %v479 = vld [vmem:[%s468 + $0x4] sm:$0xf]
      %v480 = vld [vmem:[%s468 + $0x8] sm:$0xf]
      %v481 = vld [vmem:[%s468 + $0xc] sm:$0xf]
      %v482 = vld [vmem:[%s468 + $0x10] sm:$0xf]
      %v483 = vld [vmem:[%s468 + $0x14] sm:$0xf]
      %v484 = vld [vmem:[%s468 + $0x18] sm:$0xf]
      %v485 = vld [vmem:[%s468 + $0x1c] sm:$0xf]
      %v486 = vld [vmem:[%s468 + $0x20] sm:$0xf]
      %v487 = vld [vmem:[%s468 + $0x24] sm:$0xf]
      %v488 = vld [vmem:[%s468 + $0x28] sm:$0xf]
      %v489 = vld [vmem:[%s468 + $0x2c] sm:$0xf]
      %v490 = vld [vmem:[%s468 + $0x30] sm:$0xf]
      %v491 = vld [vmem:[%s468 + $0x34] sm:$0xf]
      %v492 = vld [vmem:[%s468 + $0x38] sm:$0xf]
      %v493 = vld [vmem:[%s468 + $0x3c] sm:$0xf]
      %v494 = vld [vmem:[%s468 + $0x40] sm:$0xf]
      %v495 = vld [vmem:[%s468 + $0x44] sm:$0xf]
      %v496 = vld [vmem:[%s468 + $0x48] sm:$0xf]
      %v497 = vld [vmem:[%s468 + $0x4c] sm:$0xf]
      %v498 = vld [vmem:[%s468 + $0x50] sm:$0xf]
      %v499 = vld [vmem:[%s468 + $0x54] sm:$0xf]
      %v500 = vld [vmem:[%s468 + $0x58] sm:$0xf]
      %v501 = vld [vmem:[%s468 + $0x5c] sm:$0xf]
      %v502 = vld [vmem:[%s468 + $0x60] sm:$0xf]
      %v503 = vld [vmem:[%s468 + $0x64] sm:$0xf]
      %v504 = vld [vmem:[%s468 + $0x68] sm:$0xf]
      %v505 = vld [vmem:[%s468 + $0x6c] sm:$0xf]
      %v506 = vld [vmem:[%s468 + $0x70] sm:$0xf]
      %v507 = vld [vmem:[%s468 + $0x74] sm:$0xf]
      %v508 = vld [vmem:[%s468 + $0x78] sm:$0xf]
      %v509 = vld [vmem:[%s468 + $0x7c] sm:$0xf]
      %v510 = vunpack.c.l.bf16 %v478
      %v511 = vunpack.c.l.bf16 %v479
      %v512 = vunpack.c.l.bf16 %v480
      %v513 = vunpack.c.l.bf16 %v481
      %v514 = vunpack.c.l.bf16 %v482
      %v515 = vunpack.c.l.bf16 %v483
      %v516 = vunpack.c.l.bf16 %v484
      %v517 = vunpack.c.l.bf16 %v485
      %v518 = vunpack.c.l.bf16 %v486
      %v519 = vunpack.c.l.bf16 %v487
      %v520 = vunpack.c.l.bf16 %v488
      %v521 = vunpack.c.l.bf16 %v489
      %v522 = vunpack.c.l.bf16 %v490
      %v523 = vunpack.c.l.bf16 %v491
      %v524 = vunpack.c.l.bf16 %v492
      %v525 = vunpack.c.l.bf16 %v493
      %v526 = vunpack.c.l.bf16 %v494
      %v527 = vunpack.c.l.bf16 %v495
      %v528 = vunpack.c.l.bf16 %v496
      %v529 = vunpack.c.l.bf16 %v497
      %v530 = vunpack.c.l.bf16 %v498
      %v531 = vunpack.c.l.bf16 %v499
      %v532 = vunpack.c.l.bf16 %v500
      %v533 = vunpack.c.l.bf16 %v501
      %v534 = vunpack.c.l.bf16 %v502
      %v535 = vunpack.c.l.bf16 %v503
      %v536 = vunpack.c.l.bf16 %v504
      %v537 = vunpack.c.l.bf16 %v505
      %v538 = vunpack.c.l.bf16 %v506
      %v539 = vunpack.c.l.bf16 %v507
      %v540 = vunpack.c.l.bf16 %v508
      %v541 = vunpack.c.l.bf16 %v509
      %vm542 = vcmask 31744
      %v543 = vsel %vm542, %v510, 0.0
      %v544 = vsel %vm542, %v511, 0.0
      %v545 = vadd.f32 %v543, %v544
      %v546 = vsel %vm542, %v512, 0.0
      %v547 = vadd.f32 %v545, %v546
      %v548 = vsel %vm542, %v513, 0.0
      %v549 = vadd.f32 %v547, %v548
      %v550 = vsel %vm542, %v514, 0.0
      %v551 = vadd.f32 %v549, %v550
      %v552 = vsel %vm542, %v515, 0.0
      %v553 = vadd.f32 %v551, %v552
      %v554 = vsel %vm542, %v516, 0.0
      %v555 = vadd.f32 %v553, %v554
      %v556 = vsel %vm542, %v517, 0.0
      %v557 = vadd.f32 %v555, %v556
      %v558 = vsel %vm542, %v518, 0.0
      %v559 = vadd.f32 %v557, %v558
      %v560 = vsel %vm542, %v519, 0.0
      %v561 = vadd.f32 %v559, %v560
      %v562 = vsel %vm542, %v520, 0.0
      %v563 = vadd.f32 %v561, %v562
      %v564 = vsel %vm542, %v521, 0.0
      %v565 = vadd.f32 %v563, %v564
      %v566 = vsel %vm542, %v522, 0.0
      %v567 = vadd.f32 %v565, %v566
      %v568 = vsel %vm542, %v523, 0.0
      %v569 = vadd.f32 %v567, %v568
      %v570 = vsel %vm542, %v524, 0.0
      %v571 = vadd.f32 %v569, %v570
      %v572 = vsel %vm542, %v525, 0.0
      %v573 = vadd.f32 %v571, %v572
      %v574 = vsel %vm542, %v526, 0.0
      %v575 = vadd.f32 %v573, %v574
      %v576 = vsel %vm542, %v527, 0.0
      %v577 = vadd.f32 %v575, %v576
      %v578 = vsel %vm542, %v528, 0.0
      %v579 = vadd.f32 %v577, %v578
      %v580 = vsel %vm542, %v529, 0.0
      %v581 = vadd.f32 %v579, %v580
      %v582 = vsel %vm542, %v530, 0.0
      %v583 = vadd.f32 %v581, %v582
      %v584 = vsel %vm542, %v531, 0.0
      %v585 = vadd.f32 %v583, %v584
      %v586 = vsel %vm542, %v532, 0.0
      %v587 = vadd.f32 %v585, %v586
      %v588 = vsel %vm542, %v533, 0.0
      %v589 = vadd.f32 %v587, %v588
      %v590 = vsel %vm542, %v534, 0.0
      %v591 = vadd.f32 %v589, %v590
      %v592 = vsel %vm542, %v535, 0.0
      %v593 = vadd.f32 %v591, %v592
      %v594 = vsel %vm542, %v536, 0.0
      %v595 = vadd.f32 %v593, %v594
      %v596 = vsel %vm542, %v537, 0.0
      %v597 = vadd.f32 %v595, %v596
      %v598 = vsel %vm542, %v538, 0.0
      %v599 = vadd.f32 %v597, %v598
      %v600 = vsel %vm542, %v539, 0.0
      %v601 = vadd.f32 %v599, %v600
      %v602 = vsel %vm542, %v540, 0.0
      %v603 = vadd.f32 %v601, %v602
      %v604 = vsel %vm542, %v541, 0.0
      %v605 = vadd.f32 %v603, %v604
      %v606 = vrot.slane %v605, 4
      %v607 = vadd.f32 %v605, %v606
      %v608 = vrot.slane %v607, 2
      %v609 = vadd.f32 %v607, %v608
      %v610 = vrot.slane %v609, 1
      %v611 = vadd.f32 %v609, %v610
      %v612 = vmul.f32 %v611, 0.00390625
      %v613 = vld [vmem:[%s7] sm:$0xf]
      %v614 = vld [vmem:[%s8] sm:$0x1]
      %v616 = vsel %vm542, %v612, 0
      %vm618 = vcmask 1043456
      %v620 = vsel %vm618, %v613, 0
      %622 = vmatprep.subr.mxu0 0.0
      %623 = vmatpush1.msra.mxu0 0.0
      %624 = vmatprep.subr.mxu0 0.0
      %625 = vmatpush1.msra.mxu0 0.0
      %626 = vmatprep.subr.mxu0 0.0
      %627 = vmatpush1.msra.mxu0 0.0
      %628 = vmatprep.subr.mxu0 0.0
      %629 = vmatpush1.msra.mxu0 0.0
      %630 = vmatprep.subr.mxu0 0.0
      %631 = vmatpush1.msra.mxu0 0.0
      %632 = vmatprep.subr.mxu0 0.0
      %633 = vmatpush1.msra.mxu0 0.0
      %634 = vmatprep.subr.mxu0 0.0
      %635 = vmatpush1.msra.mxu0 0.0
      %636 = vmatprep.subr.mxu0 0.0
      %637 = vmatpush1.msra.mxu0 0.0
      %638 = vmatprep.subr.mxu0 0.0
      %639 = vmatpush1.msra.mxu0 0.0
      %640 = vmatprep.subr.mxu0 0.0
      %641 = vmatpush1.msra.mxu0 0.0
      %642 = vmatprep.subr.mxu0 0.0
      %643 = vmatpush1.msra.mxu0 0.0
      %644 = vmatprep.subr.mxu0 0.0
      %645 = vmatpush1.msra.mxu0 0.0
      %646 = vmatprep.subr.mxu0 0.0
      %647 = vmatpush1.msra.mxu0 0.0
      %648 = vmatprep.subr.mxu0 0.0
      %649 = vmatpush1.msra.mxu0 0.0
      %650 = vmatprep.subr.mxu0 0.0
      %651 = vmatpush1.msra.mxu0 0.0
      %652 = vmatprep.subr.mxu0 0.0
      %653 = vmatpush1.msra.mxu0 %v620
      %654 = vmatprep.subr.mxu0 0.0
      %655 = vmatpush2.msra.mxu0 0.0
      %656 = vmatprep.subr.mxu0 0.0
      %657 = vmatpush2.msra.mxu0 0.0
      %658 = vmatprep.subr.mxu0 0.0
      %659 = vmatpush2.msra.mxu0 0.0
      %660 = vmatprep.subr.mxu0 0.0
      %661 = vmatpush2.msra.mxu0 0.0
      %662 = vmatprep.subr.mxu0 0.0
      %663 = vmatpush2.msra.mxu0 0.0
      %664 = vmatprep.subr.mxu0 0.0
      %665 = vmatpush2.msra.mxu0 0.0
      %666 = vmatprep.subr.mxu0 0.0
      %667 = vmatpush2.msra.mxu0 0.0
      %668 = vmatprep.subr.mxu0 0.0
      %669 = vmatpush2.msra.mxu0 0.0
      %670 = vmatprep.subr.mxu0 0.0
      %671 = vmatpush2.msra.mxu0 0.0
      %672 = vmatprep.subr.mxu0 0.0
      %673 = vmatpush2.msra.mxu0 0.0
      %674 = vmatprep.subr.mxu0 0.0
      %675 = vmatpush2.msra.mxu0 0.0
      %676 = vmatprep.subr.mxu0 0.0
      %677 = vmatpush2.msra.mxu0 0.0
      %678 = vmatprep.subr.mxu0 0.0
      %679 = vmatpush2.msra.mxu0 0.0
      %680 = vmatprep.subr.mxu0 0.0
      %681 = vmatpush2.msra.mxu0 0.0
      %682 = vmatprep.subr.mxu0 0.0
      %683 = vmatpush2.msra.mxu0 0.0
      %684 = vmatprep.subr.mxu0 0.0
      %685 = vmatpush2.msra.mxu0 0.0
      %686 = vmatprep.mubr.f32.mxu0 0.0
      %687 = vmatmul.mubr.f32.gmra.mxu0 %v616
      %v688 = vpop.f32.mrf.mxu0
      %v689 = vadd.f32 %v614, %v688
      %v690 = vpop.f32.mrf.mxu0
      %691 = vdwg.mxu0
      %v692 = vmax.f32 %v689, 0.0
      %v693 = vld [vmem:[%s9] sm:$0xff]
      %v694 = vld [vmem:[%s9 + $0x8] sm:$0xff]
      %v695 = vld [vmem:[%s10] sm:$0x1]
      %vm696 = vcmask 130048
      %v698 = vsel %vm696, %v692, 0
      %700 = vmatprep.subr.mxu0 0.0
      %701 = vmatpush1.msra.mxu0 0.0
      %702 = vmatprep.subr.mxu0 0.0
      %703 = vmatpush1.msra.mxu0 0.0
      %704 = vmatprep.subr.mxu0 0.0
      %705 = vmatpush1.msra.mxu0 0.0
      %706 = vmatprep.subr.mxu0 0.0
      %707 = vmatpush1.msra.mxu0 0.0
      %708 = vmatprep.subr.mxu0 0.0
      %709 = vmatpush1.msra.mxu0 0.0
      %710 = vmatprep.subr.mxu0 0.0
      %711 = vmatpush1.msra.mxu0 0.0
      %712 = vmatprep.subr.mxu0 0.0
      %713 = vmatpush1.msra.mxu0 0.0
      %714 = vmatprep.subr.mxu0 0.0
      %715 = vmatpush1.msra.mxu0 0.0
      %716 = vmatprep.subr.mxu0 0.0
      %717 = vmatpush1.msra.mxu0 0.0
      %718 = vmatprep.subr.mxu0 0.0
      %719 = vmatpush1.msra.mxu0 0.0
      %720 = vmatprep.subr.mxu0 0.0
      %721 = vmatpush1.msra.mxu0 0.0
      %722 = vmatprep.subr.mxu0 0.0
      %723 = vmatpush1.msra.mxu0 0.0
      %724 = vmatprep.subr.mxu0 0.0
      %725 = vmatpush1.msra.mxu0 0.0
      %726 = vmatprep.subr.mxu0 0.0
      %727 = vmatpush1.msra.mxu0 0.0
      %728 = vmatprep.subr.mxu0 0.0
      %729 = vmatpush1.msra.mxu0 %v694
      %730 = vmatprep.subr.mxu0 0.0
      %731 = vmatpush1.msra.mxu0 %v693
      %732 = vmatprep.subr.mxu0 0.0
      %733 = vmatpush2.msra.mxu0 0.0
      %734 = vmatprep.subr.mxu0 0.0
      %735 = vmatpush2.msra.mxu0 0.0
      %736 = vmatprep.subr.mxu0 0.0
      %737 = vmatpush2.msra.mxu0 0.0
      %738 = vmatprep.subr.mxu0 0.0
      %739 = vmatpush2.msra.mxu0 0.0
      %740 = vmatprep.subr.mxu0 0.0
      %741 = vmatpush2.msra.mxu0 0.0
      %742 = vmatprep.subr.mxu0 0.0
      %743 = vmatpush2.msra.mxu0 0.0
      %744 = vmatprep.subr.mxu0 0.0
      %745 = vmatpush2.msra.mxu0 0.0
      %746 = vmatprep.subr.mxu0 0.0
      %747 = vmatpush2.msra.mxu0 0.0
      %748 = vmatprep.subr.mxu0 0.0
      %749 = vmatpush2.msra.mxu0 0.0
      %750 = vmatprep.subr.mxu0 0.0
      %751 = vmatpush2.msra.mxu0 0.0
      %752 = vmatprep.subr.mxu0 0.0
      %753 = vmatpush2.msra.mxu0 0.0
      %754 = vmatprep.subr.mxu0 0.0
      %755 = vmatpush2.msra.mxu0 0.0
      %756 = vmatprep.subr.mxu0 0.0
      %757 = vmatpush2.msra.mxu0 0.0
      %758 = vmatprep.subr.mxu0 0.0
      %759 = vmatpush2.msra.mxu0 0.0
      %760 = vmatprep.subr.mxu0 0.0
      %761 = vmatpush2.msra.mxu0 0.0
      %762 = vmatprep.subr.mxu0 0.0
      %763 = vmatpush2.msra.mxu0 0.0
      %764 = vmatprep.mubr.f32.mxu0 0.0
      %765 = vmatmul.mubr.f32.gmra.mxu0 %v698
      %v766 = vpop.f32.mrf.mxu0
      %v767 = vadd.f32 %v695, %v766
      %v768 = vpop.f32.mrf.mxu0
      %769 = vdwg.mxu0
      %771 = vrot.lane.b32.xlu0 %v767, 1
      %v772 = vpop.permute.xlu0 %771
      %vm774 = vcmp.gt.f32.partialorder %v767, %v772
      %v775 = vsel %vm774, 1, 0
      %v776 = vcvt.s32.f32 %v775
      %778 = vrot.lane.b32.xlu0 %v776, 127
      %v779 = vpop.permute.xlu0 %778
      %vm781 = vcmask 0
      %782 = vst.msk [vmem:[%s476] sm:$0x1] %vm781, %v779
      %vm783 = vcmask 60416
      %784 = vst.msk [vmem:[#allocation2] sm:$0xf] %vm783, 0
      %785 = vst.msk [vmem:[#allocation2 + $0x4] sm:$0xf] %vm783, 0
      %vm786 = vcmask 57344
      %787 = vst.msk [vmem:[#allocation2 + $0x8] sm:$0x1] %vm786, 0
      %788 = vst.msk [vmem:[#allocation2 + $0xc] sm:$0xf] %vm783, 0
      %789 = vst.msk [vmem:[#allocation2 + $0x10] sm:$0xf] %vm783, 0
      %790 = vst.msk [vmem:[#allocation2 + $0x14] sm:$0x1] %vm786, 0
      %791 = vst.msk [vmem:[#allocation2 + $0x18] sm:$0xf] %vm783, 0
      %792 = vst.msk [vmem:[#allocation2 + $0x1c] sm:$0xf] %vm783, 0
      %793 = vst.msk [vmem:[#allocation2 + $0x20] sm:$0x1] %vm786, 0
      %794 = vst.msk [vmem:[#allocation2 + $0x24] sm:$0xf] %vm783, 0
      %795 = vst.msk [vmem:[#allocation2 + $0x28] sm:$0xf] %vm783, 0
      %796 = vst.msk [vmem:[#allocation2 + $0x2c] sm:$0x1] %vm786, 0
      %797 = vst.msk [vmem:[#allocation2 + $0x30] sm:$0xf] %vm783, 0
      %798 = vst.msk [vmem:[#allocation2 + $0x34] sm:$0xf] %vm783, 0
      %799 = vst.msk [vmem:[#allocation2 + $0x38] sm:$0x1] %vm786, 0
      %800 = vst.msk [vmem:[#allocation2 + $0x3c] sm:$0xf] %vm783, 0
      %801 = vst.msk [vmem:[#allocation2 + $0x40] sm:$0xf] %vm783, 0
      %802 = vst.msk [vmem:[#allocation2 + $0x44] sm:$0x1] %vm786, 0
      %803 = vst.msk [vmem:[#allocation2 + $0x48] sm:$0xf] %vm783, 0
      %804 = vst.msk [vmem:[#allocation2 + $0x4c] sm:$0xf] %vm783, 0
      %805 = vst.msk [vmem:[#allocation2 + $0x50] sm:$0x1] %vm786, 0
      %806 = vst.msk [vmem:[#allocation2 + $0x54] sm:$0xf] %vm783, 0
      %807 = vst.msk [vmem:[#allocation2 + $0x58] sm:$0xf] %vm783, 0
      %808 = vst.msk [vmem:[#allocation2 + $0x5c] sm:$0x1] %vm786, 0
      %809 = vst.msk [vmem:[#allocation2 + $0x60] sm:$0xf] %vm783, 0
      %810 = vst.msk [vmem:[#allocation2 + $0x64] sm:$0xf] %vm783, 0
      %811 = vst.msk [vmem:[#allocation2 + $0x68] sm:$0x1] %vm786, 0
      %812 = vst.msk [vmem:[#allocation2 + $0x6c] sm:$0xf] %vm783, 0
      %813 = vst.msk [vmem:[#allocation2 + $0x70] sm:$0xf] %vm783, 0
      %814 = vst.msk [vmem:[#allocation2 + $0x74] sm:$0x1] %vm786, 0
      %815 = vst.msk [vmem:[#allocation2 + $0x78] sm:$0xf] %vm783, 0
      %816 = vst.msk [vmem:[#allocation2 + $0x7c] sm:$0xf] %vm783, 0
      %817 = vst.msk [vmem:[#allocation2 + $0x80] sm:$0x1] %vm786, 0
      %818 = vst.msk [vmem:[#allocation2 + $0x84] sm:$0xf] %vm783, 0
      %819 = vst.msk [vmem:[#allocation2 + $0x88] sm:$0xf] %vm783, 0
      %820 = vst.msk [vmem:[#allocation2 + $0x8c] sm:$0x1] %vm786, 0
      %821 = vst.msk [vmem:[#allocation2 + $0x90] sm:$0xf] %vm783, 0
      %822 = vst.msk [vmem:[#allocation2 + $0x94] sm:$0xf] %vm783, 0
      %823 = vst.msk [vmem:[#allocation2 + $0x98] sm:$0x1] %vm786, 0
      %824 = vst.msk [vmem:[#allocation2 + $0x9c] sm:$0xf] %vm783, 0
      %825 = vst.msk [vmem:[#allocation2 + $0xa0] sm:$0xf] %vm783, 0
      %826 = vst.msk [vmem:[#allocation2 + $0xa4] sm:$0x1] %vm786, 0
      %827 = vst.msk [vmem:[#allocation2 + $0xa8] sm:$0xf] %vm783, 0
      %828 = vst.msk [vmem:[#allocation2 + $0xac] sm:$0xf] %vm783, 0
      %829 = vst.msk [vmem:[#allocation2 + $0xb0] sm:$0x1] %vm786, 0
      %830 = vst.msk [vmem:[#allocation2 + $0xb4] sm:$0xf] %vm783, 0
      %831 = vst.msk [vmem:[#allocation2 + $0xb8] sm:$0xf] %vm783, 0
      %832 = vst.msk [vmem:[#allocation2 + $0xbc] sm:$0x1] %vm786, 0
      %833 = vst.msk [vmem:[#allocation2 + $0xc0] sm:$0xf] %vm783, 0
      %834 = vst.msk [vmem:[#allocation2 + $0xc4] sm:$0xf] %vm783, 0
      %835 = vst.msk [vmem:[#allocation2 + $0xc8] sm:$0x1] %vm786, 0
      %836 = vst.msk [vmem:[#allocation2 + $0xcc] sm:$0xf] %vm783, 0
      %837 = vst.msk [vmem:[#allocation2 + $0xd0] sm:$0xf] %vm783, 0
      %838 = vst.msk [vmem:[#allocation2 + $0xd4] sm:$0x1] %vm786, 0
      %v839 = vld [vmem:[%s1] sm:$0x3]
      %v840 = vld [vmem:[%s2] sm:$0x1]
      %v842 = vlaneseq
      %v843 = vshrl.u32 %v842, 7
      %v844 = vsub.s32 0, %v843
      %v845 = vrot.slane %v840, %v844
      %v879 = vunpack.c.l.b16 %v478
      %v880 = vunpack.c.l.b16 %v479
      %v881 = vunpack.c.l.b16 %v480
      %v882 = vunpack.c.l.b16 %v481
      %v883 = vunpack.c.l.b16 %v482
      %v884 = vunpack.c.l.b16 %v483
      %v885 = vunpack.c.l.b16 %v484
      %v886 = vunpack.c.l.b16 %v485
      %v887 = vunpack.c.l.b16 %v486
      %v888 = vunpack.c.l.b16 %v487
      %v889 = vunpack.c.l.b16 %v488
      %v890 = vunpack.c.l.b16 %v489
      %v891 = vunpack.c.l.b16 %v490
      %v892 = vunpack.c.l.b16 %v491
      %v893 = vunpack.c.l.b16 %v492
      %v894 = vunpack.c.l.b16 %v493
      %v895 = vunpack.c.l.b16 %v494
      %v896 = vunpack.c.l.b16 %v495
      %v897 = vunpack.c.l.b16 %v496
      %v898 = vunpack.c.l.b16 %v497
      %v899 = vunpack.c.l.b16 %v498
      %v900 = vunpack.c.l.b16 %v499
      %v901 = vunpack.c.l.b16 %v500
      %v902 = vunpack.c.l.b16 %v501
      %v903 = vunpack.c.l.b16 %v502
      %v904 = vunpack.c.l.b16 %v503
      %v905 = vunpack.c.l.b16 %v504
      %v906 = vunpack.c.l.b16 %v505
      %v907 = vunpack.c.l.b16 %v506
      %v908 = vunpack.c.l.b16 %v507
      %v909 = vunpack.c.l.b16 %v508
      %v910 = vunpack.c.l.b16 %v509
      %v911 = vpack.c.b16 %v880, %v879
      %v912 = vpack.c.b16 %v882, %v881
      %v913 = vpack.c.b16 %v884, %v883
      %v914 = vpack.c.b16 %v886, %v885
      %v915 = vpack.c.b16 %v888, %v887
      %v916 = vpack.c.b16 %v890, %v889
      %v917 = vpack.c.b16 %v892, %v891
      %v918 = vpack.c.b16 %v894, %v893
      %v919 = vpack.c.b16 %v896, %v895
      %v920 = vpack.c.b16 %v898, %v897
      %v921 = vpack.c.b16 %v900, %v899
      %v922 = vpack.c.b16 %v902, %v901
      %v923 = vpack.c.b16 %v904, %v903
      %v924 = vpack.c.b16 %v906, %v905
      %v925 = vpack.c.b16 %v908, %v907
      %v926 = vpack.c.b16 %v910, %v909
      %v928 = vsel %vm542, %v911, 0
      %v931 = vsel %vm542, %v912, 0
      %v934 = vsel %vm542, %v913, 0
      %v937 = vsel %vm542, %v914, 0
      %v940 = vsel %vm542, %v915, 0
      %v943 = vsel %vm542, %v916, 0
      %v946 = vsel %vm542, %v917, 0
      %v949 = vsel %vm542, %v918, 0
      %v952 = vsel %vm542, %v919, 0
      %v955 = vsel %vm542, %v920, 0
      %v958 = vsel %vm542, %v921, 0
      %v961 = vsel %vm542, %v922, 0
      %v964 = vsel %vm542, %v923, 0
      %v967 = vsel %vm542, %v924, 0
      %v970 = vsel %vm542, %v925, 0
      %v973 = vsel %vm542, %v926, 0
      %vm975 = vcmask 1041408
      %v977 = vsel %vm975, %v839, 0
      %979 = vmatprep.subr.bf16.mxu0 0
      %980 = vmatpush1.bf16.msra.mxu0 0
      %981 = vmatprep.subr.bf16.mxu0 0
      %982 = vmatpush1.bf16.msra.mxu0 0
      %983 = vmatprep.subr.bf16.mxu0 0
      %984 = vmatpush1.bf16.msra.mxu0 0
      %985 = vmatprep.subr.bf16.mxu0 0
      %986 = vmatpush1.bf16.msra.mxu0 0
      %987 = vmatprep.subr.bf16.mxu0 0
      %988 = vmatpush1.bf16.msra.mxu0 0
      %989 = vmatprep.subr.bf16.mxu0 0
      %990 = vmatpush1.bf16.msra.mxu0 0
      %991 = vmatprep.subr.bf16.mxu0 0
      %992 = vmatpush1.bf16.msra.mxu0 0
      %993 = vmatprep.subr.bf16.mxu0 0
      %994 = vmatpush1.bf16.msra.mxu0 %v977
      %995 = vmatprep.subr.bf16.mxu0 0
      %996 = vmatpush2.bf16.msra.mxu0 0
      %997 = vmatprep.subr.bf16.mxu0 0
      %998 = vmatpush2.bf16.msra.mxu0 0
      %999 = vmatprep.subr.bf16.mxu0 0
      %1000 = vmatpush2.bf16.msra.mxu0 0
      %1001 = vmatprep.subr.bf16.mxu0 0
      %1002 = vmatpush2.bf16.msra.mxu0 0
      %1003 = vmatprep.subr.bf16.mxu0 0
      %1004 = vmatpush2.bf16.msra.mxu0 0
      %1005 = vmatprep.subr.bf16.mxu0 0
      %1006 = vmatpush2.bf16.msra.mxu0 0
      %1007 = vmatprep.subr.bf16.mxu0 0
      %1008 = vmatpush2.bf16.msra.mxu0 0
      %1009 = vmatprep.subr.bf16.mxu0 0
      %1010 = vmatpush2.bf16.msra.mxu0 0
      %1011 = vmatprep.mubr.bf16.mxu0 0
      %1012 = vmatmul.mubr.bf16.gmra.mxu0 %v928
      %v1013 = vpop.f32.mrf.mxu0
      %v1014 = vadd.f32 %v845, %v1013
      %v1015 = vpop.f32.mrf.mxu0
      %v1016 = vpop.f32.mrf.mxu0
      %v1017 = vadd.f32 %v845, %v1016
      %v1018 = vpop.f32.mrf.mxu0
      %1019 = vmatprep.mubr.bf16.mxu0 0
      %1020 = vmatmul.mubr.bf16.gmra.mxu0 %v931
      %v1021 = vpop.f32.mrf.mxu0
      %v1022 = vadd.f32 %v845, %v1021
      %v1023 = vpop.f32.mrf.mxu0
      %v1024 = vpop.f32.mrf.mxu0
      %v1025 = vadd.f32 %v845, %v1024
      %v1026 = vpop.f32.mrf.mxu0
      %1027 = vmatprep.mubr.bf16.mxu0 0
      %1028 = vmatmul.mubr.bf16.gmra.mxu0 %v934
      %v1029 = vpop.f32.mrf.mxu0
      %v1030 = vadd.f32 %v845, %v1029
      %v1031 = vpop.f32.mrf.mxu0
      %v1032 = vpop.f32.mrf.mxu0
      %v1033 = vadd.f32 %v845, %v1032
      %v1034 = vpop.f32.mrf.mxu0
      %1035 = vmatprep.mubr.bf16.mxu0 0
      %1036 = vmatmul.mubr.bf16.gmra.mxu0 %v937
      %v1037 = vpop.f32.mrf.mxu0
      %v1038 = vadd.f32 %v845, %v1037
      %v1039 = vpop.f32.mrf.mxu0
      %v1040 = vpop.f32.mrf.mxu0
      %v1041 = vadd.f32 %v845, %v1040
      %v1042 = vpop.f32.mrf.mxu0
      %1043 = vmatprep.mubr.bf16.mxu0 0
      %1044 = vmatmul.mubr.bf16.gmra.mxu0 %v940
      %v1045 = vpop.f32.mrf.mxu0
      %v1046 = vadd.f32 %v845, %v1045
      %v1047 = vpop.f32.mrf.mxu0
      %v1048 = vpop.f32.mrf.mxu0
      %v1049 = vadd.f32 %v845, %v1048
      %v1050 = vpop.f32.mrf.mxu0
      %1051 = vmatprep.mubr.bf16.mxu0 0
      %1052 = vmatmul.mubr.bf16.gmra.mxu0 %v943
      %v1053 = vpop.f32.mrf.mxu0
      %v1054 = vadd.f32 %v845, %v1053
      %v1055 = vpop.f32.mrf.mxu0
      %v1056 = vpop.f32.mrf.mxu0
      %v1057 = vadd.f32 %v845, %v1056
      %v1058 = vpop.f32.mrf.mxu0
      %1059 = vmatprep.mubr.bf16.mxu0 0
      %1060 = vmatmul.mubr.bf16.gmra.mxu0 %v946
      %v1061 = vpop.f32.mrf.mxu0
      %v1062 = vadd.f32 %v845, %v1061
      %v1063 = vpop.f32.mrf.mxu0
      %v1064 = vpop.f32.mrf.mxu0
      %v1065 = vadd.f32 %v845, %v1064
      %v1066 = vpop.f32.mrf.mxu0
      %1067 = vmatprep.mubr.bf16.mxu0 0
      %1068 = vmatmul.mubr.bf16.gmra.mxu0 %v949
      %v1069 = vpop.f32.mrf.mxu0
      %v1070 = vadd.f32 %v845, %v1069
      %v1071 = vpop.f32.mrf.mxu0
      %v1072 = vpop.f32.mrf.mxu0
      %v1073 = vadd.f32 %v845, %v1072
      %v1074 = vpop.f32.mrf.mxu0
      %1075 = vmatprep.mubr.bf16.mxu0 0
      %1076 = vmatmul.mubr.bf16.gmra.mxu0 %v952
      %v1077 = vpop.f32.mrf.mxu0
      %v1078 = vadd.f32 %v845, %v1077
      %v1079 = vpop.f32.mrf.mxu0
      %v1080 = vpop.f32.mrf.mxu0
      %v1081 = vadd.f32 %v845, %v1080
      %v1082 = vpop.f32.mrf.mxu0
      %1083 = vmatprep.mubr.bf16.mxu0 0
      %1084 = vmatmul.mubr.bf16.gmra.mxu0 %v955
      %v1085 = vpop.f32.mrf.mxu0
      %v1086 = vadd.f32 %v845, %v1085
      %v1087 = vpop.f32.mrf.mxu0
      %v1088 = vpop.f32.mrf.mxu0
      %v1089 = vadd.f32 %v845, %v1088
      %v1090 = vpop.f32.mrf.mxu0
      %1091 = vmatprep.mubr.bf16.mxu0 0
      %1092 = vmatmul.mubr.bf16.gmra.mxu0 %v958
      %v1093 = vpop.f32.mrf.mxu0
      %v1094 = vadd.f32 %v845, %v1093
      %v1095 = vpop.f32.mrf.mxu0
      %v1096 = vpop.f32.mrf.mxu0
      %v1097 = vadd.f32 %v845, %v1096
      %v1098 = vpop.f32.mrf.mxu0
      %1099 = vmatprep.mubr.bf16.mxu0 0
      %1100 = vmatmul.mubr.bf16.gmra.mxu0 %v961
      %v1101 = vpop.f32.mrf.mxu0
      %v1102 = vadd.f32 %v845, %v1101
      %v1103 = vpop.f32.mrf.mxu0
      %v1104 = vpop.f32.mrf.mxu0
      %v1105 = vadd.f32 %v845, %v1104
      %v1106 = vpop.f32.mrf.mxu0
      %1107 = vmatprep.mubr.bf16.mxu0 0
      %1108 = vmatmul.mubr.bf16.gmra.mxu0 %v964
      %v1109 = vpop.f32.mrf.mxu0
      %v1110 = vadd.f32 %v845, %v1109
      %v1111 = vpop.f32.mrf.mxu0
      %v1112 = vpop.f32.mrf.mxu0
      %v1113 = vadd.f32 %v845, %v1112
      %v1114 = vpop.f32.mrf.mxu0
      %1115 = vmatprep.mubr.bf16.mxu0 0
      %1116 = vmatmul.mubr.bf16.gmra.mxu0 %v967
      %v1117 = vpop.f32.mrf.mxu0
      %v1118 = vadd.f32 %v845, %v1117
      %v1119 = vpop.f32.mrf.mxu0
      %v1120 = vpop.f32.mrf.mxu0
      %v1121 = vadd.f32 %v845, %v1120
      %v1122 = vpop.f32.mrf.mxu0
      %1123 = vmatprep.mubr.bf16.mxu0 0
      %1124 = vmatmul.mubr.bf16.gmra.mxu0 %v970
      %v1125 = vpop.f32.mrf.mxu0
      %v1126 = vadd.f32 %v845, %v1125
      %v1127 = vpop.f32.mrf.mxu0
      %v1128 = vpop.f32.mrf.mxu0
      %v1129 = vadd.f32 %v845, %v1128
      %v1130 = vpop.f32.mrf.mxu0
      %1131 = vmatprep.mubr.bf16.mxu0 0
      %1132 = vmatmul.mubr.bf16.gmra.mxu0 %v973
      %v1133 = vpop.f32.mrf.mxu0
      %v1134 = vadd.f32 %v845, %v1133
      %v1135 = vpop.f32.mrf.mxu0
      %v1136 = vpop.f32.mrf.mxu0
      %v1137 = vadd.f32 %v845, %v1136
      %v1138 = vpop.f32.mrf.mxu0
      %1139 = vdwg.mxu0
      %v1140 = vmax.f32 %v1014, 0.0
      %v1141 = vmax.f32 %v1017, 0.0
      %v1142 = vmax.f32 %v1022, 0.0
      %v1143 = vmax.f32 %v1025, 0.0
      %v1144 = vmax.f32 %v1030, 0.0
      %v1145 = vmax.f32 %v1033, 0.0
      %v1146 = vmax.f32 %v1038, 0.0
      %v1147 = vmax.f32 %v1041, 0.0
      %v1148 = vmax.f32 %v1046, 0.0
      %v1149 = vmax.f32 %v1049, 0.0
      %v1150 = vmax.f32 %v1054, 0.0
      %v1151 = vmax.f32 %v1057, 0.0
      %v1152 = vmax.f32 %v1062, 0.0
      %v1153 = vmax.f32 %v1065, 0.0
      %v1154 = vmax.f32 %v1070, 0.0
      %v1155 = vmax.f32 %v1073, 0.0
      %v1156 = vmax.f32 %v1078, 0.0
      %v1157 = vmax.f32 %v1081, 0.0
      %v1158 = vmax.f32 %v1086, 0.0
      %v1159 = vmax.f32 %v1089, 0.0
      %v1160 = vmax.f32 %v1094, 0.0
      %v1161 = vmax.f32 %v1097, 0.0
      %v1162 = vmax.f32 %v1102, 0.0
      %v1163 = vmax.f32 %v1105, 0.0
      %v1164 = vmax.f32 %v1110, 0.0
      %v1165 = vmax.f32 %v1113, 0.0
      %v1166 = vmax.f32 %v1118, 0.0
      %v1167 = vmax.f32 %v1121, 0.0
      %v1168 = vmax.f32 %v1126, 0.0
      %v1169 = vmax.f32 %v1129, 0.0
      %v1170 = vmax.f32 %v1134, 0.0
      %v1171 = vmax.f32 %v1137, 0.0
      %v1172 = vpack.c.bf16 %v1141, %v1140
      %v1173 = vpack.c.bf16 %v1143, %v1142
      %v1174 = vpack.c.bf16 %v1145, %v1144
      %v1175 = vpack.c.bf16 %v1147, %v1146
      %v1176 = vpack.c.bf16 %v1149, %v1148
      %v1177 = vpack.c.bf16 %v1151, %v1150
      %v1178 = vpack.c.bf16 %v1153, %v1152
      %v1179 = vpack.c.bf16 %v1155, %v1154
      %v1180 = vpack.c.bf16 %v1157, %v1156
      %v1181 = vpack.c.bf16 %v1159, %v1158
      %v1182 = vpack.c.bf16 %v1161, %v1160
      %v1183 = vpack.c.bf16 %v1163, %v1162
      %v1184 = vpack.c.bf16 %v1165, %v1164
      %v1185 = vpack.c.bf16 %v1167, %v1166
      %v1186 = vpack.c.bf16 %v1169, %v1168
      %v1187 = vpack.c.bf16 %v1171, %v1170
      %v1204 = vunpack.c.l.b16 %v1172
      %v1205 = vunpack.c.h.b16 %v1172
      %v1206 = vunpack.c.l.b16 %v1173
      %v1207 = vunpack.c.h.b16 %v1173
      %v1208 = vunpack.c.l.b16 %v1174
      %v1209 = vunpack.c.h.b16 %v1174
      %v1210 = vunpack.c.l.b16 %v1175
      %v1211 = vunpack.c.h.b16 %v1175
      %v1212 = vunpack.c.l.b16 %v1176
      %v1213 = vunpack.c.h.b16 %v1176
      %v1214 = vunpack.c.l.b16 %v1177
      %v1215 = vunpack.c.h.b16 %v1177
      %v1216 = vunpack.c.l.b16 %v1178
      %v1217 = vunpack.c.h.b16 %v1178
      %v1218 = vunpack.c.l.b16 %v1179
      %v1219 = vunpack.c.h.b16 %v1179
      %v1220 = vunpack.c.l.b16 %v1180
      %v1221 = vunpack.c.h.b16 %v1180
      %v1222 = vunpack.c.l.b16 %v1181
      %v1223 = vunpack.c.h.b16 %v1181
      %v1224 = vunpack.c.l.b16 %v1182
      %v1225 = vunpack.c.h.b16 %v1182
      %v1226 = vunpack.c.l.b16 %v1183
      %v1227 = vunpack.c.h.b16 %v1183
      %v1228 = vunpack.c.l.b16 %v1184
      %v1229 = vunpack.c.h.b16 %v1184
      %v1230 = vunpack.c.l.b16 %v1185
      %v1231 = vunpack.c.h.b16 %v1185
      %v1232 = vunpack.c.l.b16 %v1186
      %v1233 = vunpack.c.h.b16 %v1186
      %v1234 = vunpack.c.l.b16 %v1187
      %v1235 = vunpack.c.h.b16 %v1187
      %v1236 = vpack.c.b16 %v1204, %v1204
      %v1237 = vpack.c.b16 %v1205, %v1205
      %v1238 = vpack.c.b16 %v1206, %v1206
      %v1239 = vpack.c.b16 %v1207, %v1207
      %v1240 = vpack.c.b16 %v1208, %v1208
      %v1241 = vpack.c.b16 %v1209, %v1209
      %v1242 = vpack.c.b16 %v1210, %v1210
      %v1243 = vpack.c.b16 %v1211, %v1211
      %v1244 = vpack.c.b16 %v1212, %v1212
      %v1245 = vpack.c.b16 %v1213, %v1213
      %v1246 = vpack.c.b16 %v1214, %v1214
      %v1247 = vpack.c.b16 %v1215, %v1215
      %v1248 = vpack.c.b16 %v1216, %v1216
      %v1249 = vpack.c.b16 %v1217, %v1217
      %v1250 = vpack.c.b16 %v1218, %v1218
      %v1251 = vpack.c.b16 %v1219, %v1219
      %v1252 = vpack.c.b16 %v1220, %v1220
      %v1253 = vpack.c.b16 %v1221, %v1221
      %v1254 = vpack.c.b16 %v1222, %v1222
      %v1255 = vpack.c.b16 %v1223, %v1223
      %v1256 = vpack.c.b16 %v1224, %v1224
      %v1257 = vpack.c.b16 %v1225, %v1225
      %v1258 = vpack.c.b16 %v1226, %v1226
      %v1259 = vpack.c.b16 %v1227, %v1227
      %v1260 = vpack.c.b16 %v1228, %v1228
      %v1261 = vpack.c.b16 %v1229, %v1229
      %v1262 = vpack.c.b16 %v1230, %v1230
      %v1263 = vpack.c.b16 %v1231, %v1231
      %v1264 = vpack.c.b16 %v1232, %v1232
      %v1265 = vpack.c.b16 %v1233, %v1233
      %v1266 = vpack.c.b16 %v1234, %v1234
      %v1267 = vpack.c.b16 %v1235, %v1235
      %vm1268 = vsmask.f32 256
      %vm1269 = vsmask.f32 4368
      %vm1270 = vmor %vm1268, %vm1269
      %v1272 = vshrl.u32 %v1236, 16
      %v1274 = vrot.slane %v1272, 7
      %v1275 = vshll.u32 %v1236, 16
      %v1277 = vor.u32 %v1274, %v1275
      %v1278 = vrot.slane %v1274, 4
      %v1280 = vshrl.u32 %v1237, 16
      %v1282 = vrot.slane %v1280, 7
      %v1283 = vshll.u32 %v1237, 16
      %v1285 = vor.u32 %v1282, %v1283
      %v1286 = vsel %vm1270, %v1278, %v1285
      %v1287 = vrot.slane %v1282, 4
      %v1289 = vshrl.u32 %v1238, 16
      %v1291 = vrot.slane %v1289, 7
      %v1292 = vshll.u32 %v1238, 16
      %v1294 = vor.u32 %v1291, %v1292
      %v1295 = vrot.slane %v1291, 4
      %v1297 = vshrl.u32 %v1239, 16
      %v1299 = vrot.slane %v1297, 7
      %v1300 = vshll.u32 %v1239, 16
      %v1302 = vor.u32 %v1299, %v1300
      %v1303 = vsel %vm1270, %v1295, %v1302
      %v1304 = vrot.slane %v1299, 4
      %v1306 = vshrl.u32 %v1240, 16
      %v1308 = vrot.slane %v1306, 7
      %v1309 = vshll.u32 %v1240, 16
      %v1311 = vor.u32 %v1308, %v1309
      %v1312 = vrot.slane %v1308, 4
      %v1314 = vshrl.u32 %v1241, 16
      %v1316 = vrot.slane %v1314, 7
      %v1317 = vshll.u32 %v1241, 16
      %v1319 = vor.u32 %v1316, %v1317
      %v1320 = vsel %vm1270, %v1312, %v1319
      %v1321 = vrot.slane %v1316, 4
      %v1323 = vshrl.u32 %v1242, 16
      %v1325 = vrot.slane %v1323, 7
      %v1326 = vshll.u32 %v1242, 16
      %v1328 = vor.u32 %v1325, %v1326
      %v1329 = vrot.slane %v1325, 4
      %v1331 = vshrl.u32 %v1243, 16
      %v1333 = vrot.slane %v1331, 7
      %v1334 = vshll.u32 %v1243, 16
      %v1336 = vor.u32 %v1333, %v1334
      %v1337 = vsel %vm1270, %v1329, %v1336
      %v1338 = vrot.slane %v1333, 4
      %v1340 = vshrl.u32 %v1244, 16
      %v1342 = vrot.slane %v1340, 7
      %v1343 = vshll.u32 %v1244, 16
      %v1345 = vor.u32 %v1342, %v1343
      %v1346 = vrot.slane %v1342, 4
      %v1348 = vshrl.u32 %v1245, 16
      %v1350 = vrot.slane %v1348, 7
      %v1351 = vshll.u32 %v1245, 16
      %v1353 = vor.u32 %v1350, %v1351
      %v1354 = vsel %vm1270, %v1346, %v1353
      %v1355 = vrot.slane %v1350, 4
      %v1357 = vshrl.u32 %v1246, 16
      %v1359 = vrot.slane %v1357, 7
      %v1360 = vshll.u32 %v1246, 16
      %v1362 = vor.u32 %v1359, %v1360
      %v1363 = vrot.slane %v1359, 4
      %v1365 = vshrl.u32 %v1247, 16
      %v1367 = vrot.slane %v1365, 7
      %v1368 = vshll.u32 %v1247, 16
      %v1370 = vor.u32 %v1367, %v1368
      %v1371 = vsel %vm1270, %v1363, %v1370
      %v1372 = vrot.slane %v1367, 4
      %v1374 = vshrl.u32 %v1248, 16
      %v1376 = vrot.slane %v1374, 7
      %v1377 = vshll.u32 %v1248, 16
      %v1379 = vor.u32 %v1376, %v1377
      %v1380 = vrot.slane %v1376, 4
      %v1382 = vshrl.u32 %v1249, 16
      %v1384 = vrot.slane %v1382, 7
      %v1385 = vshll.u32 %v1249, 16
      %v1387 = vor.u32 %v1384, %v1385
      %v1388 = vsel %vm1270, %v1380, %v1387
      %v1389 = vrot.slane %v1384, 4
      %v1391 = vshrl.u32 %v1250, 16
      %v1393 = vrot.slane %v1391, 7
      %v1394 = vshll.u32 %v1250, 16
      %v1396 = vor.u32 %v1393, %v1394
      %v1397 = vrot.slane %v1393, 4
      %v1399 = vshrl.u32 %v1251, 16
      %v1401 = vrot.slane %v1399, 7
      %v1402 = vshll.u32 %v1251, 16
      %v1404 = vor.u32 %v1401, %v1402
      %v1405 = vsel %vm1270, %v1397, %v1404
      %v1406 = vrot.slane %v1401, 4
      %v1408 = vshrl.u32 %v1252, 16
      %v1410 = vrot.slane %v1408, 7
      %v1411 = vshll.u32 %v1252, 16
      %v1413 = vor.u32 %v1410, %v1411
      %v1414 = vrot.slane %v1410, 4
      %v1416 = vshrl.u32 %v1253, 16
      %v1418 = vrot.slane %v1416, 7
      %v1419 = vshll.u32 %v1253, 16
      %v1421 = vor.u32 %v1418, %v1419
      %v1422 = vsel %vm1270, %v1414, %v1421
      %v1423 = vrot.slane %v1418, 4
      %v1425 = vshrl.u32 %v1254, 16
      %v1427 = vrot.slane %v1425, 7
      %v1428 = vshll.u32 %v1254, 16
      %v1430 = vor.u32 %v1427, %v1428
      %v1431 = vrot.slane %v1427, 4
      %v1433 = vshrl.u32 %v1255, 16
      %v1435 = vrot.slane %v1433, 7
      %v1436 = vshll.u32 %v1255, 16
      %v1438 = vor.u32 %v1435, %v1436
      %v1439 = vsel %vm1270, %v1431, %v1438
      %v1440 = vrot.slane %v1435, 4
      %v1442 = vshrl.u32 %v1256, 16
      %v1444 = vrot.slane %v1442, 7
      %v1445 = vshll.u32 %v1256, 16
      %v1447 = vor.u32 %v1444, %v1445
      %v1448 = vrot.slane %v1444, 4
      %v1450 = vshrl.u32 %v1257, 16
      %v1452 = vrot.slane %v1450, 7
      %v1453 = vshll.u32 %v1257, 16
      %v1455 = vor.u32 %v1452, %v1453
      %v1456 = vsel %vm1270, %v1448, %v1455
      %v1457 = vrot.slane %v1452, 4
      %v1459 = vshrl.u32 %v1258, 16
      %v1461 = vrot.slane %v1459, 7
      %v1462 = vshll.u32 %v1258, 16
      %v1464 = vor.u32 %v1461, %v1462
      %v1465 = vrot.slane %v1461, 4
      %v1467 = vshrl.u32 %v1259, 16
      %v1469 = vrot.slane %v1467, 7
      %v1470 = vshll.u32 %v1259, 16
      %v1472 = vor.u32 %v1469, %v1470
      %v1473 = vsel %vm1270, %v1465, %v1472
      %v1474 = vrot.slane %v1469, 4
      %v1476 = vshrl.u32 %v1260, 16
      %v1478 = vrot.slane %v1476, 7
      %v1479 = vshll.u32 %v1260, 16
      %v1481 = vor.u32 %v1478, %v1479
      %v1482 = vrot.slane %v1478, 4
      %v1484 = vshrl.u32 %v1261, 16
      %v1486 = vrot.slane %v1484, 7
      %v1487 = vshll.u32 %v1261, 16
      %v1489 = vor.u32 %v1486, %v1487
      %v1490 = vsel %vm1270, %v1482, %v1489
      %v1491 = vrot.slane %v1486, 4
      %v1493 = vshrl.u32 %v1262, 16
      %v1495 = vrot.slane %v1493, 7
      %v1496 = vshll.u32 %v1262, 16
      %v1498 = vor.u32 %v1495, %v1496
      %v1499 = vrot.slane %v1495, 4
      %v1501 = vshrl.u32 %v1263, 16
      %v1503 = vrot.slane %v1501, 7
      %v1504 = vshll.u32 %v1263, 16
      %v1506 = vor.u32 %v1503, %v1504
      %v1507 = vsel %vm1270, %v1499, %v1506
      %v1508 = vrot.slane %v1503, 4
      %v1510 = vshrl.u32 %v1264, 16
      %v1512 = vrot.slane %v1510, 7
      %v1513 = vshll.u32 %v1264, 16
      %v1515 = vor.u32 %v1512, %v1513
      %v1516 = vrot.slane %v1512, 4
      %v1518 = vshrl.u32 %v1265, 16
      %v1520 = vrot.slane %v1518, 7
      %v1521 = vshll.u32 %v1265, 16
      %v1523 = vor.u32 %v1520, %v1521
      %v1524 = vsel %vm1270, %v1516, %v1523
      %v1525 = vrot.slane %v1520, 4
      %v1527 = vshrl.u32 %v1266, 16
      %v1529 = vrot.slane %v1527, 7
      %v1530 = vshll.u32 %v1266, 16
      %v1532 = vor.u32 %v1529, %v1530
      %v1533 = vrot.slane %v1529, 4
      %v1535 = vshrl.u32 %v1267, 16
      %v1537 = vrot.slane %v1535, 7
      %v1538 = vshll.u32 %v1267, 16
      %v1540 = vor.u32 %v1537, %v1538
      %v1541 = vsel %vm1270, %v1533, %v1540
      %v1542 = vrot.slane %v1537, 4
      %s1591 = scalar_lea.vmem [#allocation2], 12
      %vm1592 = vcmask 60416
      %vm1593 = vsmask.f32 7938
      %vm1594 = vmand %vm1592, %vm1593
      %v1595 = vld [vmem:[%s1591] sm:$0xf]
      %v1596 = vsel %vm1594, %v1277, %v1595
      %1597 = vst [vmem:[%s1591] sm:$0xf] %v1596
      %1598 = vst.msk [vmem:[%s1591 + $0x4] sm:$0xf] %vm783, %v1286
      %vm1599 = vcmask 57344
      %vm1600 = vmand %vm1599, %vm1268
      %v1601 = vld [vmem:[%s1591 + $0x8] sm:$0x1]
      %v1602 = vsel %vm1600, %v1287, %v1601
      %1603 = vst [vmem:[%s1591 + $0x8] sm:$0x1] %v1602
      %v1604 = vld [vmem:[%s1591 + $0xc] sm:$0xf]
      %v1605 = vsel %vm1594, %v1294, %v1604
      %1606 = vst [vmem:[%s1591 + $0xc] sm:$0xf] %v1605
      %1607 = vst.msk [vmem:[%s1591 + $0x10] sm:$0xf] %vm783, %v1303
      %v1608 = vld [vmem:[%s1591 + $0x14] sm:$0x1]
      %v1609 = vsel %vm1600, %v1304, %v1608
      %1610 = vst [vmem:[%s1591 + $0x14] sm:$0x1] %v1609
      %v1611 = vld [vmem:[%s1591 + $0x18] sm:$0xf]
      %v1612 = vsel %vm1594, %v1311, %v1611
      %1613 = vst [vmem:[%s1591 + $0x18] sm:$0xf] %v1612
      %1614 = vst.msk [vmem:[%s1591 + $0x1c] sm:$0xf] %vm783, %v1320
      %v1615 = vld [vmem:[%s1591 + $0x20] sm:$0x1]
      %v1616 = vsel %vm1600, %v1321, %v1615
      %1617 = vst [vmem:[%s1591 + $0x20] sm:$0x1] %v1616
      %v1618 = vld [vmem:[%s1591 + $0x24] sm:$0xf]
      %v1619 = vsel %vm1594, %v1328, %v1618
      %1620 = vst [vmem:[%s1591 + $0x24] sm:$0xf] %v1619
      %1621 = vst.msk [vmem:[%s1591 + $0x28] sm:$0xf] %vm783, %v1337
      %v1622 = vld [vmem:[%s1591 + $0x2c] sm:$0x1]
      %v1623 = vsel %vm1600, %v1338, %v1622
      %1624 = vst [vmem:[%s1591 + $0x2c] sm:$0x1] %v1623
      %v1625 = vld [vmem:[%s1591 + $0x30] sm:$0xf]
      %v1626 = vsel %vm1594, %v1345, %v1625
      %1627 = vst [vmem:[%s1591 + $0x30] sm:$0xf] %v1626
      %1628 = vst.msk [vmem:[%s1591 + $0x34] sm:$0xf] %vm783, %v1354
      %v1629 = vld [vmem:[%s1591 + $0x38] sm:$0x1]
      %v1630 = vsel %vm1600, %v1355, %v1629
      %1631 = vst [vmem:[%s1591 + $0x38] sm:$0x1] %v1630
      %v1632 = vld [vmem:[%s1591 + $0x3c] sm:$0xf]
      %v1633 = vsel %vm1594, %v1362, %v1632
      %1634 = vst [vmem:[%s1591 + $0x3c] sm:$0xf] %v1633
      %1635 = vst.msk [vmem:[%s1591 + $0x40] sm:$0xf] %vm783, %v1371
      %v1636 = vld [vmem:[%s1591 + $0x44] sm:$0x1]
      %v1637 = vsel %vm1600, %v1372, %v1636
      %1638 = vst [vmem:[%s1591 + $0x44] sm:$0x1] %v1637
      %v1639 = vld [vmem:[%s1591 + $0x48] sm:$0xf]
      %v1640 = vsel %vm1594, %v1379, %v1639
      %1641 = vst [vmem:[%s1591 + $0x48] sm:$0xf] %v1640
      %1642 = vst.msk [vmem:[%s1591 + $0x4c] sm:$0xf] %vm783, %v1388
      %v1643 = vld [vmem:[%s1591 + $0x50] sm:$0x1]
      %v1644 = vsel %vm1600, %v1389, %v1643
      %1645 = vst [vmem:[%s1591 + $0x50] sm:$0x1] %v1644
      %v1646 = vld [vmem:[%s1591 + $0x54] sm:$0xf]
      %v1647 = vsel %vm1594, %v1396, %v1646
      %1648 = vst [vmem:[%s1591 + $0x54] sm:$0xf] %v1647
      %1649 = vst.msk [vmem:[%s1591 + $0x58] sm:$0xf] %vm783, %v1405
      %v1650 = vld [vmem:[%s1591 + $0x5c] sm:$0x1]
      %v1651 = vsel %vm1600, %v1406, %v1650
      %1652 = vst [vmem:[%s1591 + $0x5c] sm:$0x1] %v1651
      %v1653 = vld [vmem:[%s1591 + $0x60] sm:$0xf]
      %v1654 = vsel %vm1594, %v1413, %v1653
      %1655 = vst [vmem:[%s1591 + $0x60] sm:$0xf] %v1654
      %1656 = vst.msk [vmem:[%s1591 + $0x64] sm:$0xf] %vm783, %v1422
      %v1657 = vld [vmem:[%s1591 + $0x68] sm:$0x1]
      %v1658 = vsel %vm1600, %v1423, %v1657
      %1659 = vst [vmem:[%s1591 + $0x68] sm:$0x1] %v1658
      %v1660 = vld [vmem:[%s1591 + $0x6c] sm:$0xf]
      %v1661 = vsel %vm1594, %v1430, %v1660
      %1662 = vst [vmem:[%s1591 + $0x6c] sm:$0xf] %v1661
      %1663 = vst.msk [vmem:[%s1591 + $0x70] sm:$0xf] %vm783, %v1439
      %v1664 = vld [vmem:[%s1591 + $0x74] sm:$0x1]
      %v1665 = vsel %vm1600, %v1440, %v1664
      %1666 = vst [vmem:[%s1591 + $0x74] sm:$0x1] %v1665
      %v1667 = vld [vmem:[%s1591 + $0x78] sm:$0xf]
      %v1668 = vsel %vm1594, %v1447, %v1667
      %1669 = vst [vmem:[%s1591 + $0x78] sm:$0xf] %v1668
      %1670 = vst.msk [vmem:[%s1591 + $0x7c] sm:$0xf] %vm783, %v1456
      %v1671 = vld [vmem:[%s1591 + $0x80] sm:$0x1]
      %v1672 = vsel %vm1600, %v1457, %v1671
      %1673 = vst [vmem:[%s1591 + $0x80] sm:$0x1] %v1672
      %v1674 = vld [vmem:[%s1591 + $0x84] sm:$0xf]
      %v1675 = vsel %vm1594, %v1464, %v1674
      %1676 = vst [vmem:[%s1591 + $0x84] sm:$0xf] %v1675
      %1677 = vst.msk [vmem:[%s1591 + $0x88] sm:$0xf] %vm783, %v1473
      %v1678 = vld [vmem:[%s1591 + $0x8c] sm:$0x1]
      %v1679 = vsel %vm1600, %v1474, %v1678
      %1680 = vst [vmem:[%s1591 + $0x8c] sm:$0x1] %v1679
      %v1681 = vld [vmem:[%s1591 + $0x90] sm:$0xf]
      %v1682 = vsel %vm1594, %v1481, %v1681
      %1683 = vst [vmem:[%s1591 + $0x90] sm:$0xf] %v1682
      %1684 = vst.msk [vmem:[%s1591 + $0x94] sm:$0xf] %vm783, %v1490
      %v1685 = vld [vmem:[%s1591 + $0x98] sm:$0x1]
      %v1686 = vsel %vm1600, %v1491, %v1685
      %1687 = vst [vmem:[%s1591 + $0x98] sm:$0x1] %v1686
      %v1688 = vld [vmem:[%s1591 + $0x9c] sm:$0xf]
      %v1689 = vsel %vm1594, %v1498, %v1688
      %1690 = vst [vmem:[%s1591 + $0x9c] sm:$0xf] %v1689
      %1691 = vst.msk [vmem:[%s1591 + $0xa0] sm:$0xf] %vm783, %v1507
      %v1692 = vld [vmem:[%s1591 + $0xa4] sm:$0x1]
      %v1693 = vsel %vm1600, %v1508, %v1692
      %1694 = vst [vmem:[%s1591 + $0xa4] sm:$0x1] %v1693
      %v1695 = vld [vmem:[%s1591 + $0xa8] sm:$0xf]
      %v1696 = vsel %vm1594, %v1515, %v1695
      %1697 = vst [vmem:[%s1591 + $0xa8] sm:$0xf] %v1696
      %1698 = vst.msk [vmem:[%s1591 + $0xac] sm:$0xf] %vm783, %v1524
      %v1699 = vld [vmem:[%s1591 + $0xb0] sm:$0x1]
      %v1700 = vsel %vm1600, %v1525, %v1699
      %1701 = vst [vmem:[%s1591 + $0xb0] sm:$0x1] %v1700
      %v1702 = vld [vmem:[%s1591 + $0xb4] sm:$0xf]
      %v1703 = vsel %vm1594, %v1532, %v1702
      %1704 = vst [vmem:[%s1591 + $0xb4] sm:$0xf] %v1703
      %1705 = vst.msk [vmem:[%s1591 + $0xb8] sm:$0xf] %vm783, %v1541
      %v1706 = vld [vmem:[%s1591 + $0xbc] sm:$0x1]
      %v1707 = vsel %vm1600, %v1542, %v1706
      %1708 = vst [vmem:[%s1591 + $0xbc] sm:$0x1] %v1707
      %v1709 = vld [vmem:[#allocation2] sm:$0xf]
      %v1710 = vld [vmem:[#allocation2 + $0x4] sm:$0xf]
      %v1711 = vld [vmem:[#allocation2 + $0xc] sm:$0xf]
      %v1712 = vld [vmem:[#allocation2 + $0x10] sm:$0xf]
      %v1713 = vld [vmem:[#allocation2 + $0x18] sm:$0xf]
      %v1714 = vld [vmem:[#allocation2 + $0x1c] sm:$0xf]
      %v1715 = vld [vmem:[#allocation2 + $0x24] sm:$0xf]
      %v1716 = vld [vmem:[#allocation2 + $0x28] sm:$0xf]
      %v1717 = vld [vmem:[#allocation2 + $0x30] sm:$0xf]
      %v1718 = vld [vmem:[#allocation2 + $0x34] sm:$0xf]
      %v1719 = vld [vmem:[#allocation2 + $0x3c] sm:$0xf]
      %v1720 = vld [vmem:[#allocation2 + $0x40] sm:$0xf]
      %v1721 = vld [vmem:[#allocation2 + $0x48] sm:$0xf]
      %v1722 = vld [vmem:[#allocation2 + $0x4c] sm:$0xf]
      %v1723 = vld [vmem:[#allocation2 + $0x54] sm:$0xf]
      %v1724 = vld [vmem:[#allocation2 + $0x58] sm:$0xf]
      %v1725 = vld [vmem:[#allocation2 + $0x60] sm:$0xf]
      %v1726 = vld [vmem:[#allocation2 + $0x64] sm:$0xf]
      %v1727 = vld [vmem:[#allocation2 + $0x6c] sm:$0xf]
      %v1728 = vld [vmem:[#allocation2 + $0x70] sm:$0xf]
      %v1729 = vld [vmem:[#allocation2 + $0x78] sm:$0xf]
      %v1730 = vld [vmem:[#allocation2 + $0x7c] sm:$0xf]
      %v1731 = vld [vmem:[#allocation2 + $0x84] sm:$0xf]
      %v1732 = vld [vmem:[#allocation2 + $0x88] sm:$0xf]
      %v1733 = vld [vmem:[#allocation2 + $0x90] sm:$0xf]
      %v1734 = vld [vmem:[#allocation2 + $0x94] sm:$0xf]
      %v1735 = vld [vmem:[#allocation2 + $0x9c] sm:$0xf]
      %v1736 = vld [vmem:[#allocation2 + $0xa0] sm:$0xf]
      %v1737 = vld [vmem:[#allocation2 + $0xa8] sm:$0xf]
      %v1738 = vld [vmem:[#allocation2 + $0xac] sm:$0xf]
      %v1739 = vld [vmem:[#allocation2 + $0xb4] sm:$0xf]
      %v1740 = vld [vmem:[#allocation2 + $0xb8] sm:$0xf]
      %1741 = vst.msk [vmem:[#allocation3] sm:$0xf] %vm783, %v1709
      %1742 = vst.msk [vmem:[#allocation3 + $0x4] sm:$0xf] %vm783, %v1710
      %1743 = vst.msk [vmem:[#allocation3 + $0x8] sm:$0xf] %vm783, %v1711
      %1744 = vst.msk [vmem:[#allocation3 + $0xc] sm:$0xf] %vm783, %v1712
      %1745 = vst.msk [vmem:[#allocation3 + $0x10] sm:$0xf] %vm783, %v1713
      %1746 = vst.msk [vmem:[#allocation3 + $0x14] sm:$0xf] %vm783, %v1714
      %1747 = vst.msk [vmem:[#allocation3 + $0x18] sm:$0xf] %vm783, %v1715
      %1748 = vst.msk [vmem:[#allocation3 + $0x1c] sm:$0xf] %vm783, %v1716
      %1749 = vst.msk [vmem:[#allocation3 + $0x20] sm:$0xf] %vm783, %v1717
      %1750 = vst.msk [vmem:[#allocation3 + $0x24] sm:$0xf] %vm783, %v1718
      %1751 = vst.msk [vmem:[#allocation3 + $0x28] sm:$0xf] %vm783, %v1719
      %1752 = vst.msk [vmem:[#allocation3 + $0x2c] sm:$0xf] %vm783, %v1720
      %1753 = vst.msk [vmem:[#allocation3 + $0x30] sm:$0xf] %vm783, %v1721
      %1754 = vst.msk [vmem:[#allocation3 + $0x34] sm:$0xf] %vm783, %v1722
      %1755 = vst.msk [vmem:[#allocation3 + $0x38] sm:$0xf] %vm783, %v1723
      %1756 = vst.msk [vmem:[#allocation3 + $0x3c] sm:$0xf] %vm783, %v1724
      %1757 = vst.msk [vmem:[#allocation3 + $0x40] sm:$0xf] %vm783, %v1725
      %1758 = vst.msk [vmem:[#allocation3 + $0x44] sm:$0xf] %vm783, %v1726
      %1759 = vst.msk [vmem:[#allocation3 + $0x48] sm:$0xf] %vm783, %v1727
      %1760 = vst.msk [vmem:[#allocation3 + $0x4c] sm:$0xf] %vm783, %v1728
      %1761 = vst.msk [vmem:[#allocation3 + $0x50] sm:$0xf] %vm783, %v1729
      %1762 = vst.msk [vmem:[#allocation3 + $0x54] sm:$0xf] %vm783, %v1730
      %1763 = vst.msk [vmem:[#allocation3 + $0x58] sm:$0xf] %vm783, %v1731
      %1764 = vst.msk [vmem:[#allocation3 + $0x5c] sm:$0xf] %vm783, %v1732
      %1765 = vst.msk [vmem:[#allocation3 + $0x60] sm:$0xf] %vm783, %v1733
      %1766 = vst.msk [vmem:[#allocation3 + $0x64] sm:$0xf] %vm783, %v1734
      %1767 = vst.msk [vmem:[#allocation3 + $0x68] sm:$0xf] %vm783, %v1735
      %1768 = vst.msk [vmem:[#allocation3 + $0x6c] sm:$0xf] %vm783, %v1736
      %1769 = vst.msk [vmem:[#allocation3 + $0x70] sm:$0xf] %vm783, %v1737
      %1770 = vst.msk [vmem:[#allocation3 + $0x74] sm:$0xf] %vm783, %v1738
      %1771 = vst.msk [vmem:[#allocation3 + $0x78] sm:$0xf] %vm783, %v1739
      %1772 = vst.msk [vmem:[#allocation3 + $0x7c] sm:$0xf] %vm783, %v1740
      %v1773 = vld [vmem:[#allocation2] sm:$0xf]
      %v1774 = vld [vmem:[#allocation2 + $0x4] sm:$0xf]
      %v1775 = vld [vmem:[#allocation2 + $0x8] sm:$0x1]
      %v1776 = vld [vmem:[#allocation2 + $0xc] sm:$0xf]
      %v1777 = vld [vmem:[#allocation2 + $0x10] sm:$0xf]
      %v1778 = vld [vmem:[#allocation2 + $0x14] sm:$0x1]
      %v1779 = vld [vmem:[#allocation2 + $0x18] sm:$0xf]
      %v1780 = vld [vmem:[#allocation2 + $0x1c] sm:$0xf]
      %v1781 = vld [vmem:[#allocation2 + $0x20] sm:$0x1]
      %v1782 = vld [vmem:[#allocation2 + $0x24] sm:$0xf]
      %v1783 = vld [vmem:[#allocation2 + $0x28] sm:$0xf]
      %v1784 = vld [vmem:[#allocation2 + $0x2c] sm:$0x1]
      %v1785 = vld [vmem:[#allocation2 + $0x30] sm:$0xf]
      %v1786 = vld [vmem:[#allocation2 + $0x34] sm:$0xf]
      %v1787 = vld [vmem:[#allocation2 + $0x38] sm:$0x1]
      %v1788 = vld [vmem:[#allocation2 + $0x3c] sm:$0xf]
      %v1789 = vld [vmem:[#allocation2 + $0x40] sm:$0xf]
      %v1790 = vld [vmem:[#allocation2 + $0x44] sm:$0x1]
      %v1791 = vld [vmem:[#allocation2 + $0x48] sm:$0xf]
      %v1792 = vld [vmem:[#allocation2 + $0x4c] sm:$0xf]
      %v1793 = vld [vmem:[#allocation2 + $0x50] sm:$0x1]
      %v1794 = vld [vmem:[#allocation2 + $0x54] sm:$0xf]
      %v1795 = vld [vmem:[#allocation2 + $0x58] sm:$0xf]
      %v1796 = vld [vmem:[#allocation2 + $0x5c] sm:$0x1]
      %v1797 = vld [vmem:[#allocation2 + $0x60] sm:$0xf]
      %v1798 = vld [vmem:[#allocation2 + $0x64] sm:$0xf]
      %v1799 = vld [vmem:[#allocation2 + $0x68] sm:$0x1]
      %v1800 = vld [vmem:[#allocation2 + $0x6c] sm:$0xf]
      %v1801 = vld [vmem:[#allocation2 + $0x70] sm:$0xf]
      %v1802 = vld [vmem:[#allocation2 + $0x74] sm:$0x1]
      %v1803 = vld [vmem:[#allocation2 + $0x78] sm:$0xf]
      %v1804 = vld [vmem:[#allocation2 + $0x7c] sm:$0xf]
      %v1805 = vld [vmem:[#allocation2 + $0x80] sm:$0x1]
      %v1806 = vld [vmem:[#allocation2 + $0x84] sm:$0xf]
      %v1807 = vld [vmem:[#allocation2 + $0x88] sm:$0xf]
      %v1808 = vld [vmem:[#allocation2 + $0x8c] sm:$0x1]
      %v1809 = vld [vmem:[#allocation2 + $0x90] sm:$0xf]
      %v1810 = vld [vmem:[#allocation2 + $0x94] sm:$0xf]
      %v1811 = vld [vmem:[#allocation2 + $0x98] sm:$0x1]
      %v1812 = vld [vmem:[#allocation2 + $0x9c] sm:$0xf]
      %v1813 = vld [vmem:[#allocation2 + $0xa0] sm:$0xf]
      %v1814 = vld [vmem:[#allocation2 + $0xa4] sm:$0x1]
      %v1815 = vld [vmem:[#allocation2 + $0xa8] sm:$0xf]
      %v1816 = vld [vmem:[#allocation2 + $0xac] sm:$0xf]
      %v1817 = vld [vmem:[#allocation2 + $0xb0] sm:$0x1]
      %v1818 = vld [vmem:[#allocation2 + $0xb4] sm:$0xf]
      %v1819 = vld [vmem:[#allocation2 + $0xb8] sm:$0xf]
      %v1820 = vld [vmem:[#allocation2 + $0xbc] sm:$0x1]
      %vm1821 = vsmask.f32 3328
      %vm1822 = vsmask.f32 7440
      %vm1823 = vmor %vm1821, %vm1822
      %v1825 = vshrl.u32 %v1773, 16
      %v1827 = vrot.slane %v1825, 4
      %v1828 = vshll.u32 %v1773, 16
      %v1830 = vrot.slane %v1828, 5
      %v1831 = vor.u32 %v1827, %v1830
      %v1832 = vrot.slane %v1831, 4
      %v1834 = vshll.u32 %v1774, 16
      %v1836 = vrot.slane %v1834, 5
      %v1837 = vsel %vm1823, %v1832, %v1836
      %v1838 = vshrl.u32 %v1774, 16
      %v1840 = vrot.slane %v1838, 4
      %v1841 = vor.u32 %v1840, %v1836
      %v1842 = vrot.slane %v1841, 4
      %v1844 = vshll.u32 %v1775, 16
      %v1846 = vrot.slane %v1844, 5
      %v1847 = vsel %vm1823, %v1842, %v1846
      %v1849 = vshrl.u32 %v1776, 16
      %v1851 = vrot.slane %v1849, 4
      %v1852 = vshll.u32 %v1776, 16
      %v1854 = vrot.slane %v1852, 5
      %v1855 = vor.u32 %v1851, %v1854
      %v1856 = vrot.slane %v1855, 4
      %v1858 = vshll.u32 %v1777, 16
      %v1860 = vrot.slane %v1858, 5
      %v1861 = vsel %vm1823, %v1856, %v1860
      %v1862 = vshrl.u32 %v1777, 16
      %v1864 = vrot.slane %v1862, 4
      %v1865 = vor.u32 %v1864, %v1860
      %v1866 = vrot.slane %v1865, 4
      %v1868 = vshll.u32 %v1778, 16
      %v1870 = vrot.slane %v1868, 5
      %v1871 = vsel %vm1823, %v1866, %v1870
      %v1873 = vshrl.u32 %v1779, 16
      %v1875 = vrot.slane %v1873, 4
      %v1876 = vshll.u32 %v1779, 16
      %v1878 = vrot.slane %v1876, 5
      %v1879 = vor.u32 %v1875, %v1878
      %v1880 = vrot.slane %v1879, 4
      %v1882 = vshll.u32 %v1780, 16
      %v1884 = vrot.slane %v1882, 5
      %v1885 = vsel %vm1823, %v1880, %v1884
      %v1886 = vshrl.u32 %v1780, 16
      %v1888 = vrot.slane %v1886, 4
      %v1889 = vor.u32 %v1888, %v1884
      %v1890 = vrot.slane %v1889, 4
      %v1892 = vshll.u32 %v1781, 16
      %v1894 = vrot.slane %v1892, 5
      %v1895 = vsel %vm1823, %v1890, %v1894
      %v1897 = vshrl.u32 %v1782, 16
      %v1899 = vrot.slane %v1897, 4
      %v1900 = vshll.u32 %v1782, 16
      %v1902 = vrot.slane %v1900, 5
      %v1903 = vor.u32 %v1899, %v1902
      %v1904 = vrot.slane %v1903, 4
      %v1906 = vshll.u32 %v1783, 16
      %v1908 = vrot.slane %v1906, 5
      %v1909 = vsel %vm1823, %v1904, %v1908
      %v1910 = vshrl.u32 %v1783, 16
      %v1912 = vrot.slane %v1910, 4
      %v1913 = vor.u32 %v1912, %v1908
      %v1914 = vrot.slane %v1913, 4
      %v1916 = vshll.u32 %v1784, 16
      %v1918 = vrot.slane %v1916, 5
      %v1919 = vsel %vm1823, %v1914, %v1918
      %v1921 = vshrl.u32 %v1785, 16
      %v1923 = vrot.slane %v1921, 4
      %v1924 = vshll.u32 %v1785, 16
      %v1926 = vrot.slane %v1924, 5
      %v1927 = vor.u32 %v1923, %v1926
      %v1928 = vrot.slane %v1927, 4
      %v1930 = vshll.u32 %v1786, 16
      %v1932 = vrot.slane %v1930, 5
      %v1933 = vsel %vm1823, %v1928, %v1932
      %v1934 = vshrl.u32 %v1786, 16
      %v1936 = vrot.slane %v1934, 4
      %v1937 = vor.u32 %v1936, %v1932
      %v1938 = vrot.slane %v1937, 4
      %v1940 = vshll.u32 %v1787, 16
      %v1942 = vrot.slane %v1940, 5
      %v1943 = vsel %vm1823, %v1938, %v1942
      %v1945 = vshrl.u32 %v1788, 16
      %v1947 = vrot.slane %v1945, 4
      %v1948 = vshll.u32 %v1788, 16
      %v1950 = vrot.slane %v1948, 5
      %v1951 = vor.u32 %v1947, %v1950
      %v1952 = vrot.slane %v1951, 4
      %v1954 = vshll.u32 %v1789, 16
      %v1956 = vrot.slane %v1954, 5
      %v1957 = vsel %vm1823, %v1952, %v1956
      %v1958 = vshrl.u32 %v1789, 16
      %v1960 = vrot.slane %v1958, 4
      %v1961 = vor.u32 %v1960, %v1956
      %v1962 = vrot.slane %v1961, 4
      %v1964 = vshll.u32 %v1790, 16
      %v1966 = vrot.slane %v1964, 5
      %v1967 = vsel %vm1823, %v1962, %v1966
      %v1969 = vshrl.u32 %v1791, 16
      %v1971 = vrot.slane %v1969, 4
      %v1972 = vshll.u32 %v1791, 16
      %v1974 = vrot.slane %v1972, 5
      %v1975 = vor.u32 %v1971, %v1974
      %v1976 = vrot.slane %v1975, 4
      %v1978 = vshll.u32 %v1792, 16
      %v1980 = vrot.slane %v1978, 5
      %v1981 = vsel %vm1823, %v1976, %v1980
      %v1982 = vshrl.u32 %v1792, 16
      %v1984 = vrot.slane %v1982, 4
      %v1985 = vor.u32 %v1984, %v1980
      %v1986 = vrot.slane %v1985, 4
      %v1988 = vshll.u32 %v1793, 16
      %v1990 = vrot.slane %v1988, 5
      %v1991 = vsel %vm1823, %v1986, %v1990
      %v1993 = vshrl.u32 %v1794, 16
      %v1995 = vrot.slane %v1993, 4
      %v1996 = vshll.u32 %v1794, 16
      %v1998 = vrot.slane %v1996, 5
      %v1999 = vor.u32 %v1995, %v1998
      %v2000 = vrot.slane %v1999, 4
      %v2002 = vshll.u32 %v1795, 16
      %v2004 = vrot.slane %v2002, 5
      %v2005 = vsel %vm1823, %v2000, %v2004
      %v2006 = vshrl.u32 %v1795, 16
      %v2008 = vrot.slane %v2006, 4
      %v2009 = vor.u32 %v2008, %v2004
      %v2010 = vrot.slane %v2009, 4
      %v2012 = vshll.u32 %v1796, 16
      %v2014 = vrot.slane %v2012, 5
      %v2015 = vsel %vm1823, %v2010, %v2014
      %v2017 = vshrl.u32 %v1797, 16
      %v2019 = vrot.slane %v2017, 4
      %v2020 = vshll.u32 %v1797, 16
      %v2022 = vrot.slane %v2020, 5
      %v2023 = vor.u32 %v2019, %v2022
      %v2024 = vrot.slane %v2023, 4
      %v2026 = vshll.u32 %v1798, 16
      %v2028 = vrot.slane %v2026, 5
      %v2029 = vsel %vm1823, %v2024, %v2028
      %v2030 = vshrl.u32 %v1798, 16
      %v2032 = vrot.slane %v2030, 4
      %v2033 = vor.u32 %v2032, %v2028
      %v2034 = vrot.slane %v2033, 4
      %v2036 = vshll.u32 %v1799, 16
      %v2038 = vrot.slane %v2036, 5
      %v2039 = vsel %vm1823, %v2034, %v2038
      %v2041 = vshrl.u32 %v1800, 16
      %v2043 = vrot.slane %v2041, 4
      %v2044 = vshll.u32 %v1800, 16
      %v2046 = vrot.slane %v2044, 5
      %v2047 = vor.u32 %v2043, %v2046
      %v2048 = vrot.slane %v2047, 4
      %v2050 = vshll.u32 %v1801, 16
      %v2052 = vrot.slane %v2050, 5
      %v2053 = vsel %vm1823, %v2048, %v2052
      %v2054 = vshrl.u32 %v1801, 16
      %v2056 = vrot.slane %v2054, 4
      %v2057 = vor.u32 %v2056, %v2052
      %v2058 = vrot.slane %v2057, 4
      %v2060 = vshll.u32 %v1802, 16
      %v2062 = vrot.slane %v2060, 5
      %v2063 = vsel %vm1823, %v2058, %v2062
      %v2065 = vshrl.u32 %v1803, 16
      %v2067 = vrot.slane %v2065, 4
      %v2068 = vshll.u32 %v1803, 16
      %v2070 = vrot.slane %v2068, 5
      %v2071 = vor.u32 %v2067, %v2070
      %v2072 = vrot.slane %v2071, 4
      %v2074 = vshll.u32 %v1804, 16
      %v2076 = vrot.slane %v2074, 5
      %v2077 = vsel %vm1823, %v2072, %v2076
      %v2078 = vshrl.u32 %v1804, 16
      %v2080 = vrot.slane %v2078, 4
      %v2081 = vor.u32 %v2080, %v2076
      %v2082 = vrot.slane %v2081, 4
      %v2084 = vshll.u32 %v1805, 16
      %v2086 = vrot.slane %v2084, 5
      %v2087 = vsel %vm1823, %v2082, %v2086
      %v2089 = vshrl.u32 %v1806, 16
      %v2091 = vrot.slane %v2089, 4
      %v2092 = vshll.u32 %v1806, 16
      %v2094 = vrot.slane %v2092, 5
      %v2095 = vor.u32 %v2091, %v2094
      %v2096 = vrot.slane %v2095, 4
      %v2098 = vshll.u32 %v1807, 16
      %v2100 = vrot.slane %v2098, 5
      %v2101 = vsel %vm1823, %v2096, %v2100
      %v2102 = vshrl.u32 %v1807, 16
      %v2104 = vrot.slane %v2102, 4
      %v2105 = vor.u32 %v2104, %v2100
      %v2106 = vrot.slane %v2105, 4
      %v2108 = vshll.u32 %v1808, 16
      %v2110 = vrot.slane %v2108, 5
      %v2111 = vsel %vm1823, %v2106, %v2110
      %v2113 = vshrl.u32 %v1809, 16
      %v2115 = vrot.slane %v2113, 4
      %v2116 = vshll.u32 %v1809, 16
      %v2118 = vrot.slane %v2116, 5
      %v2119 = vor.u32 %v2115, %v2118
      %v2120 = vrot.slane %v2119, 4
      %v2122 = vshll.u32 %v1810, 16
      %v2124 = vrot.slane %v2122, 5
      %v2125 = vsel %vm1823, %v2120, %v2124
      %v2126 = vshrl.u32 %v1810, 16
      %v2128 = vrot.slane %v2126, 4
      %v2129 = vor.u32 %v2128, %v2124
      %v2130 = vrot.slane %v2129, 4
      %v2132 = vshll.u32 %v1811, 16
      %v2134 = vrot.slane %v2132, 5
      %v2135 = vsel %vm1823, %v2130, %v2134
      %v2137 = vshrl.u32 %v1812, 16
      %v2139 = vrot.slane %v2137, 4
      %v2140 = vshll.u32 %v1812, 16
      %v2142 = vrot.slane %v2140, 5
      %v2143 = vor.u32 %v2139, %v2142
      %v2144 = vrot.slane %v2143, 4
      %v2146 = vshll.u32 %v1813, 16
      %v2148 = vrot.slane %v2146, 5
      %v2149 = vsel %vm1823, %v2144, %v2148
      %v2150 = vshrl.u32 %v1813, 16
      %v2152 = vrot.slane %v2150, 4
      %v2153 = vor.u32 %v2152, %v2148
      %v2154 = vrot.slane %v2153, 4
      %v2156 = vshll.u32 %v1814, 16
      %v2158 = vrot.slane %v2156, 5
      %v2159 = vsel %vm1823, %v2154, %v2158
      %v2161 = vshrl.u32 %v1815, 16
      %v2163 = vrot.slane %v2161, 4
      %v2164 = vshll.u32 %v1815, 16
      %v2166 = vrot.slane %v2164, 5
      %v2167 = vor.u32 %v2163, %v2166
      %v2168 = vrot.slane %v2167, 4
      %v2170 = vshll.u32 %v1816, 16
      %v2172 = vrot.slane %v2170, 5
      %v2173 = vsel %vm1823, %v2168, %v2172
      %v2174 = vshrl.u32 %v1816, 16
      %v2176 = vrot.slane %v2174, 4
      %v2177 = vor.u32 %v2176, %v2172
      %v2178 = vrot.slane %v2177, 4
      %v2180 = vshll.u32 %v1817, 16
      %v2182 = vrot.slane %v2180, 5
      %v2183 = vsel %vm1823, %v2178, %v2182
      %v2185 = vshrl.u32 %v1818, 16
      %v2187 = vrot.slane %v2185, 4
      %v2188 = vshll.u32 %v1818, 16
      %v2190 = vrot.slane %v2188, 5
      %v2191 = vor.u32 %v2187, %v2190
      %v2192 = vrot.slane %v2191, 4
      %v2194 = vshll.u32 %v1819, 16
      %v2196 = vrot.slane %v2194, 5
      %v2197 = vsel %vm1823, %v2192, %v2196
      %v2198 = vshrl.u32 %v1819, 16
      %v2200 = vrot.slane %v2198, 4
      %v2201 = vor.u32 %v2200, %v2196
      %v2202 = vrot.slane %v2201, 4
      %v2204 = vshll.u32 %v1820, 16
      %v2206 = vrot.slane %v2204, 5
      %v2207 = vsel %vm1823, %v2202, %v2206
      %2208 = vrot.lane.b32.xlu0 %v1837, 8
      %v2209 = vpop.permute.xlu0 %2208
      %2210 = vrot.lane.b32.xlu0 %v1847, 8
      %v2211 = vpop.permute.xlu0 %2210
      %2212 = vrot.lane.b32.xlu0 %v1861, 8
      %v2213 = vpop.permute.xlu0 %2212
      %2214 = vrot.lane.b32.xlu0 %v1871, 8
      %v2215 = vpop.permute.xlu0 %2214
      %2216 = vrot.lane.b32.xlu0 %v1885, 8
      %v2217 = vpop.permute.xlu0 %2216
      %2218 = vrot.lane.b32.xlu0 %v1895, 8
      %v2219 = vpop.permute.xlu0 %2218
      %2220 = vrot.lane.b32.xlu0 %v1909, 8
      %v2221 = vpop.permute.xlu0 %2220
      %2222 = vrot.lane.b32.xlu0 %v1919, 8
      %v2223 = vpop.permute.xlu0 %2222
      %2224 = vrot.lane.b32.xlu0 %v1933, 8
      %v2225 = vpop.permute.xlu0 %2224
      %2226 = vrot.lane.b32.xlu0 %v1943, 8
      %v2227 = vpop.permute.xlu0 %2226
      %2228 = vrot.lane.b32.xlu0 %v1957, 8
      %v2229 = vpop.permute.xlu0 %2228
      %2230 = vrot.lane.b32.xlu0 %v1967, 8
      %v2231 = vpop.permute.xlu0 %2230
      %2232 = vrot.lane.b32.xlu0 %v1981, 8
      %v2233 = vpop.permute.xlu0 %2232
      %2234 = vrot.lane.b32.xlu0 %v1991, 8
      %v2235 = vpop.permute.xlu0 %2234
      %2236 = vrot.lane.b32.xlu0 %v2005, 8
      %v2237 = vpop.permute.xlu0 %2236
      %2238 = vrot.lane.b32.xlu0 %v2015, 8
      %v2239 = vpop.permute.xlu0 %2238
      %2240 = vrot.lane.b32.xlu0 %v2029, 8
      %v2241 = vpop.permute.xlu0 %2240
      %2242 = vrot.lane.b32.xlu0 %v2039, 8
      %v2243 = vpop.permute.xlu0 %2242
      %2244 = vrot.lane.b32.xlu0 %v2053, 8
      %v2245 = vpop.permute.xlu0 %2244
      %2246 = vrot.lane.b32.xlu0 %v2063, 8
      %v2247 = vpop.permute.xlu0 %2246
      %2248 = vrot.lane.b32.xlu0 %v2077, 8
      %v2249 = vpop.permute.xlu0 %2248
      %2250 = vrot.lane.b32.xlu0 %v2087, 8
      %v2251 = vpop.permute.xlu0 %2250
      %2252 = vrot.lane.b32.xlu0 %v2101, 8
      %v2253 = vpop.permute.xlu0 %2252
      %2254 = vrot.lane.b32.xlu0 %v2111, 8
      %v2255 = vpop.permute.xlu0 %2254
      %2256 = vrot.lane.b32.xlu0 %v2125, 8
      %v2257 = vpop.permute.xlu0 %2256
      %2258 = vrot.lane.b32.xlu0 %v2135, 8
      %v2259 = vpop.permute.xlu0 %2258
      %2260 = vrot.lane.b32.xlu0 %v2149, 8
      %v2261 = vpop.permute.xlu0 %2260
      %2262 = vrot.lane.b32.xlu0 %v2159, 8
      %v2263 = vpop.permute.xlu0 %2262
      %2264 = vrot.lane.b32.xlu0 %v2173, 8
      %v2265 = vpop.permute.xlu0 %2264
      %2266 = vrot.lane.b32.xlu0 %v2183, 8
      %v2267 = vpop.permute.xlu0 %2266
      %2268 = vrot.lane.b32.xlu0 %v2197, 8
      %v2269 = vpop.permute.xlu0 %2268
      %2270 = vrot.lane.b32.xlu0 %v2207, 8
      %v2271 = vpop.permute.xlu0 %2270
      %vm2304 = vcmask 126016
      %2305 = vst.msk [vmem:[#allocation3] sm:$0xf] %vm2304, %v2209
      %2306 = vst.msk [vmem:[#allocation3 + $0x4] sm:$0xf] %vm2304, %v2211
      %2307 = vst.msk [vmem:[#allocation3 + $0x8] sm:$0xf] %vm2304, %v2213
      %2308 = vst.msk [vmem:[#allocation3 + $0xc] sm:$0xf] %vm2304, %v2215
      %2309 = vst.msk [vmem:[#allocation3 + $0x10] sm:$0xf] %vm2304, %v2217
      %2310 = vst.msk [vmem:[#allocation3 + $0x14] sm:$0xf] %vm2304, %v2219
      %2311 = vst.msk [vmem:[#allocation3 + $0x18] sm:$0xf] %vm2304, %v2221
      %2312 = vst.msk [vmem:[#allocation3 + $0x1c] sm:$0xf] %vm2304, %v2223
      %2313 = vst.msk [vmem:[#allocation3 + $0x20] sm:$0xf] %vm2304, %v2225
      %2314 = vst.msk [vmem:[#allocation3 + $0x24] sm:$0xf] %vm2304, %v2227
      %2315 = vst.msk [vmem:[#allocation3 + $0x28] sm:$0xf] %vm2304, %v2229
      %2316 = vst.msk [vmem:[#allocation3 + $0x2c] sm:$0xf] %vm2304, %v2231
      %2317 = vst.msk [vmem:[#allocation3 + $0x30] sm:$0xf] %vm2304, %v2233
      %2318 = vst.msk [vmem:[#allocation3 + $0x34] sm:$0xf] %vm2304, %v2235
      %2319 = vst.msk [vmem:[#allocation3 + $0x38] sm:$0xf] %vm2304, %v2237
      %2320 = vst.msk [vmem:[#allocation3 + $0x3c] sm:$0xf] %vm2304, %v2239
      %2321 = vst.msk [vmem:[#allocation3 + $0x40] sm:$0xf] %vm2304, %v2241
      %2322 = vst.msk [vmem:[#allocation3 + $0x44] sm:$0xf] %vm2304, %v2243
      %2323 = vst.msk [vmem:[#allocation3 + $0x48] sm:$0xf] %vm2304, %v2245
      %2324 = vst.msk [vmem:[#allocation3 + $0x4c] sm:$0xf] %vm2304, %v2247
      %2325 = vst.msk [vmem:[#allocation3 + $0x50] sm:$0xf] %vm2304, %v2249
      %2326 = vst.msk [vmem:[#allocation3 + $0x54] sm:$0xf] %vm2304, %v2251
      %2327 = vst.msk [vmem:[#allocation3 + $0x58] sm:$0xf] %vm2304, %v2253
      %2328 = vst.msk [vmem:[#allocation3 + $0x5c] sm:$0xf] %vm2304, %v2255
      %2329 = vst.msk [vmem:[#allocation3 + $0x60] sm:$0xf] %vm2304, %v2257
      %2330 = vst.msk [vmem:[#allocation3 + $0x64] sm:$0xf] %vm2304, %v2259
      %2331 = vst.msk [vmem:[#allocation3 + $0x68] sm:$0xf] %vm2304, %v2261
      %2332 = vst.msk [vmem:[#allocation3 + $0x6c] sm:$0xf] %vm2304, %v2263
      %2333 = vst.msk [vmem:[#allocation3 + $0x70] sm:$0xf] %vm2304, %v2265
      %2334 = vst.msk [vmem:[#allocation3 + $0x74] sm:$0xf] %vm2304, %v2267
      %2335 = vst.msk [vmem:[#allocation3 + $0x78] sm:$0xf] %vm2304, %v2269
      %2336 = vst.msk [vmem:[#allocation3 + $0x7c] sm:$0xf] %vm2304, %v2271
      %v2337 = vld [vmem:[#allocation2] sm:$0xe]
      %v2338 = vld [vmem:[#allocation2 + $0x4] sm:$0xf]
      %v2339 = vld [vmem:[#allocation2 + $0x8] sm:$0x1]
      %v2340 = vld [vmem:[#allocation2 + $0xc] sm:$0xe]
      %v2341 = vld [vmem:[#allocation2 + $0x10] sm:$0xf]
      %v2342 = vld [vmem:[#allocation2 + $0x14] sm:$0x1]
      %v2343 = vld [vmem:[#allocation2 + $0x18] sm:$0xe]
      %v2344 = vld [vmem:[#allocation2 + $0x1c] sm:$0xf]
      %v2345 = vld [vmem:[#allocation2 + $0x20] sm:$0x1]
      %v2346 = vld [vmem:[#allocation2 + $0x24] sm:$0xe]
      %v2347 = vld [vmem:[#allocation2 + $0x28] sm:$0xf]
      %v2348 = vld [vmem:[#allocation2 + $0x2c] sm:$0x1]
      %v2349 = vld [vmem:[#allocation2 + $0x30] sm:$0xe]
      %v2350 = vld [vmem:[#allocation2 + $0x34] sm:$0xf]
      %v2351 = vld [vmem:[#allocation2 + $0x38] sm:$0x1]
      %v2352 = vld [vmem:[#allocation2 + $0x3c] sm:$0xe]
      %v2353 = vld [vmem:[#allocation2 + $0x40] sm:$0xf]
      %v2354 = vld [vmem:[#allocation2 + $0x44] sm:$0x1]
      %v2355 = vld [vmem:[#allocation2 + $0x48] sm:$0xe]
      %v2356 = vld [vmem:[#allocation2 + $0x4c] sm:$0xf]
      %v2357 = vld [vmem:[#allocation2 + $0x50] sm:$0x1]
      %v2358 = vld [vmem:[#allocation2 + $0x54] sm:$0xe]
      %v2359 = vld [vmem:[#allocation2 + $0x58] sm:$0xf]
      %v2360 = vld [vmem:[#allocation2 + $0x5c] sm:$0x1]
      %v2361 = vld [vmem:[#allocation2 + $0x60] sm:$0xe]
      %v2362 = vld [vmem:[#allocation2 + $0x64] sm:$0xf]
      %v2363 = vld [vmem:[#allocation2 + $0x68] sm:$0x1]
      %v2364 = vld [vmem:[#allocation2 + $0x6c] sm:$0xe]
      %v2365 = vld [vmem:[#allocation2 + $0x70] sm:$0xf]
      %v2366 = vld [vmem:[#allocation2 + $0x74] sm:$0x1]
      %v2367 = vld [vmem:[#allocation2 + $0x78] sm:$0xe]
      %v2368 = vld [vmem:[#allocation2 + $0x7c] sm:$0xf]
      %v2369 = vld [vmem:[#allocation2 + $0x80] sm:$0x1]
      %v2370 = vld [vmem:[#allocation2 + $0x84] sm:$0xe]
      %v2371 = vld [vmem:[#allocation2 + $0x88] sm:$0xf]
      %v2372 = vld [vmem:[#allocation2 + $0x8c] sm:$0x1]
      %v2373 = vld [vmem:[#allocation2 + $0x90] sm:$0xe]
      %v2374 = vld [vmem:[#allocation2 + $0x94] sm:$0xf]
      %v2375 = vld [vmem:[#allocation2 + $0x98] sm:$0x1]
      %v2376 = vld [vmem:[#allocation2 + $0x9c] sm:$0xe]
      %v2377 = vld [vmem:[#allocation2 + $0xa0] sm:$0xf]
      %v2378 = vld [vmem:[#allocation2 + $0xa4] sm:$0x1]
      %v2379 = vld [vmem:[#allocation2 + $0xa8] sm:$0xe]
      %v2380 = vld [vmem:[#allocation2 + $0xac] sm:$0xf]
      %v2381 = vld [vmem:[#allocation2 + $0xb0] sm:$0x1]
      %v2382 = vld [vmem:[#allocation2 + $0xb4] sm:$0xe]
      %v2383 = vld [vmem:[#allocation2 + $0xb8] sm:$0xf]
      %v2384 = vld [vmem:[#allocation2 + $0xbc] sm:$0x1]
      %vm2433 = vcmask 1042432
      %vm2434 = vcmask 1046532
      %vm2435 = vmor %vm2433, %vm2434
      %v2436 = vrot.slane %v2337, 5
      %v2437 = vrot.slane %v2436, 4
      %v2438 = vrot.slane %v2338, 5
      %v2439 = vsel %vm2435, %v2437, %v2438
      %v2440 = vrot.slane %v2438, 4
      %v2441 = vrot.slane %v2339, 5
      %v2442 = vsel %vm2435, %v2440, %v2441
      %v2443 = vrot.slane %v2340, 5
      %v2444 = vrot.slane %v2443, 4
      %v2445 = vrot.slane %v2341, 5
      %v2446 = vsel %vm2435, %v2444, %v2445
      %v2447 = vrot.slane %v2445, 4
      %v2448 = vrot.slane %v2342, 5
      %v2449 = vsel %vm2435, %v2447, %v2448
      %v2450 = vrot.slane %v2343, 5
      %v2451 = vrot.slane %v2450, 4
      %v2452 = vrot.slane %v2344, 5
      %v2453 = vsel %vm2435, %v2451, %v2452
      %v2454 = vrot.slane %v2452, 4
      %v2455 = vrot.slane %v2345, 5
      %v2456 = vsel %vm2435, %v2454, %v2455
      %v2457 = vrot.slane %v2346, 5
      %v2458 = vrot.slane %v2457, 4
      %v2459 = vrot.slane %v2347, 5
      %v2460 = vsel %vm2435, %v2458, %v2459
      %v2461 = vrot.slane %v2459, 4
      %v2462 = vrot.slane %v2348, 5
      %v2463 = vsel %vm2435, %v2461, %v2462
      %v2464 = vrot.slane %v2349, 5
      %v2465 = vrot.slane %v2464, 4
      %v2466 = vrot.slane %v2350, 5
      %v2467 = vsel %vm2435, %v2465, %v2466
      %v2468 = vrot.slane %v2466, 4
      %v2469 = vrot.slane %v2351, 5
      %v2470 = vsel %vm2435, %v2468, %v2469
      %v2471 = vrot.slane %v2352, 5
      %v2472 = vrot.slane %v2471, 4
      %v2473 = vrot.slane %v2353, 5
      %v2474 = vsel %vm2435, %v2472, %v2473
      %v2475 = vrot.slane %v2473, 4
      %v2476 = vrot.slane %v2354, 5
      %v2477 = vsel %vm2435, %v2475, %v2476
      %v2478 = vrot.slane %v2355, 5
      %v2479 = vrot.slane %v2478, 4
      %v2480 = vrot.slane %v2356, 5
      %v2481 = vsel %vm2435, %v2479, %v2480
      %v2482 = vrot.slane %v2480, 4
      %v2483 = vrot.slane %v2357, 5
      %v2484 = vsel %vm2435, %v2482, %v2483
      %v2485 = vrot.slane %v2358, 5
      %v2486 = vrot.slane %v2485, 4
      %v2487 = vrot.slane %v2359, 5
      %v2488 = vsel %vm2435, %v2486, %v2487
      %v2489 = vrot.slane %v2487, 4
      %v2490 = vrot.slane %v2360, 5
      %v2491 = vsel %vm2435, %v2489, %v2490
      %v2492 = vrot.slane %v2361, 5
      %v2493 = vrot.slane %v2492, 4
      %v2494 = vrot.slane %v2362, 5
      %v2495 = vsel %vm2435, %v2493, %v2494
      %v2496 = vrot.slane %v2494, 4
      %v2497 = vrot.slane %v2363, 5
      %v2498 = vsel %vm2435, %v2496, %v2497
      %v2499 = vrot.slane %v2364, 5
      %v2500 = vrot.slane %v2499, 4
      %v2501 = vrot.slane %v2365, 5
      %v2502 = vsel %vm2435, %v2500, %v2501
      %v2503 = vrot.slane %v2501, 4
      %v2504 = vrot.slane %v2366, 5
      %v2505 = vsel %vm2435, %v2503, %v2504
      %v2506 = vrot.slane %v2367, 5
      %v2507 = vrot.slane %v2506, 4
      %v2508 = vrot.slane %v2368, 5
      %v2509 = vsel %vm2435, %v2507, %v2508
      %v2510 = vrot.slane %v2508, 4
      %v2511 = vrot.slane %v2369, 5
      %v2512 = vsel %vm2435, %v2510, %v2511
      %v2513 = vrot.slane %v2370, 5
      %v2514 = vrot.slane %v2513, 4
      %v2515 = vrot.slane %v2371, 5
      %v2516 = vsel %vm2435, %v2514, %v2515
      %v2517 = vrot.slane %v2515, 4
      %v2518 = vrot.slane %v2372, 5
      %v2519 = vsel %vm2435, %v2517, %v2518
      %v2520 = vrot.slane %v2373, 5
      %v2521 = vrot.slane %v2520, 4
      %v2522 = vrot.slane %v2374, 5
      %v2523 = vsel %vm2435, %v2521, %v2522
      %v2524 = vrot.slane %v2522, 4
      %v2525 = vrot.slane %v2375, 5
      %v2526 = vsel %vm2435, %v2524, %v2525
      %v2527 = vrot.slane %v2376, 5
      %v2528 = vrot.slane %v2527, 4
      %v2529 = vrot.slane %v2377, 5
      %v2530 = vsel %vm2435, %v2528, %v2529
      %v2531 = vrot.slane %v2529, 4
      %v2532 = vrot.slane %v2378, 5
      %v2533 = vsel %vm2435, %v2531, %v2532
      %v2534 = vrot.slane %v2379, 5
      %v2535 = vrot.slane %v2534, 4
      %v2536 = vrot.slane %v2380, 5
      %v2537 = vsel %vm2435, %v2535, %v2536
      %v2538 = vrot.slane %v2536, 4
      %v2539 = vrot.slane %v2381, 5
      %v2540 = vsel %vm2435, %v2538, %v2539
      %v2541 = vrot.slane %v2382, 5
      %v2542 = vrot.slane %v2541, 4
      %v2543 = vrot.slane %v2383, 5
      %v2544 = vsel %vm2435, %v2542, %v2543
      %v2545 = vrot.slane %v2543, 4
      %v2546 = vrot.slane %v2384, 5
      %v2547 = vsel %vm2435, %v2545, %v2546
      %2548 = vrot.lane.b32.xlu0 %v2439, 16
      %v2549 = vpop.permute.xlu0 %2548
      %2550 = vrot.lane.b32.xlu0 %v2442, 16
      %v2551 = vpop.permute.xlu0 %2550
      %2552 = vrot.lane.b32.xlu0 %v2446, 16
      %v2553 = vpop.permute.xlu0 %2552
      %2554 = vrot.lane.b32.xlu0 %v2449, 16
      %v2555 = vpop.permute.xlu0 %2554
      %2556 = vrot.lane.b32.xlu0 %v2453, 16
      %v2557 = vpop.permute.xlu0 %2556
      %2558 = vrot.lane.b32.xlu0 %v2456, 16
      %v2559 = vpop.permute.xlu0 %2558
      %2560 = vrot.lane.b32.xlu0 %v2460, 16
      %v2561 = vpop.permute.xlu0 %2560
      %2562 = vrot.lane.b32.xlu0 %v2463, 16
      %v2563 = vpop.permute.xlu0 %2562
      %2564 = vrot.lane.b32.xlu0 %v2467, 16
      %v2565 = vpop.permute.xlu0 %2564
      %2566 = vrot.lane.b32.xlu0 %v2470, 16
      %v2567 = vpop.permute.xlu0 %2566
      %2568 = vrot.lane.b32.xlu0 %v2474, 16
      %v2569 = vpop.permute.xlu0 %2568
      %2570 = vrot.lane.b32.xlu0 %v2477, 16
      %v2571 = vpop.permute.xlu0 %2570
      %2572 = vrot.lane.b32.xlu0 %v2481, 16
      %v2573 = vpop.permute.xlu0 %2572
      %2574 = vrot.lane.b32.xlu0 %v2484, 16
      %v2575 = vpop.permute.xlu0 %2574
      %2576 = vrot.lane.b32.xlu0 %v2488, 16
      %v2577 = vpop.permute.xlu0 %2576
      %2578 = vrot.lane.b32.xlu0 %v2491, 16
      %v2579 = vpop.permute.xlu0 %2578
      %2580 = vrot.lane.b32.xlu0 %v2495, 16
      %v2581 = vpop.permute.xlu0 %2580
      %2582 = vrot.lane.b32.xlu0 %v2498, 16
      %v2583 = vpop.permute.xlu0 %2582
      %2584 = vrot.lane.b32.xlu0 %v2502, 16
      %v2585 = vpop.permute.xlu0 %2584
      %2586 = vrot.lane.b32.xlu0 %v2505, 16
      %v2587 = vpop.permute.xlu0 %2586
      %2588 = vrot.lane.b32.xlu0 %v2509, 16
      %v2589 = vpop.permute.xlu0 %2588
      %2590 = vrot.lane.b32.xlu0 %v2512, 16
      %v2591 = vpop.permute.xlu0 %2590
      %2592 = vrot.lane.b32.xlu0 %v2516, 16
      %v2593 = vpop.permute.xlu0 %2592
      %2594 = vrot.lane.b32.xlu0 %v2519, 16
      %v2595 = vpop.permute.xlu0 %2594
      %2596 = vrot.lane.b32.xlu0 %v2523, 16
      %v2597 = vpop.permute.xlu0 %2596
      %2598 = vrot.lane.b32.xlu0 %v2526, 16
      %v2599 = vpop.permute.xlu0 %2598
      %2600 = vrot.lane.b32.xlu0 %v2530, 16
      %v2601 = vpop.permute.xlu0 %2600
      %2602 = vrot.lane.b32.xlu0 %v2533, 16
      %v2603 = vpop.permute.xlu0 %2602
      %2604 = vrot.lane.b32.xlu0 %v2537, 16
      %v2605 = vpop.permute.xlu0 %2604
      %2606 = vrot.lane.b32.xlu0 %v2540, 16
      %v2607 = vpop.permute.xlu0 %2606
      %2608 = vrot.lane.b32.xlu0 %v2544, 16
      %v2609 = vpop.permute.xlu0 %2608
      %2610 = vrot.lane.b32.xlu0 %v2547, 16
      %v2611 = vpop.permute.xlu0 %2610
      %vm2644 = vcmask 191616
      %2645 = vst.msk [vmem:[#allocation3] sm:$0xf] %vm2644, %v2549
      %2646 = vst.msk [vmem:[#allocation3 + $0x4] sm:$0xf] %vm2644, %v2551
      %2647 = vst.msk [vmem:[#allocation3 + $0x8] sm:$0xf] %vm2644, %v2553
      %2648 = vst.msk [vmem:[#allocation3 + $0xc] sm:$0xf] %vm2644, %v2555
      %2649 = vst.msk [vmem:[#allocation3 + $0x10] sm:$0xf] %vm2644, %v2557
      %2650 = vst.msk [vmem:[#allocation3 + $0x14] sm:$0xf] %vm2644, %v2559
      %2651 = vst.msk [vmem:[#allocation3 + $0x18] sm:$0xf] %vm2644, %v2561
      %2652 = vst.msk [vmem:[#allocation3 + $0x1c] sm:$0xf] %vm2644, %v2563
      %2653 = vst.msk [vmem:[#allocation3 + $0x20] sm:$0xf] %vm2644, %v2565
      %2654 = vst.msk [vmem:[#allocation3 + $0x24] sm:$0xf] %vm2644, %v2567
      %2655 = vst.msk [vmem:[#allocation3 + $0x28] sm:$0xf] %vm2644, %v2569
      %2656 = vst.msk [vmem:[#allocation3 + $0x2c] sm:$0xf] %vm2644, %v2571
      %2657 = vst.msk [vmem:[#allocation3 + $0x30] sm:$0xf] %vm2644, %v2573
      %2658 = vst.msk [vmem:[#allocation3 + $0x34] sm:$0xf] %vm2644, %v2575
      %2659 = vst.msk [vmem:[#allocation3 + $0x38] sm:$0xf] %vm2644, %v2577
      %2660 = vst.msk [vmem:[#allocation3 + $0x3c] sm:$0xf] %vm2644, %v2579
      %2661 = vst.msk [vmem:[#allocation3 + $0x40] sm:$0xf] %vm2644, %v2581
      %2662 = vst.msk [vmem:[#allocation3 + $0x44] sm:$0xf] %vm2644, %v2583
      %2663 = vst.msk [vmem:[#allocation3 + $0x48] sm:$0xf] %vm2644, %v2585
      %2664 = vst.msk [vmem:[#allocation3 + $0x4c] sm:$0xf] %vm2644, %v2587
      %2665 = vst.msk [vmem:[#allocation3 + $0x50] sm:$0xf] %vm2644, %v2589
      %2666 = vst.msk [vmem:[#allocation3 + $0x54] sm:$0xf] %vm2644, %v2591
      %2667 = vst.msk [vmem:[#allocation3 + $0x58] sm:$0xf] %vm2644, %v2593
      %2668 = vst.msk [vmem:[#allocation3 + $0x5c] sm:$0xf] %vm2644, %v2595
      %2669 = vst.msk [vmem:[#allocation3 + $0x60] sm:$0xf] %vm2644, %v2597
      %2670 = vst.msk [vmem:[#allocation3 + $0x64] sm:$0xf] %vm2644, %v2599
      %2671 = vst.msk [vmem:[#allocation3 + $0x68] sm:$0xf] %vm2644, %v2601
      %2672 = vst.msk [vmem:[#allocation3 + $0x6c] sm:$0xf] %vm2644, %v2603
      %2673 = vst.msk [vmem:[#allocation3 + $0x70] sm:$0xf] %vm2644, %v2605
      %2674 = vst.msk [vmem:[#allocation3 + $0x74] sm:$0xf] %vm2644, %v2607
      %2675 = vst.msk [vmem:[#allocation3 + $0x78] sm:$0xf] %vm2644, %v2609
      %2676 = vst.msk [vmem:[#allocation3 + $0x7c] sm:$0xf] %vm2644, %v2611
      %v2677 = vld [vmem:[%s1591] sm:$0xf]
      %v2678 = vld [vmem:[%s1591 + $0x4] sm:$0xf]
      %v2679 = vld [vmem:[%s1591 + $0xc] sm:$0xf]
      %v2680 = vld [vmem:[%s1591 + $0x10] sm:$0xf]
      %v2681 = vld [vmem:[%s1591 + $0x18] sm:$0xf]
      %v2682 = vld [vmem:[%s1591 + $0x1c] sm:$0xf]
      %v2683 = vld [vmem:[%s1591 + $0x24] sm:$0xf]
      %v2684 = vld [vmem:[%s1591 + $0x28] sm:$0xf]
      %v2685 = vld [vmem:[%s1591 + $0x30] sm:$0xf]
      %v2686 = vld [vmem:[%s1591 + $0x34] sm:$0xf]
      %v2687 = vld [vmem:[%s1591 + $0x3c] sm:$0xf]
      %v2688 = vld [vmem:[%s1591 + $0x40] sm:$0xf]
      %v2689 = vld [vmem:[%s1591 + $0x48] sm:$0xf]
      %v2690 = vld [vmem:[%s1591 + $0x4c] sm:$0xf]
      %v2691 = vld [vmem:[%s1591 + $0x54] sm:$0xf]
      %v2692 = vld [vmem:[%s1591 + $0x58] sm:$0xf]
      %v2693 = vld [vmem:[%s1591 + $0x60] sm:$0xf]
      %v2694 = vld [vmem:[%s1591 + $0x64] sm:$0xf]
      %v2695 = vld [vmem:[%s1591 + $0x6c] sm:$0xf]
      %v2696 = vld [vmem:[%s1591 + $0x70] sm:$0xf]
      %v2697 = vld [vmem:[%s1591 + $0x78] sm:$0xf]
      %v2698 = vld [vmem:[%s1591 + $0x7c] sm:$0xf]
      %v2699 = vld [vmem:[%s1591 + $0x84] sm:$0xf]
      %v2700 = vld [vmem:[%s1591 + $0x88] sm:$0xf]
      %v2701 = vld [vmem:[%s1591 + $0x90] sm:$0xf]
      %v2702 = vld [vmem:[%s1591 + $0x94] sm:$0xf]
      %v2703 = vld [vmem:[%s1591 + $0x9c] sm:$0xf]
      %v2704 = vld [vmem:[%s1591 + $0xa0] sm:$0xf]
      %v2705 = vld [vmem:[%s1591 + $0xa8] sm:$0xf]
      %v2706 = vld [vmem:[%s1591 + $0xac] sm:$0xf]
      %v2707 = vld [vmem:[%s1591 + $0xb4] sm:$0xf]
      %v2708 = vld [vmem:[%s1591 + $0xb8] sm:$0xf]
      %2741 = vrot.lane.b32.xlu0 %v2677, 24
      %v2742 = vpop.permute.xlu0 %2741
      %2743 = vrot.lane.b32.xlu0 %v2678, 24
      %v2744 = vpop.permute.xlu0 %2743
      %2745 = vrot.lane.b32.xlu0 %v2679, 24
      %v2746 = vpop.permute.xlu0 %2745
      %2747 = vrot.lane.b32.xlu0 %v2680, 24
      %v2748 = vpop.permute.xlu0 %2747
      %2749 = vrot.lane.b32.xlu0 %v2681, 24
      %v2750 = vpop.permute.xlu0 %2749
      %2751 = vrot.lane.b32.xlu0 %v2682, 24
      %v2752 = vpop.permute.xlu0 %2751
      %2753 = vrot.lane.b32.xlu0 %v2683, 24
      %v2754 = vpop.permute.xlu0 %2753
      %2755 = vrot.lane.b32.xlu0 %v2684, 24
      %v2756 = vpop.permute.xlu0 %2755
      %2757 = vrot.lane.b32.xlu0 %v2685, 24
      %v2758 = vpop.permute.xlu0 %2757
      %2759 = vrot.lane.b32.xlu0 %v2686, 24
      %v2760 = vpop.permute.xlu0 %2759
      %2761 = vrot.lane.b32.xlu0 %v2687, 24
      %v2762 = vpop.permute.xlu0 %2761
      %2763 = vrot.lane.b32.xlu0 %v2688, 24
      %v2764 = vpop.permute.xlu0 %2763
      %2765 = vrot.lane.b32.xlu0 %v2689, 24
      %v2766 = vpop.permute.xlu0 %2765
      %2767 = vrot.lane.b32.xlu0 %v2690, 24
      %v2768 = vpop.permute.xlu0 %2767
      %2769 = vrot.lane.b32.xlu0 %v2691, 24
      %v2770 = vpop.permute.xlu0 %2769
      %2771 = vrot.lane.b32.xlu0 %v2692, 24
      %v2772 = vpop.permute.xlu0 %2771
      %2773 = vrot.lane.b32.xlu0 %v2693, 24
      %v2774 = vpop.permute.xlu0 %2773
      %2775 = vrot.lane.b32.xlu0 %v2694, 24
      %v2776 = vpop.permute.xlu0 %2775
      %2777 = vrot.lane.b32.xlu0 %v2695, 24
      %v2778 = vpop.permute.xlu0 %2777
      %2779 = vrot.lane.b32.xlu0 %v2696, 24
      %v2780 = vpop.permute.xlu0 %2779
      %2781 = vrot.lane.b32.xlu0 %v2697, 24
      %v2782 = vpop.permute.xlu0 %2781
      %2783 = vrot.lane.b32.xlu0 %v2698, 24
      %v2784 = vpop.permute.xlu0 %2783
      %2785 = vrot.lane.b32.xlu0 %v2699, 24
      %v2786 = vpop.permute.xlu0 %2785
      %2787 = vrot.lane.b32.xlu0 %v2700, 24
      %v2788 = vpop.permute.xlu0 %2787
      %2789 = vrot.lane.b32.xlu0 %v2701, 24
      %v2790 = vpop.permute.xlu0 %2789
      %2791 = vrot.lane.b32.xlu0 %v2702, 24
      %v2792 = vpop.permute.xlu0 %2791
      %2793 = vrot.lane.b32.xlu0 %v2703, 24
      %v2794 = vpop.permute.xlu0 %2793
      %2795 = vrot.lane.b32.xlu0 %v2704, 24
      %v2796 = vpop.permute.xlu0 %2795
      %2797 = vrot.lane.b32.xlu0 %v2705, 24
      %v2798 = vpop.permute.xlu0 %2797
      %2799 = vrot.lane.b32.xlu0 %v2706, 24
      %v2800 = vpop.permute.xlu0 %2799
      %2801 = vrot.lane.b32.xlu0 %v2707, 24
      %v2802 = vpop.permute.xlu0 %2801
      %2803 = vrot.lane.b32.xlu0 %v2708, 24
      %v2804 = vpop.permute.xlu0 %2803
      %vm2837 = vcmask 257216
      %2838 = vst.msk [vmem:[#allocation3] sm:$0xf] %vm2837, %v2742
      %2839 = vst.msk [vmem:[#allocation3 + $0x4] sm:$0xf] %vm2837, %v2744
      %2840 = vst.msk [vmem:[#allocation3 + $0x8] sm:$0xf] %vm2837, %v2746
      %2841 = vst.msk [vmem:[#allocation3 + $0xc] sm:$0xf] %vm2837, %v2748
      %2842 = vst.msk [vmem:[#allocation3 + $0x10] sm:$0xf] %vm2837, %v2750
      %2843 = vst.msk [vmem:[#allocation3 + $0x14] sm:$0xf] %vm2837, %v2752
      %2844 = vst.msk [vmem:[#allocation3 + $0x18] sm:$0xf] %vm2837, %v2754
      %2845 = vst.msk [vmem:[#allocation3 + $0x1c] sm:$0xf] %vm2837, %v2756
      %2846 = vst.msk [vmem:[#allocation3 + $0x20] sm:$0xf] %vm2837, %v2758
      %2847 = vst.msk [vmem:[#allocation3 + $0x24] sm:$0xf] %vm2837, %v2760
      %2848 = vst.msk [vmem:[#allocation3 + $0x28] sm:$0xf] %vm2837, %v2762
      %2849 = vst.msk [vmem:[#allocation3 + $0x2c] sm:$0xf] %vm2837, %v2764
      %2850 = vst.msk [vmem:[#allocation3 + $0x30] sm:$0xf] %vm2837, %v2766
      %2851 = vst.msk [vmem:[#allocation3 + $0x34] sm:$0xf] %vm2837, %v2768
      %2852 = vst.msk [vmem:[#allocation3 + $0x38] sm:$0xf] %vm2837, %v2770
      %2853 = vst.msk [vmem:[#allocation3 + $0x3c] sm:$0xf] %vm2837, %v2772
      %2854 = vst.msk [vmem:[#allocation3 + $0x40] sm:$0xf] %vm2837, %v2774
      %2855 = vst.msk [vmem:[#allocation3 + $0x44] sm:$0xf] %vm2837, %v2776
      %2856 = vst.msk [vmem:[#allocation3 + $0x48] sm:$0xf] %vm2837, %v2778
      %2857 = vst.msk [vmem:[#allocation3 + $0x4c] sm:$0xf] %vm2837, %v2780
      %2858 = vst.msk [vmem:[#allocation3 + $0x50] sm:$0xf] %vm2837, %v2782
      %2859 = vst.msk [vmem:[#allocation3 + $0x54] sm:$0xf] %vm2837, %v2784
      %2860 = vst.msk [vmem:[#allocation3 + $0x58] sm:$0xf] %vm2837, %v2786
      %2861 = vst.msk [vmem:[#allocation3 + $0x5c] sm:$0xf] %vm2837, %v2788
      %2862 = vst.msk [vmem:[#allocation3 + $0x60] sm:$0xf] %vm2837, %v2790
      %2863 = vst.msk [vmem:[#allocation3 + $0x64] sm:$0xf] %vm2837, %v2792
      %2864 = vst.msk [vmem:[#allocation3 + $0x68] sm:$0xf] %vm2837, %v2794
      %2865 = vst.msk [vmem:[#allocation3 + $0x6c] sm:$0xf] %vm2837, %v2796
      %2866 = vst.msk [vmem:[#allocation3 + $0x70] sm:$0xf] %vm2837, %v2798
      %2867 = vst.msk [vmem:[#allocation3 + $0x74] sm:$0xf] %vm2837, %v2800
      %2868 = vst.msk [vmem:[#allocation3 + $0x78] sm:$0xf] %vm2837, %v2802
      %2869 = vst.msk [vmem:[#allocation3 + $0x7c] sm:$0xf] %vm2837, %v2804
      %v2870 = vld [vmem:[%s1591] sm:$0xf]
      %v2871 = vld [vmem:[%s1591 + $0x4] sm:$0xf]
      %v2872 = vld [vmem:[%s1591 + $0x8] sm:$0x1]
      %v2873 = vld [vmem:[%s1591 + $0xc] sm:$0xf]
      %v2874 = vld [vmem:[%s1591 + $0x10] sm:$0xf]
      %v2875 = vld [vmem:[%s1591 + $0x14] sm:$0x1]
      %v2876 = vld [vmem:[%s1591 + $0x18] sm:$0xf]
      %v2877 = vld [vmem:[%s1591 + $0x1c] sm:$0xf]
      %v2878 = vld [vmem:[%s1591 + $0x20] sm:$0x1]
      %v2879 = vld [vmem:[%s1591 + $0x24] sm:$0xf]
      %v2880 = vld [vmem:[%s1591 + $0x28] sm:$0xf]
      %v2881 = vld [vmem:[%s1591 + $0x2c] sm:$0x1]
      %v2882 = vld [vmem:[%s1591 + $0x30] sm:$0xf]
      %v2883 = vld [vmem:[%s1591 + $0x34] sm:$0xf]
      %v2884 = vld [vmem:[%s1591 + $0x38] sm:$0x1]
      %v2885 = vld [vmem:[%s1591 + $0x3c] sm:$0xf]
      %v2886 = vld [vmem:[%s1591 + $0x40] sm:$0xf]
      %v2887 = vld [vmem:[%s1591 + $0x44] sm:$0x1]
      %v2888 = vld [vmem:[%s1591 + $0x48] sm:$0xf]
      %v2889 = vld [vmem:[%s1591 + $0x4c] sm:$0xf]
      %v2890 = vld [vmem:[%s1591 + $0x50] sm:$0x1]
      %v2891 = vld [vmem:[%s1591 + $0x54] sm:$0xf]
      %v2892 = vld [vmem:[%s1591 + $0x58] sm:$0xf]
      %v2893 = vld [vmem:[%s1591 + $0x5c] sm:$0x1]
      %v2894 = vld [vmem:[%s1591 + $0x60] sm:$0xf]
      %v2895 = vld [vmem:[%s1591 + $0x64] sm:$0xf]
      %v2896 = vld [vmem:[%s1591 + $0x68] sm:$0x1]
      %v2897 = vld [vmem:[%s1591 + $0x6c] sm:$0xf]
      %v2898 = vld [vmem:[%s1591 + $0x70] sm:$0xf]
      %v2899 = vld [vmem:[%s1591 + $0x74] sm:$0x1]
      %v2900 = vld [vmem:[%s1591 + $0x78] sm:$0xf]
      %v2901 = vld [vmem:[%s1591 + $0x7c] sm:$0xf]
      %v2902 = vld [vmem:[%s1591 + $0x80] sm:$0x1]
      %v2903 = vld [vmem:[%s1591 + $0x84] sm:$0xf]
      %v2904 = vld [vmem:[%s1591 + $0x88] sm:$0xf]
      %v2905 = vld [vmem:[%s1591 + $0x8c] sm:$0x1]
      %v2906 = vld [vmem:[%s1591 + $0x90] sm:$0xf]
      %v2907 = vld [vmem:[%s1591 + $0x94] sm:$0xf]
      %v2908 = vld [vmem:[%s1591 + $0x98] sm:$0x1]
      %v2909 = vld [vmem:[%s1591 + $0x9c] sm:$0xf]
      %v2910 = vld [vmem:[%s1591 + $0xa0] sm:$0xf]
      %v2911 = vld [vmem:[%s1591 + $0xa4] sm:$0x1]
      %v2912 = vld [vmem:[%s1591 + $0xa8] sm:$0xf]
      %v2913 = vld [vmem:[%s1591 + $0xac] sm:$0xf]
      %v2914 = vld [vmem:[%s1591 + $0xb0] sm:$0x1]
      %v2915 = vld [vmem:[%s1591 + $0xb4] sm:$0xf]
      %v2916 = vld [vmem:[%s1591 + $0xb8] sm:$0xf]
      %v2917 = vld [vmem:[%s1591 + $0xbc] sm:$0x1]
      %v2919 = vshrl.u32 %v2870, 16
      %v2921 = vrot.slane %v2919, 4
      %v2922 = vshll.u32 %v2870, 16
      %v2924 = vrot.slane %v2922, 5
      %v2925 = vor.u32 %v2921, %v2924
      %v2926 = vrot.slane %v2925, 4
      %v2928 = vshll.u32 %v2871, 16
      %v2930 = vrot.slane %v2928, 5
      %v2931 = vsel %vm1823, %v2926, %v2930
      %v2932 = vshrl.u32 %v2871, 16
      %v2934 = vrot.slane %v2932, 4
      %v2935 = vor.u32 %v2934, %v2930
      %v2936 = vrot.slane %v2935, 4
      %v2938 = vshll.u32 %v2872, 16
      %v2940 = vrot.slane %v2938, 5
      %v2941 = vsel %vm1823, %v2936, %v2940
      %v2943 = vshrl.u32 %v2873, 16
      %v2945 = vrot.slane %v2943, 4
      %v2946 = vshll.u32 %v2873, 16
      %v2948 = vrot.slane %v2946, 5
      %v2949 = vor.u32 %v2945, %v2948
      %v2950 = vrot.slane %v2949, 4
      %v2952 = vshll.u32 %v2874, 16
      %v2954 = vrot.slane %v2952, 5
      %v2955 = vsel %vm1823, %v2950, %v2954
      %v2956 = vshrl.u32 %v2874, 16
      %v2958 = vrot.slane %v2956, 4
      %v2959 = vor.u32 %v2958, %v2954
      %v2960 = vrot.slane %v2959, 4
      %v2962 = vshll.u32 %v2875, 16
      %v2964 = vrot.slane %v2962, 5
      %v2965 = vsel %vm1823, %v2960, %v2964
      %v2967 = vshrl.u32 %v2876, 16
      %v2969 = vrot.slane %v2967, 4
      %v2970 = vshll.u32 %v2876, 16
      %v2972 = vrot.slane %v2970, 5
      %v2973 = vor.u32 %v2969, %v2972
      %v2974 = vrot.slane %v2973, 4
      %v2976 = vshll.u32 %v2877, 16
      %v2978 = vrot.slane %v2976, 5
      %v2979 = vsel %vm1823, %v2974, %v2978
      %v2980 = vshrl.u32 %v2877, 16
      %v2982 = vrot.slane %v2980, 4
      %v2983 = vor.u32 %v2982, %v2978
      %v2984 = vrot.slane %v2983, 4
      %v2986 = vshll.u32 %v2878, 16
      %v2988 = vrot.slane %v2986, 5
      %v2989 = vsel %vm1823, %v2984, %v2988
      %v2991 = vshrl.u32 %v2879, 16
      %v2993 = vrot.slane %v2991, 4
      %v2994 = vshll.u32 %v2879, 16
      %v2996 = vrot.slane %v2994, 5
      %v2997 = vor.u32 %v2993, %v2996
      %v2998 = vrot.slane %v2997, 4
      %v3000 = vshll.u32 %v2880, 16
      %v3002 = vrot.slane %v3000, 5
      %v3003 = vsel %vm1823, %v2998, %v3002
      %v3004 = vshrl.u32 %v2880, 16
      %v3006 = vrot.slane %v3004, 4
      %v3007 = vor.u32 %v3006, %v3002
      %v3008 = vrot.slane %v3007, 4
      %v3010 = vshll.u32 %v2881, 16
      %v3012 = vrot.slane %v3010, 5
      %v3013 = vsel %vm1823, %v3008, %v3012
      %v3015 = vshrl.u32 %v2882, 16
      %v3017 = vrot.slane %v3015, 4
      %v3018 = vshll.u32 %v2882, 16
      %v3020 = vrot.slane %v3018, 5
      %v3021 = vor.u32 %v3017, %v3020
      %v3022 = vrot.slane %v3021, 4
      %v3024 = vshll.u32 %v2883, 16
      %v3026 = vrot.slane %v3024, 5
      %v3027 = vsel %vm1823, %v3022, %v3026
      %v3028 = vshrl.u32 %v2883, 16
      %v3030 = vrot.slane %v3028, 4
      %v3031 = vor.u32 %v3030, %v3026
      %v3032 = vrot.slane %v3031, 4
      %v3034 = vshll.u32 %v2884, 16
      %v3036 = vrot.slane %v3034, 5
      %v3037 = vsel %vm1823, %v3032, %v3036
      %v3039 = vshrl.u32 %v2885, 16
      %v3041 = vrot.slane %v3039, 4
      %v3042 = vshll.u32 %v2885, 16
      %v3044 = vrot.slane %v3042, 5
      %v3045 = vor.u32 %v3041, %v3044
      %v3046 = vrot.slane %v3045, 4
      %v3048 = vshll.u32 %v2886, 16
      %v3050 = vrot.slane %v3048, 5
      %v3051 = vsel %vm1823, %v3046, %v3050
      %v3052 = vshrl.u32 %v2886, 16
      %v3054 = vrot.slane %v3052, 4
      %v3055 = vor.u32 %v3054, %v3050
      %v3056 = vrot.slane %v3055, 4
      %v3058 = vshll.u32 %v2887, 16
      %v3060 = vrot.slane %v3058, 5
      %v3061 = vsel %vm1823, %v3056, %v3060
      %v3063 = vshrl.u32 %v2888, 16
      %v3065 = vrot.slane %v3063, 4
      %v3066 = vshll.u32 %v2888, 16
      %v3068 = vrot.slane %v3066, 5
      %v3069 = vor.u32 %v3065, %v3068
      %v3070 = vrot.slane %v3069, 4
      %v3072 = vshll.u32 %v2889, 16
      %v3074 = vrot.slane %v3072, 5
      %v3075 = vsel %vm1823, %v3070, %v3074
      %v3076 = vshrl.u32 %v2889, 16
      %v3078 = vrot.slane %v3076, 4
      %v3079 = vor.u32 %v3078, %v3074
      %v3080 = vrot.slane %v3079, 4
      %v3082 = vshll.u32 %v2890, 16
      %v3084 = vrot.slane %v3082, 5
      %v3085 = vsel %vm1823, %v3080, %v3084
      %v3087 = vshrl.u32 %v2891, 16
      %v3089 = vrot.slane %v3087, 4
      %v3090 = vshll.u32 %v2891, 16
      %v3092 = vrot.slane %v3090, 5
      %v3093 = vor.u32 %v3089, %v3092
      %v3094 = vrot.slane %v3093, 4
      %v3096 = vshll.u32 %v2892, 16
      %v3098 = vrot.slane %v3096, 5
      %v3099 = vsel %vm1823, %v3094, %v3098
      %v3100 = vshrl.u32 %v2892, 16
      %v3102 = vrot.slane %v3100, 4
      %v3103 = vor.u32 %v3102, %v3098
      %v3104 = vrot.slane %v3103, 4
      %v3106 = vshll.u32 %v2893, 16
      %v3108 = vrot.slane %v3106, 5
      %v3109 = vsel %vm1823, %v3104, %v3108
      %v3111 = vshrl.u32 %v2894, 16
      %v3113 = vrot.slane %v3111, 4
      %v3114 = vshll.u32 %v2894, 16
      %v3116 = vrot.slane %v3114, 5
      %v3117 = vor.u32 %v3113, %v3116
      %v3118 = vrot.slane %v3117, 4
      %v3120 = vshll.u32 %v2895, 16
      %v3122 = vrot.slane %v3120, 5
      %v3123 = vsel %vm1823, %v3118, %v3122
      %v3124 = vshrl.u32 %v2895, 16
      %v3126 = vrot.slane %v3124, 4
      %v3127 = vor.u32 %v3126, %v3122
      %v3128 = vrot.slane %v3127, 4
      %v3130 = vshll.u32 %v2896, 16
      %v3132 = vrot.slane %v3130, 5
      %v3133 = vsel %vm1823, %v3128, %v3132
      %v3135 = vshrl.u32 %v2897, 16
      %v3137 = vrot.slane %v3135, 4
      %v3138 = vshll.u32 %v2897, 16
      %v3140 = vrot.slane %v3138, 5
      %v3141 = vor.u32 %v3137, %v3140
      %v3142 = vrot.slane %v3141, 4
      %v3144 = vshll.u32 %v2898, 16
      %v3146 = vrot.slane %v3144, 5
      %v3147 = vsel %vm1823, %v3142, %v3146
      %v3148 = vshrl.u32 %v2898, 16
      %v3150 = vrot.slane %v3148, 4
      %v3151 = vor.u32 %v3150, %v3146
      %v3152 = vrot.slane %v3151, 4
      %v3154 = vshll.u32 %v2899, 16
      %v3156 = vrot.slane %v3154, 5
      %v3157 = vsel %vm1823, %v3152, %v3156
      %v3159 = vshrl.u32 %v2900, 16
      %v3161 = vrot.slane %v3159, 4
      %v3162 = vshll.u32 %v2900, 16
      %v3164 = vrot.slane %v3162, 5
      %v3165 = vor.u32 %v3161, %v3164
      %v3166 = vrot.slane %v3165, 4
      %v3168 = vshll.u32 %v2901, 16
      %v3170 = vrot.slane %v3168, 5
      %v3171 = vsel %vm1823, %v3166, %v3170
      %v3172 = vshrl.u32 %v2901, 16
      %v3174 = vrot.slane %v3172, 4
      %v3175 = vor.u32 %v3174, %v3170
      %v3176 = vrot.slane %v3175, 4
      %v3178 = vshll.u32 %v2902, 16
      %v3180 = vrot.slane %v3178, 5
      %v3181 = vsel %vm1823, %v3176, %v3180
      %v3183 = vshrl.u32 %v2903, 16
      %v3185 = vrot.slane %v3183, 4
      %v3186 = vshll.u32 %v2903, 16
      %v3188 = vrot.slane %v3186, 5
      %v3189 = vor.u32 %v3185, %v3188
      %v3190 = vrot.slane %v3189, 4
      %v3192 = vshll.u32 %v2904, 16
      %v3194 = vrot.slane %v3192, 5
      %v3195 = vsel %vm1823, %v3190, %v3194
      %v3196 = vshrl.u32 %v2904, 16
      %v3198 = vrot.slane %v3196, 4
      %v3199 = vor.u32 %v3198, %v3194
      %v3200 = vrot.slane %v3199, 4
      %v3202 = vshll.u32 %v2905, 16
      %v3204 = vrot.slane %v3202, 5
      %v3205 = vsel %vm1823, %v3200, %v3204
      %v3207 = vshrl.u32 %v2906, 16
      %v3209 = vrot.slane %v3207, 4
      %v3210 = vshll.u32 %v2906, 16
      %v3212 = vrot.slane %v3210, 5
      %v3213 = vor.u32 %v3209, %v3212
      %v3214 = vrot.slane %v3213, 4
      %v3216 = vshll.u32 %v2907, 16
      %v3218 = vrot.slane %v3216, 5
      %v3219 = vsel %vm1823, %v3214, %v3218
      %v3220 = vshrl.u32 %v2907, 16
      %v3222 = vrot.slane %v3220, 4
      %v3223 = vor.u32 %v3222, %v3218
      %v3224 = vrot.slane %v3223, 4
      %v3226 = vshll.u32 %v2908, 16
      %v3228 = vrot.slane %v3226, 5
      %v3229 = vsel %vm1823, %v3224, %v3228
      %v3231 = vshrl.u32 %v2909, 16
      %v3233 = vrot.slane %v3231, 4
      %v3234 = vshll.u32 %v2909, 16
      %v3236 = vrot.slane %v3234, 5
      %v3237 = vor.u32 %v3233, %v3236
      %v3238 = vrot.slane %v3237, 4
      %v3240 = vshll.u32 %v2910, 16
      %v3242 = vrot.slane %v3240, 5
      %v3243 = vsel %vm1823, %v3238, %v3242
      %v3244 = vshrl.u32 %v2910, 16
      %v3246 = vrot.slane %v3244, 4
      %v3247 = vor.u32 %v3246, %v3242
      %v3248 = vrot.slane %v3247, 4
      %v3250 = vshll.u32 %v2911, 16
      %v3252 = vrot.slane %v3250, 5
      %v3253 = vsel %vm1823, %v3248, %v3252
      %v3255 = vshrl.u32 %v2912, 16
      %v3257 = vrot.slane %v3255, 4
      %v3258 = vshll.u32 %v2912, 16
      %v3260 = vrot.slane %v3258, 5
      %v3261 = vor.u32 %v3257, %v3260
      %v3262 = vrot.slane %v3261, 4
      %v3264 = vshll.u32 %v2913, 16
      %v3266 = vrot.slane %v3264, 5
      %v3267 = vsel %vm1823, %v3262, %v3266
      %v3268 = vshrl.u32 %v2913, 16
      %v3270 = vrot.slane %v3268, 4
      %v3271 = vor.u32 %v3270, %v3266
      %v3272 = vrot.slane %v3271, 4
      %v3274 = vshll.u32 %v2914, 16
      %v3276 = vrot.slane %v3274, 5
      %v3277 = vsel %vm1823, %v3272, %v3276
      %v3279 = vshrl.u32 %v2915, 16
      %v3281 = vrot.slane %v3279, 4
      %v3282 = vshll.u32 %v2915, 16
      %v3284 = vrot.slane %v3282, 5
      %v3285 = vor.u32 %v3281, %v3284
      %v3286 = vrot.slane %v3285, 4
      %v3288 = vshll.u32 %v2916, 16
      %v3290 = vrot.slane %v3288, 5
      %v3291 = vsel %vm1823, %v3286, %v3290
      %v3292 = vshrl.u32 %v2916, 16
      %v3294 = vrot.slane %v3292, 4
      %v3295 = vor.u32 %v3294, %v3290
      %v3296 = vrot.slane %v3295, 4
      %v3298 = vshll.u32 %v2917, 16
      %v3300 = vrot.slane %v3298, 5
      %v3301 = vsel %vm1823, %v3296, %v3300
      %3302 = vrot.lane.b32.xlu0 %v2931, 32
      %v3303 = vpop.permute.xlu0 %3302
      %3304 = vrot.lane.b32.xlu0 %v2941, 32
      %v3305 = vpop.permute.xlu0 %3304
      %3306 = vrot.lane.b32.xlu0 %v2955, 32
      %v3307 = vpop.permute.xlu0 %3306
      %3308 = vrot.lane.b32.xlu0 %v2965, 32
      %v3309 = vpop.permute.xlu0 %3308
      %3310 = vrot.lane.b32.xlu0 %v2979, 32
      %v3311 = vpop.permute.xlu0 %3310
      %3312 = vrot.lane.b32.xlu0 %v2989, 32
      %v3313 = vpop.permute.xlu0 %3312
      %3314 = vrot.lane.b32.xlu0 %v3003, 32
      %v3315 = vpop.permute.xlu0 %3314
      %3316 = vrot.lane.b32.xlu0 %v3013, 32
      %v3317 = vpop.permute.xlu0 %3316
      %3318 = vrot.lane.b32.xlu0 %v3027, 32
      %v3319 = vpop.permute.xlu0 %3318
      %3320 = vrot.lane.b32.xlu0 %v3037, 32
      %v3321 = vpop.permute.xlu0 %3320
      %3322 = vrot.lane.b32.xlu0 %v3051, 32
      %v3323 = vpop.permute.xlu0 %3322
      %3324 = vrot.lane.b32.xlu0 %v3061, 32
      %v3325 = vpop.permute.xlu0 %3324
      %3326 = vrot.lane.b32.xlu0 %v3075, 32
      %v3327 = vpop.permute.xlu0 %3326
      %3328 = vrot.lane.b32.xlu0 %v3085, 32
      %v3329 = vpop.permute.xlu0 %3328
      %3330 = vrot.lane.b32.xlu0 %v3099, 32
      %v3331 = vpop.permute.xlu0 %3330
      %3332 = vrot.lane.b32.xlu0 %v3109, 32
      %v3333 = vpop.permute.xlu0 %3332
      %3334 = vrot.lane.b32.xlu0 %v3123, 32
      %v3335 = vpop.permute.xlu0 %3334
      %3336 = vrot.lane.b32.xlu0 %v3133, 32
      %v3337 = vpop.permute.xlu0 %3336
      %3338 = vrot.lane.b32.xlu0 %v3147, 32
      %v3339 = vpop.permute.xlu0 %3338
      %3340 = vrot.lane.b32.xlu0 %v3157, 32
      %v3341 = vpop.permute.xlu0 %3340
      %3342 = vrot.lane.b32.xlu0 %v3171, 32
      %v3343 = vpop.permute.xlu0 %3342
      %3344 = vrot.lane.b32.xlu0 %v3181, 32
      %v3345 = vpop.permute.xlu0 %3344
      %3346 = vrot.lane.b32.xlu0 %v3195, 32
      %v3347 = vpop.permute.xlu0 %3346
      %3348 = vrot.lane.b32.xlu0 %v3205, 32
      %v3349 = vpop.permute.xlu0 %3348
      %3350 = vrot.lane.b32.xlu0 %v3219, 32
      %v3351 = vpop.permute.xlu0 %3350
      %3352 = vrot.lane.b32.xlu0 %v3229, 32
      %v3353 = vpop.permute.xlu0 %3352
      %3354 = vrot.lane.b32.xlu0 %v3243, 32
      %v3355 = vpop.permute.xlu0 %3354
      %3356 = vrot.lane.b32.xlu0 %v3253, 32
      %v3357 = vpop.permute.xlu0 %3356
      %3358 = vrot.lane.b32.xlu0 %v3267, 32
      %v3359 = vpop.permute.xlu0 %3358
      %3360 = vrot.lane.b32.xlu0 %v3277, 32
      %v3361 = vpop.permute.xlu0 %3360
      %3362 = vrot.lane.b32.xlu0 %v3291, 32
      %v3363 = vpop.permute.xlu0 %3362
      %3364 = vrot.lane.b32.xlu0 %v3301, 32
      %v3365 = vpop.permute.xlu0 %3364
      %vm3398 = vcmask 322816
      %3399 = vst.msk [vmem:[#allocation3] sm:$0xf] %vm3398, %v3303
      %3400 = vst.msk [vmem:[#allocation3 + $0x4] sm:$0xf] %vm3398, %v3305
      %3401 = vst.msk [vmem:[#allocation3 + $0x8] sm:$0xf] %vm3398, %v3307
      %3402 = vst.msk [vmem:[#allocation3 + $0xc] sm:$0xf] %vm3398, %v3309
      %3403 = vst.msk [vmem:[#allocation3 + $0x10] sm:$0xf] %vm3398, %v3311
      %3404 = vst.msk [vmem:[#allocation3 + $0x14] sm:$0xf] %vm3398, %v3313
      %3405 = vst.msk [vmem:[#allocation3 + $0x18] sm:$0xf] %vm3398, %v3315
      %3406 = vst.msk [vmem:[#allocation3 + $0x1c] sm:$0xf] %vm3398, %v3317
      %3407 = vst.msk [vmem:[#allocation3 + $0x20] sm:$0xf] %vm3398, %v3319
      %3408 = vst.msk [vmem:[#allocation3 + $0x24] sm:$0xf] %vm3398, %v3321
      %3409 = vst.msk [vmem:[#allocation3 + $0x28] sm:$0xf] %vm3398, %v3323
      %3410 = vst.msk [vmem:[#allocation3 + $0x2c] sm:$0xf] %vm3398, %v3325
      %3411 = vst.msk [vmem:[#allocation3 + $0x30] sm:$0xf] %vm3398, %v3327
      %3412 = vst.msk [vmem:[#allocation3 + $0x34] sm:$0xf] %vm3398, %v3329
      %3413 = vst.msk [vmem:[#allocation3 + $0x38] sm:$0xf] %vm3398, %v3331
      %3414 = vst.msk [vmem:[#allocation3 + $0x3c] sm:$0xf] %vm3398, %v3333
      %3415 = vst.msk [vmem:[#allocation3 + $0x40] sm:$0xf] %vm3398, %v3335
      %3416 = vst.msk [vmem:[#allocation3 + $0x44] sm:$0xf] %vm3398, %v3337
      %3417 = vst.msk [vmem:[#allocation3 + $0x48] sm:$0xf] %vm3398, %v3339
      %3418 = vst.msk [vmem:[#allocation3 + $0x4c] sm:$0xf] %vm3398, %v3341
      %3419 = vst.msk [vmem:[#allocation3 + $0x50] sm:$0xf] %vm3398, %v3343
      %3420 = vst.msk [vmem:[#allocation3 + $0x54] sm:$0xf] %vm3398, %v3345
      %3421 = vst.msk [vmem:[#allocation3 + $0x58] sm:$0xf] %vm3398, %v3347
      %3422 = vst.msk [vmem:[#allocation3 + $0x5c] sm:$0xf] %vm3398, %v3349
      %3423 = vst.msk [vmem:[#allocation3 + $0x60] sm:$0xf] %vm3398, %v3351
      %3424 = vst.msk [vmem:[#allocation3 + $0x64] sm:$0xf] %vm3398, %v3353
      %3425 = vst.msk [vmem:[#allocation3 + $0x68] sm:$0xf] %vm3398, %v3355
      %3426 = vst.msk [vmem:[#allocation3 + $0x6c] sm:$0xf] %vm3398, %v3357
      %3427 = vst.msk [vmem:[#allocation3 + $0x70] sm:$0xf] %vm3398, %v3359
      %3428 = vst.msk [vmem:[#allocation3 + $0x74] sm:$0xf] %vm3398, %v3361
      %3429 = vst.msk [vmem:[#allocation3 + $0x78] sm:$0xf] %vm3398, %v3363
      %3430 = vst.msk [vmem:[#allocation3 + $0x7c] sm:$0xf] %vm3398, %v3365
      %v3431 = vld [vmem:[%s1591] sm:$0xe]
      %v3432 = vld [vmem:[%s1591 + $0x4] sm:$0xf]
      %v3433 = vld [vmem:[%s1591 + $0x8] sm:$0x1]
      %v3434 = vld [vmem:[%s1591 + $0xc] sm:$0xe]
      %v3435 = vld [vmem:[%s1591 + $0x10] sm:$0xf]
      %v3436 = vld [vmem:[%s1591 + $0x14] sm:$0x1]
      %v3437 = vld [vmem:[%s1591 + $0x18] sm:$0xe]
      %v3438 = vld [vmem:[%s1591 + $0x1c] sm:$0xf]
      %v3439 = vld [vmem:[%s1591 + $0x20] sm:$0x1]
      %v3440 = vld [vmem:[%s1591 + $0x24] sm:$0xe]
      %v3441 = vld [vmem:[%s1591 + $0x28] sm:$0xf]
      %v3442 = vld [vmem:[%s1591 + $0x2c] sm:$0x1]
      %v3443 = vld [vmem:[%s1591 + $0x30] sm:$0xe]
      %v3444 = vld [vmem:[%s1591 + $0x34] sm:$0xf]
      %v3445 = vld [vmem:[%s1591 + $0x38] sm:$0x1]
      %v3446 = vld [vmem:[%s1591 + $0x3c] sm:$0xe]
      %v3447 = vld [vmem:[%s1591 + $0x40] sm:$0xf]
      %v3448 = vld [vmem:[%s1591 + $0x44] sm:$0x1]
      %v3449 = vld [vmem:[%s1591 + $0x48] sm:$0xe]
      %v3450 = vld [vmem:[%s1591 + $0x4c] sm:$0xf]
      %v3451 = vld [vmem:[%s1591 + $0x50] sm:$0x1]
      %v3452 = vld [vmem:[%s1591 + $0x54] sm:$0xe]
      %v3453 = vld [vmem:[%s1591 + $0x58] sm:$0xf]
      %v3454 = vld [vmem:[%s1591 + $0x5c] sm:$0x1]
      %v3455 = vld [vmem:[%s1591 + $0x60] sm:$0xe]
      %v3456 = vld [vmem:[%s1591 + $0x64] sm:$0xf]
      %v3457 = vld [vmem:[%s1591 + $0x68] sm:$0x1]
      %v3458 = vld [vmem:[%s1591 + $0x6c] sm:$0xe]
      %v3459 = vld [vmem:[%s1591 + $0x70] sm:$0xf]
      %v3460 = vld [vmem:[%s1591 + $0x74] sm:$0x1]
      %v3461 = vld [vmem:[%s1591 + $0x78] sm:$0xe]
      %v3462 = vld [vmem:[%s1591 + $0x7c] sm:$0xf]
      %v3463 = vld [vmem:[%s1591 + $0x80] sm:$0x1]
      %v3464 = vld [vmem:[%s1591 + $0x84] sm:$0xe]
      %v3465 = vld [vmem:[%s1591 + $0x88] sm:$0xf]
      %v3466 = vld [vmem:[%s1591 + $0x8c] sm:$0x1]
      %v3467 = vld [vmem:[%s1591 + $0x90] sm:$0xe]
      %v3468 = vld [vmem:[%s1591 + $0x94] sm:$0xf]
      %v3469 = vld [vmem:[%s1591 + $0x98] sm:$0x1]
      %v3470 = vld [vmem:[%s1591 + $0x9c] sm:$0xe]
      %v3471 = vld [vmem:[%s1591 + $0xa0] sm:$0xf]
      %v3472 = vld [vmem:[%s1591 + $0xa4] sm:$0x1]
      %v3473 = vld [vmem:[%s1591 + $0xa8] sm:$0xe]
      %v3474 = vld [vmem:[%s1591 + $0xac] sm:$0xf]
      %v3475 = vld [vmem:[%s1591 + $0xb0] sm:$0x1]
      %v3476 = vld [vmem:[%s1591 + $0xb4] sm:$0xe]
      %v3477 = vld [vmem:[%s1591 + $0xb8] sm:$0xf]
      %v3478 = vld [vmem:[%s1591 + $0xbc] sm:$0x1]
      %v3527 = vrot.slane %v3431, 5
      %v3528 = vrot.slane %v3527, 4
      %v3529 = vrot.slane %v3432, 5
      %v3530 = vsel %vm2435, %v3528, %v3529
      %v3531 = vrot.slane %v3529, 4
      %v3532 = vrot.slane %v3433, 5
      %v3533 = vsel %vm2435, %v3531, %v3532
      %v3534 = vrot.slane %v3434, 5
      %v3535 = vrot.slane %v3534, 4
      %v3536 = vrot.slane %v3435, 5
      %v3537 = vsel %vm2435, %v3535, %v3536
      %v3538 = vrot.slane %v3536, 4
      %v3539 = vrot.slane %v3436, 5
      %v3540 = vsel %vm2435, %v3538, %v3539
      %v3541 = vrot.slane %v3437, 5
      %v3542 = vrot.slane %v3541, 4
      %v3543 = vrot.slane %v3438, 5
      %v3544 = vsel %vm2435, %v3542, %v3543
      %v3545 = vrot.slane %v3543, 4
      %v3546 = vrot.slane %v3439, 5
      %v3547 = vsel %vm2435, %v3545, %v3546
      %v3548 = vrot.slane %v3440, 5
      %v3549 = vrot.slane %v3548, 4
      %v3550 = vrot.slane %v3441, 5
      %v3551 = vsel %vm2435, %v3549, %v3550
      %v3552 = vrot.slane %v3550, 4
      %v3553 = vrot.slane %v3442, 5
      %v3554 = vsel %vm2435, %v3552, %v3553
      %v3555 = vrot.slane %v3443, 5
      %v3556 = vrot.slane %v3555, 4
      %v3557 = vrot.slane %v3444, 5
      %v3558 = vsel %vm2435, %v3556, %v3557
      %v3559 = vrot.slane %v3557, 4
      %v3560 = vrot.slane %v3445, 5
      %v3561 = vsel %vm2435, %v3559, %v3560
      %v3562 = vrot.slane %v3446, 5
      %v3563 = vrot.slane %v3562, 4
      %v3564 = vrot.slane %v3447, 5
      %v3565 = vsel %vm2435, %v3563, %v3564
      %v3566 = vrot.slane %v3564, 4
      %v3567 = vrot.slane %v3448, 5
      %v3568 = vsel %vm2435, %v3566, %v3567
      %v3569 = vrot.slane %v3449, 5
      %v3570 = vrot.slane %v3569, 4
      %v3571 = vrot.slane %v3450, 5
      %v3572 = vsel %vm2435, %v3570, %v3571
      %v3573 = vrot.slane %v3571, 4
      %v3574 = vrot.slane %v3451, 5
      %v3575 = vsel %vm2435, %v3573, %v3574
      %v3576 = vrot.slane %v3452, 5
      %v3577 = vrot.slane %v3576, 4
      %v3578 = vrot.slane %v3453, 5
      %v3579 = vsel %vm2435, %v3577, %v3578
      %v3580 = vrot.slane %v3578, 4
      %v3581 = vrot.slane %v3454, 5
      %v3582 = vsel %vm2435, %v3580, %v3581
      %v3583 = vrot.slane %v3455, 5
      %v3584 = vrot.slane %v3583, 4
      %v3585 = vrot.slane %v3456, 5
      %v3586 = vsel %vm2435, %v3584, %v3585
      %v3587 = vrot.slane %v3585, 4
      %v3588 = vrot.slane %v3457, 5
      %v3589 = vsel %vm2435, %v3587, %v3588
      %v3590 = vrot.slane %v3458, 5
      %v3591 = vrot.slane %v3590, 4
      %v3592 = vrot.slane %v3459, 5
      %v3593 = vsel %vm2435, %v3591, %v3592
      %v3594 = vrot.slane %v3592, 4
      %v3595 = vrot.slane %v3460, 5
      %v3596 = vsel %vm2435, %v3594, %v3595
      %v3597 = vrot.slane %v3461, 5
      %v3598 = vrot.slane %v3597, 4
      %v3599 = vrot.slane %v3462, 5
      %v3600 = vsel %vm2435, %v3598, %v3599
      %v3601 = vrot.slane %v3599, 4
      %v3602 = vrot.slane %v3463, 5
      %v3603 = vsel %vm2435, %v3601, %v3602
      %v3604 = vrot.slane %v3464, 5
      %v3605 = vrot.slane %v3604, 4
      %v3606 = vrot.slane %v3465, 5
      %v3607 = vsel %vm2435, %v3605, %v3606
      %v3608 = vrot.slane %v3606, 4
      %v3609 = vrot.slane %v3466, 5
      %v3610 = vsel %vm2435, %v3608, %v3609
      %v3611 = vrot.slane %v3467, 5
      %v3612 = vrot.slane %v3611, 4
      %v3613 = vrot.slane %v3468, 5
      %v3614 = vsel %vm2435, %v3612, %v3613
      %v3615 = vrot.slane %v3613, 4
      %v3616 = vrot.slane %v3469, 5
      %v3617 = vsel %vm2435, %v3615, %v3616
      %v3618 = vrot.slane %v3470, 5
      %v3619 = vrot.slane %v3618, 4
      %v3620 = vrot.slane %v3471, 5
      %v3621 = vsel %vm2435, %v3619, %v3620
      %v3622 = vrot.slane %v3620, 4
      %v3623 = vrot.slane %v3472, 5
      %v3624 = vsel %vm2435, %v3622, %v3623
      %v3625 = vrot.slane %v3473, 5
      %v3626 = vrot.slane %v3625, 4
      %v3627 = vrot.slane %v3474, 5
      %v3628 = vsel %vm2435, %v3626, %v3627
      %v3629 = vrot.slane %v3627, 4
      %v3630 = vrot.slane %v3475, 5
      %v3631 = vsel %vm2435, %v3629, %v3630
      %v3632 = vrot.slane %v3476, 5
      %v3633 = vrot.slane %v3632, 4
      %v3634 = vrot.slane %v3477, 5
      %v3635 = vsel %vm2435, %v3633, %v3634
      %v3636 = vrot.slane %v3634, 4
      %v3637 = vrot.slane %v3478, 5
      %v3638 = vsel %vm2435, %v3636, %v3637
      %3639 = vrot.lane.b32.xlu0 %v3530, 40
      %v3640 = vpop.permute.xlu0 %3639
      %3641 = vrot.lane.b32.xlu0 %v3533, 40
      %v3642 = vpop.permute.xlu0 %3641
      %3643 = vrot.lane.b32.xlu0 %v3537, 40
      %v3644 = vpop.permute.xlu0 %3643
      %3645 = vrot.lane.b32.xlu0 %v3540, 40
      %v3646 = vpop.permute.xlu0 %3645
      %3647 = vrot.lane.b32.xlu0 %v3544, 40
      %v3648 = vpop.permute.xlu0 %3647
      %3649 = vrot.lane.b32.xlu0 %v3547, 40
      %v3650 = vpop.permute.xlu0 %3649
      %3651 = vrot.lane.b32.xlu0 %v3551, 40
      %v3652 = vpop.permute.xlu0 %3651
      %3653 = vrot.lane.b32.xlu0 %v3554, 40
      %v3654 = vpop.permute.xlu0 %3653
      %3655 = vrot.lane.b32.xlu0 %v3558, 40
      %v3656 = vpop.permute.xlu0 %3655
      %3657 = vrot.lane.b32.xlu0 %v3561, 40
      %v3658 = vpop.permute.xlu0 %3657
      %3659 = vrot.lane.b32.xlu0 %v3565, 40
      %v3660 = vpop.permute.xlu0 %3659
      %3661 = vrot.lane.b32.xlu0 %v3568, 40
      %v3662 = vpop.permute.xlu0 %3661
      %3663 = vrot.lane.b32.xlu0 %v3572, 40
      %v3664 = vpop.permute.xlu0 %3663
      %3665 = vrot.lane.b32.xlu0 %v3575, 40
      %v3666 = vpop.permute.xlu0 %3665
      %3667 = vrot.lane.b32.xlu0 %v3579, 40
      %v3668 = vpop.permute.xlu0 %3667
      %3669 = vrot.lane.b32.xlu0 %v3582, 40
      %v3670 = vpop.permute.xlu0 %3669
      %3671 = vrot.lane.b32.xlu0 %v3586, 40
      %v3672 = vpop.permute.xlu0 %3671
      %3673 = vrot.lane.b32.xlu0 %v3589, 40
      %v3674 = vpop.permute.xlu0 %3673
      %3675 = vrot.lane.b32.xlu0 %v3593, 40
      %v3676 = vpop.permute.xlu0 %3675
      %3677 = vrot.lane.b32.xlu0 %v3596, 40
      %v3678 = vpop.permute.xlu0 %3677
      %3679 = vrot.lane.b32.xlu0 %v3600, 40
      %v3680 = vpop.permute.xlu0 %3679
      %3681 = vrot.lane.b32.xlu0 %v3603, 40
      %v3682 = vpop.permute.xlu0 %3681
      %3683 = vrot.lane.b32.xlu0 %v3607, 40
      %v3684 = vpop.permute.xlu0 %3683
      %3685 = vrot.lane.b32.xlu0 %v3610, 40
      %v3686 = vpop.permute.xlu0 %3685
      %3687 = vrot.lane.b32.xlu0 %v3614, 40
      %v3688 = vpop.permute.xlu0 %3687
      %3689 = vrot.lane.b32.xlu0 %v3617, 40
      %v3690 = vpop.permute.xlu0 %3689
      %3691 = vrot.lane.b32.xlu0 %v3621, 40
      %v3692 = vpop.permute.xlu0 %3691
      %3693 = vrot.lane.b32.xlu0 %v3624, 40
      %v3694 = vpop.permute.xlu0 %3693
      %3695 = vrot.lane.b32.xlu0 %v3628, 40
      %v3696 = vpop.permute.xlu0 %3695
      %3697 = vrot.lane.b32.xlu0 %v3631, 40
      %v3698 = vpop.permute.xlu0 %3697
      %3699 = vrot.lane.b32.xlu0 %v3635, 40
      %v3700 = vpop.permute.xlu0 %3699
      %3701 = vrot.lane.b32.xlu0 %v3638, 40
      %v3702 = vpop.permute.xlu0 %3701
      %vm3735 = vcmask 388416
      %3736 = vst.msk [vmem:[#allocation3] sm:$0xf] %vm3735, %v3640
      %3737 = vst.msk [vmem:[#allocation3 + $0x4] sm:$0xf] %vm3735, %v3642
      %3738 = vst.msk [vmem:[#allocation3 + $0x8] sm:$0xf] %vm3735, %v3644
      %3739 = vst.msk [vmem:[#allocation3 + $0xc] sm:$0xf] %vm3735, %v3646
      %3740 = vst.msk [vmem:[#allocation3 + $0x10] sm:$0xf] %vm3735, %v3648
      %3741 = vst.msk [vmem:[#allocation3 + $0x14] sm:$0xf] %vm3735, %v3650
      %3742 = vst.msk [vmem:[#allocation3 + $0x18] sm:$0xf] %vm3735, %v3652
      %3743 = vst.msk [vmem:[#allocation3 + $0x1c] sm:$0xf] %vm3735, %v3654
      %3744 = vst.msk [vmem:[#allocation3 + $0x20] sm:$0xf] %vm3735, %v3656
      %3745 = vst.msk [vmem:[#allocation3 + $0x24] sm:$0xf] %vm3735, %v3658
      %3746 = vst.msk [vmem:[#allocation3 + $0x28] sm:$0xf] %vm3735, %v3660
      %3747 = vst.msk [vmem:[#allocation3 + $0x2c] sm:$0xf] %vm3735, %v3662
      %3748 = vst.msk [vmem:[#allocation3 + $0x30] sm:$0xf] %vm3735, %v3664
      %3749 = vst.msk [vmem:[#allocation3 + $0x34] sm:$0xf] %vm3735, %v3666
      %3750 = vst.msk [vmem:[#allocation3 + $0x38] sm:$0xf] %vm3735, %v3668
      %3751 = vst.msk [vmem:[#allocation3 + $0x3c] sm:$0xf] %vm3735, %v3670
      %3752 = vst.msk [vmem:[#allocation3 + $0x40] sm:$0xf] %vm3735, %v3672
      %3753 = vst.msk [vmem:[#allocation3 + $0x44] sm:$0xf] %vm3735, %v3674
      %3754 = vst.msk [vmem:[#allocation3 + $0x48] sm:$0xf] %vm3735, %v3676
      %3755 = vst.msk [vmem:[#allocation3 + $0x4c] sm:$0xf] %vm3735, %v3678
      %3756 = vst.msk [vmem:[#allocation3 + $0x50] sm:$0xf] %vm3735, %v3680
      %3757 = vst.msk [vmem:[#allocation3 + $0x54] sm:$0xf] %vm3735, %v3682
      %3758 = vst.msk [vmem:[#allocation3 + $0x58] sm:$0xf] %vm3735, %v3684
      %3759 = vst.msk [vmem:[#allocation3 + $0x5c] sm:$0xf] %vm3735, %v3686
      %3760 = vst.msk [vmem:[#allocation3 + $0x60] sm:$0xf] %vm3735, %v3688
      %3761 = vst.msk [vmem:[#allocation3 + $0x64] sm:$0xf] %vm3735, %v3690
      %3762 = vst.msk [vmem:[#allocation3 + $0x68] sm:$0xf] %vm3735, %v3692
      %3763 = vst.msk [vmem:[#allocation3 + $0x6c] sm:$0xf] %vm3735, %v3694
      %3764 = vst.msk [vmem:[#allocation3 + $0x70] sm:$0xf] %vm3735, %v3696
      %3765 = vst.msk [vmem:[#allocation3 + $0x74] sm:$0xf] %vm3735, %v3698
      %3766 = vst.msk [vmem:[#allocation3 + $0x78] sm:$0xf] %vm3735, %v3700
      %3767 = vst.msk [vmem:[#allocation3 + $0x7c] sm:$0xf] %vm3735, %v3702
      %s3768 = scalar_lea.vmem [#allocation2], 24
      %v3769 = vld [vmem:[%s3768] sm:$0xf]
      %v3770 = vld [vmem:[%s3768 + $0x4] sm:$0xf]
      %v3771 = vld [vmem:[%s3768 + $0xc] sm:$0xf]
      %v3772 = vld [vmem:[%s3768 + $0x10] sm:$0xf]
      %v3773 = vld [vmem:[%s3768 + $0x18] sm:$0xf]
      %v3774 = vld [vmem:[%s3768 + $0x1c] sm:$0xf]
      %v3775 = vld [vmem:[%s3768 + $0x24] sm:$0xf]
      %v3776 = vld [vmem:[%s3768 + $0x28] sm:$0xf]
      %v3777 = vld [vmem:[%s3768 + $0x30] sm:$0xf]
      %v3778 = vld [vmem:[%s3768 + $0x34] sm:$0xf]
      %v3779 = vld [vmem:[%s3768 + $0x3c] sm:$0xf]
      %v3780 = vld [vmem:[%s3768 + $0x40] sm:$0xf]
      %v3781 = vld [vmem:[%s3768 + $0x48] sm:$0xf]
      %v3782 = vld [vmem:[%s3768 + $0x4c] sm:$0xf]
      %v3783 = vld [vmem:[%s3768 + $0x54] sm:$0xf]
      %v3784 = vld [vmem:[%s3768 + $0x58] sm:$0xf]
      %v3785 = vld [vmem:[%s3768 + $0x60] sm:$0xf]
      %v3786 = vld [vmem:[%s3768 + $0x64] sm:$0xf]
      %v3787 = vld [vmem:[%s3768 + $0x6c] sm:$0xf]
      %v3788 = vld [vmem:[%s3768 + $0x70] sm:$0xf]
      %v3789 = vld [vmem:[%s3768 + $0x78] sm:$0xf]
      %v3790 = vld [vmem:[%s3768 + $0x7c] sm:$0xf]
      %v3791 = vld [vmem:[%s3768 + $0x84] sm:$0xf]
      %v3792 = vld [vmem:[%s3768 + $0x88] sm:$0xf]
      %v3793 = vld [vmem:[%s3768 + $0x90] sm:$0xf]
      %v3794 = vld [vmem:[%s3768 + $0x94] sm:$0xf]
      %v3795 = vld [vmem:[%s3768 + $0x9c] sm:$0xf]
      %v3796 = vld [vmem:[%s3768 + $0xa0] sm:$0xf]
      %v3797 = vld [vmem:[%s3768 + $0xa8] sm:$0xf]
      %v3798 = vld [vmem:[%s3768 + $0xac] sm:$0xf]
      %v3799 = vld [vmem:[%s3768 + $0xb4] sm:$0xf]
      %v3800 = vld [vmem:[%s3768 + $0xb8] sm:$0xf]
      %3833 = vrot.lane.b32.xlu0 %v3769, 48
      %v3834 = vpop.permute.xlu0 %3833
      %3835 = vrot.lane.b32.xlu0 %v3770, 48
      %v3836 = vpop.permute.xlu0 %3835
      %3837 = vrot.lane.b32.xlu0 %v3771, 48
      %v3838 = vpop.permute.xlu0 %3837
      %3839 = vrot.lane.b32.xlu0 %v3772, 48
      %v3840 = vpop.permute.xlu0 %3839
      %3841 = vrot.lane.b32.xlu0 %v3773, 48
      %v3842 = vpop.permute.xlu0 %3841
      %3843 = vrot.lane.b32.xlu0 %v3774, 48
      %v3844 = vpop.permute.xlu0 %3843
      %3845 = vrot.lane.b32.xlu0 %v3775, 48
      %v3846 = vpop.permute.xlu0 %3845
      %3847 = vrot.lane.b32.xlu0 %v3776, 48
      %v3848 = vpop.permute.xlu0 %3847
      %3849 = vrot.lane.b32.xlu0 %v3777, 48
      %v3850 = vpop.permute.xlu0 %3849
      %3851 = vrot.lane.b32.xlu0 %v3778, 48
      %v3852 = vpop.permute.xlu0 %3851
      %3853 = vrot.lane.b32.xlu0 %v3779, 48
      %v3854 = vpop.permute.xlu0 %3853
      %3855 = vrot.lane.b32.xlu0 %v3780, 48
      %v3856 = vpop.permute.xlu0 %3855
      %3857 = vrot.lane.b32.xlu0 %v3781, 48
      %v3858 = vpop.permute.xlu0 %3857
      %3859 = vrot.lane.b32.xlu0 %v3782, 48
      %v3860 = vpop.permute.xlu0 %3859
      %3861 = vrot.lane.b32.xlu0 %v3783, 48
      %v3862 = vpop.permute.xlu0 %3861
      %3863 = vrot.lane.b32.xlu0 %v3784, 48
      %v3864 = vpop.permute.xlu0 %3863
      %3865 = vrot.lane.b32.xlu0 %v3785, 48
      %v3866 = vpop.permute.xlu0 %3865
      %3867 = vrot.lane.b32.xlu0 %v3786, 48
      %v3868 = vpop.permute.xlu0 %3867
      %3869 = vrot.lane.b32.xlu0 %v3787, 48
      %v3870 = vpop.permute.xlu0 %3869
      %3871 = vrot.lane.b32.xlu0 %v3788, 48
      %v3872 = vpop.permute.xlu0 %3871
      %3873 = vrot.lane.b32.xlu0 %v3789, 48
      %v3874 = vpop.permute.xlu0 %3873
      %3875 = vrot.lane.b32.xlu0 %v3790, 48
      %v3876 = vpop.permute.xlu0 %3875
      %3877 = vrot.lane.b32.xlu0 %v3791, 48
      %v3878 = vpop.permute.xlu0 %3877
      %3879 = vrot.lane.b32.xlu0 %v3792, 48
      %v3880 = vpop.permute.xlu0 %3879
      %3881 = vrot.lane.b32.xlu0 %v3793, 48
      %v3882 = vpop.permute.xlu0 %3881
      %3883 = vrot.lane.b32.xlu0 %v3794, 48
      %v3884 = vpop.permute.xlu0 %3883
      %3885 = vrot.lane.b32.xlu0 %v3795, 48
      %v3886 = vpop.permute.xlu0 %3885
      %3887 = vrot.lane.b32.xlu0 %v3796, 48
      %v3888 = vpop.permute.xlu0 %3887
      %3889 = vrot.lane.b32.xlu0 %v3797, 48
      %v3890 = vpop.permute.xlu0 %3889
      %3891 = vrot.lane.b32.xlu0 %v3798, 48
      %v3892 = vpop.permute.xlu0 %3891
      %3893 = vrot.lane.b32.xlu0 %v3799, 48
      %v3894 = vpop.permute.xlu0 %3893
      %3895 = vrot.lane.b32.xlu0 %v3800, 48
      %v3896 = vpop.permute.xlu0 %3895
      %vm3929 = vcmask 454016
      %3930 = vst.msk [vmem:[#allocation3] sm:$0xf] %vm3929, %v3834
      %3931 = vst.msk [vmem:[#allocation3 + $0x4] sm:$0xf] %vm3929, %v3836
      %3932 = vst.msk [vmem:[#allocation3 + $0x8] sm:$0xf] %vm3929, %v3838
      %3933 = vst.msk [vmem:[#allocation3 + $0xc] sm:$0xf] %vm3929, %v3840
      %3934 = vst.msk [vmem:[#allocation3 + $0x10] sm:$0xf] %vm3929, %v3842
      %3935 = vst.msk [vmem:[#allocation3 + $0x14] sm:$0xf] %vm3929, %v3844
      %3936 = vst.msk [vmem:[#allocation3 + $0x18] sm:$0xf] %vm3929, %v3846
      %3937 = vst.msk [vmem:[#allocation3 + $0x1c] sm:$0xf] %vm3929, %v3848
      %3938 = vst.msk [vmem:[#allocation3 + $0x20] sm:$0xf] %vm3929, %v3850
      %3939 = vst.msk [vmem:[#allocation3 + $0x24] sm:$0xf] %vm3929, %v3852
      %3940 = vst.msk [vmem:[#allocation3 + $0x28] sm:$0xf] %vm3929, %v3854
      %3941 = vst.msk [vmem:[#allocation3 + $0x2c] sm:$0xf] %vm3929, %v3856
      %3942 = vst.msk [vmem:[#allocation3 + $0x30] sm:$0xf] %vm3929, %v3858
      %3943 = vst.msk [vmem:[#allocation3 + $0x34] sm:$0xf] %vm3929, %v3860
      %3944 = vst.msk [vmem:[#allocation3 + $0x38] sm:$0xf] %vm3929, %v3862
      %3945 = vst.msk [vmem:[#allocation3 + $0x3c] sm:$0xf] %vm3929, %v3864
      %3946 = vst.msk [vmem:[#allocation3 + $0x40] sm:$0xf] %vm3929, %v3866
      %3947 = vst.msk [vmem:[#allocation3 + $0x44] sm:$0xf] %vm3929, %v3868
      %3948 = vst.msk [vmem:[#allocation3 + $0x48] sm:$0xf] %vm3929, %v3870
      %3949 = vst.msk [vmem:[#allocation3 + $0x4c] sm:$0xf] %vm3929, %v3872
      %3950 = vst.msk [vmem:[#allocation3 + $0x50] sm:$0xf] %vm3929, %v3874
      %3951 = vst.msk [vmem:[#allocation3 + $0x54] sm:$0xf] %vm3929, %v3876
      %3952 = vst.msk [vmem:[#allocation3 + $0x58] sm:$0xf] %vm3929, %v3878
      %3953 = vst.msk [vmem:[#allocation3 + $0x5c] sm:$0xf] %vm3929, %v3880
      %3954 = vst.msk [vmem:[#allocation3 + $0x60] sm:$0xf] %vm3929, %v3882
      %3955 = vst.msk [vmem:[#allocation3 + $0x64] sm:$0xf] %vm3929, %v3884
      %3956 = vst.msk [vmem:[#allocation3 + $0x68] sm:$0xf] %vm3929, %v3886
      %3957 = vst.msk [vmem:[#allocation3 + $0x6c] sm:$0xf] %vm3929, %v3888
      %3958 = vst.msk [vmem:[#allocation3 + $0x70] sm:$0xf] %vm3929, %v3890
      %3959 = vst.msk [vmem:[#allocation3 + $0x74] sm:$0xf] %vm3929, %v3892
      %3960 = vst.msk [vmem:[#allocation3 + $0x78] sm:$0xf] %vm3929, %v3894
      %3961 = vst.msk [vmem:[#allocation3 + $0x7c] sm:$0xf] %vm3929, %v3896
      %v3962 = vld [vmem:[%s3768] sm:$0xf]
      %v3963 = vld [vmem:[%s3768 + $0x4] sm:$0xf]
      %v3964 = vld [vmem:[%s3768 + $0x8] sm:$0x1]
      %v3965 = vld [vmem:[%s3768 + $0xc] sm:$0xf]
      %v3966 = vld [vmem:[%s3768 + $0x10] sm:$0xf]
      %v3967 = vld [vmem:[%s3768 + $0x14] sm:$0x1]
      %v3968 = vld [vmem:[%s3768 + $0x18] sm:$0xf]
      %v3969 = vld [vmem:[%s3768 + $0x1c] sm:$0xf]
      %v3970 = vld [vmem:[%s3768 + $0x20] sm:$0x1]
      %v3971 = vld [vmem:[%s3768 + $0x24] sm:$0xf]
      %v3972 = vld [vmem:[%s3768 + $0x28] sm:$0xf]
      %v3973 = vld [vmem:[%s3768 + $0x2c] sm:$0x1]
      %v3974 = vld [vmem:[%s3768 + $0x30] sm:$0xf]
      %v3975 = vld [vmem:[%s3768 + $0x34] sm:$0xf]
      %v3976 = vld [vmem:[%s3768 + $0x38] sm:$0x1]
      %v3977 = vld [vmem:[%s3768 + $0x3c] sm:$0xf]
      %v3978 = vld [vmem:[%s3768 + $0x40] sm:$0xf]
      %v3979 = vld [vmem:[%s3768 + $0x44] sm:$0x1]
      %v3980 = vld [vmem:[%s3768 + $0x48] sm:$0xf]
      %v3981 = vld [vmem:[%s3768 + $0x4c] sm:$0xf]
      %v3982 = vld [vmem:[%s3768 + $0x50] sm:$0x1]
      %v3983 = vld [vmem:[%s3768 + $0x54] sm:$0xf]
      %v3984 = vld [vmem:[%s3768 + $0x58] sm:$0xf]
      %v3985 = vld [vmem:[%s3768 + $0x5c] sm:$0x1]
      %v3986 = vld [vmem:[%s3768 + $0x60] sm:$0xf]
      %v3987 = vld [vmem:[%s3768 + $0x64] sm:$0xf]
      %v3988 = vld [vmem:[%s3768 + $0x68] sm:$0x1]
      %v3989 = vld [vmem:[%s3768 + $0x6c] sm:$0xf]
      %v3990 = vld [vmem:[%s3768 + $0x70] sm:$0xf]
      %v3991 = vld [vmem:[%s3768 + $0x74] sm:$0x1]
      %v3992 = vld [vmem:[%s3768 + $0x78] sm:$0xf]
      %v3993 = vld [vmem:[%s3768 + $0x7c] sm:$0xf]
      %v3994 = vld [vmem:[%s3768 + $0x80] sm:$0x1]
      %v3995 = vld [vmem:[%s3768 + $0x84] sm:$0xf]
      %v3996 = vld [vmem:[%s3768 + $0x88] sm:$0xf]
      %v3997 = vld [vmem:[%s3768 + $0x8c] sm:$0x1]
      %v3998 = vld [vmem:[%s3768 + $0x90] sm:$0xf]
      %v3999 = vld [vmem:[%s3768 + $0x94] sm:$0xf]
      %v4000 = vld [vmem:[%s3768 + $0x98] sm:$0x1]
      %v4001 = vld [vmem:[%s3768 + $0x9c] sm:$0xf]
      %v4002 = vld [vmem:[%s3768 + $0xa0] sm:$0xf]
      %v4003 = vld [vmem:[%s3768 + $0xa4] sm:$0x1]
      %v4004 = vld [vmem:[%s3768 + $0xa8] sm:$0xf]
      %v4005 = vld [vmem:[%s3768 + $0xac] sm:$0xf]
      %v4006 = vld [vmem:[%s3768 + $0xb0] sm:$0x1]
      %v4007 = vld [vmem:[%s3768 + $0xb4] sm:$0xf]
      %v4008 = vld [vmem:[%s3768 + $0xb8] sm:$0xf]
      %v4009 = vld [vmem:[%s3768 + $0xbc] sm:$0x1]
      %v4011 = vshrl.u32 %v3962, 16
      %v4013 = vrot.slane %v4011, 4
      %v4014 = vshll.u32 %v3962, 16
      %v4016 = vrot.slane %v4014, 5
      %v4017 = vor.u32 %v4013, %v4016
      %v4018 = vrot.slane %v4017, 4
      %v4020 = vshll.u32 %v3963, 16
      %v4022 = vrot.slane %v4020, 5
      %v4023 = vsel %vm1823, %v4018, %v4022
      %v4024 = vshrl.u32 %v3963, 16
      %v4026 = vrot.slane %v4024, 4
      %v4027 = vor.u32 %v4026, %v4022
      %v4028 = vrot.slane %v4027, 4
      %v4030 = vshll.u32 %v3964, 16
      %v4032 = vrot.slane %v4030, 5
      %v4033 = vsel %vm1823, %v4028, %v4032
      %v4035 = vshrl.u32 %v3965, 16
      %v4037 = vrot.slane %v4035, 4
      %v4038 = vshll.u32 %v3965, 16
      %v4040 = vrot.slane %v4038, 5
      %v4041 = vor.u32 %v4037, %v4040
      %v4042 = vrot.slane %v4041, 4
      %v4044 = vshll.u32 %v3966, 16
      %v4046 = vrot.slane %v4044, 5
      %v4047 = vsel %vm1823, %v4042, %v4046
      %v4048 = vshrl.u32 %v3966, 16
      %v4050 = vrot.slane %v4048, 4
      %v4051 = vor.u32 %v4050, %v4046
      %v4052 = vrot.slane %v4051, 4
      %v4054 = vshll.u32 %v3967, 16
      %v4056 = vrot.slane %v4054, 5
      %v4057 = vsel %vm1823, %v4052, %v4056
      %v4059 = vshrl.u32 %v3968, 16
      %v4061 = vrot.slane %v4059, 4
      %v4062 = vshll.u32 %v3968, 16
      %v4064 = vrot.slane %v4062, 5
      %v4065 = vor.u32 %v4061, %v4064
      %v4066 = vrot.slane %v4065, 4
      %v4068 = vshll.u32 %v3969, 16
      %v4070 = vrot.slane %v4068, 5
      %v4071 = vsel %vm1823, %v4066, %v4070
      %v4072 = vshrl.u32 %v3969, 16
      %v4074 = vrot.slane %v4072, 4
      %v4075 = vor.u32 %v4074, %v4070
      %v4076 = vrot.slane %v4075, 4
      %v4078 = vshll.u32 %v3970, 16
      %v4080 = vrot.slane %v4078, 5
      %v4081 = vsel %vm1823, %v4076, %v4080
      %v4083 = vshrl.u32 %v3971, 16
      %v4085 = vrot.slane %v4083, 4
      %v4086 = vshll.u32 %v3971, 16
      %v4088 = vrot.slane %v4086, 5
      %v4089 = vor.u32 %v4085, %v4088
      %v4090 = vrot.slane %v4089, 4
      %v4092 = vshll.u32 %v3972, 16
      %v4094 = vrot.slane %v4092, 5
      %v4095 = vsel %vm1823, %v4090, %v4094
      %v4096 = vshrl.u32 %v3972, 16
      %v4098 = vrot.slane %v4096, 4
      %v4099 = vor.u32 %v4098, %v4094
      %v4100 = vrot.slane %v4099, 4
      %v4102 = vshll.u32 %v3973, 16
      %v4104 = vrot.slane %v4102, 5
      %v4105 = vsel %vm1823, %v4100, %v4104
      %v4107 = vshrl.u32 %v3974, 16
      %v4109 = vrot.slane %v4107, 4
      %v4110 = vshll.u32 %v3974, 16
      %v4112 = vrot.slane %v4110, 5
      %v4113 = vor.u32 %v4109, %v4112
      %v4114 = vrot.slane %v4113, 4
      %v4116 = vshll.u32 %v3975, 16
      %v4118 = vrot.slane %v4116, 5
      %v4119 = vsel %vm1823, %v4114, %v4118
      %v4120 = vshrl.u32 %v3975, 16
      %v4122 = vrot.slane %v4120, 4
      %v4123 = vor.u32 %v4122, %v4118
      %v4124 = vrot.slane %v4123, 4
      %v4126 = vshll.u32 %v3976, 16
      %v4128 = vrot.slane %v4126, 5
      %v4129 = vsel %vm1823, %v4124, %v4128
      %v4131 = vshrl.u32 %v3977, 16
      %v4133 = vrot.slane %v4131, 4
      %v4134 = vshll.u32 %v3977, 16
      %v4136 = vrot.slane %v4134, 5
      %v4137 = vor.u32 %v4133, %v4136
      %v4138 = vrot.slane %v4137, 4
      %v4140 = vshll.u32 %v3978, 16
      %v4142 = vrot.slane %v4140, 5
      %v4143 = vsel %vm1823, %v4138, %v4142
      %v4144 = vshrl.u32 %v3978, 16
      %v4146 = vrot.slane %v4144, 4
      %v4147 = vor.u32 %v4146, %v4142
      %v4148 = vrot.slane %v4147, 4
      %v4150 = vshll.u32 %v3979, 16
      %v4152 = vrot.slane %v4150, 5
      %v4153 = vsel %vm1823, %v4148, %v4152
      %v4155 = vshrl.u32 %v3980, 16
      %v4157 = vrot.slane %v4155, 4
      %v4158 = vshll.u32 %v3980, 16
      %v4160 = vrot.slane %v4158, 5
      %v4161 = vor.u32 %v4157, %v4160
      %v4162 = vrot.slane %v4161, 4
      %v4164 = vshll.u32 %v3981, 16
      %v4166 = vrot.slane %v4164, 5
      %v4167 = vsel %vm1823, %v4162, %v4166
      %v4168 = vshrl.u32 %v3981, 16
      %v4170 = vrot.slane %v4168, 4
      %v4171 = vor.u32 %v4170, %v4166
      %v4172 = vrot.slane %v4171, 4
      %v4174 = vshll.u32 %v3982, 16
      %v4176 = vrot.slane %v4174, 5
      %v4177 = vsel %vm1823, %v4172, %v4176
      %v4179 = vshrl.u32 %v3983, 16
      %v4181 = vrot.slane %v4179, 4
      %v4182 = vshll.u32 %v3983, 16
      %v4184 = vrot.slane %v4182, 5
      %v4185 = vor.u32 %v4181, %v4184
      %v4186 = vrot.slane %v4185, 4
      %v4188 = vshll.u32 %v3984, 16
      %v4190 = vrot.slane %v4188, 5
      %v4191 = vsel %vm1823, %v4186, %v4190
      %v4192 = vshrl.u32 %v3984, 16
      %v4194 = vrot.slane %v4192, 4
      %v4195 = vor.u32 %v4194, %v4190
      %v4196 = vrot.slane %v4195, 4
      %v4198 = vshll.u32 %v3985, 16
      %v4200 = vrot.slane %v4198, 5
      %v4201 = vsel %vm1823, %v4196, %v4200
      %v4203 = vshrl.u32 %v3986, 16
      %v4205 = vrot.slane %v4203, 4
      %v4206 = vshll.u32 %v3986, 16
      %v4208 = vrot.slane %v4206, 5
      %v4209 = vor.u32 %v4205, %v4208
      %v4210 = vrot.slane %v4209, 4
      %v4212 = vshll.u32 %v3987, 16
      %v4214 = vrot.slane %v4212, 5
      %v4215 = vsel %vm1823, %v4210, %v4214
      %v4216 = vshrl.u32 %v3987, 16
      %v4218 = vrot.slane %v4216, 4
      %v4219 = vor.u32 %v4218, %v4214
      %v4220 = vrot.slane %v4219, 4
      %v4222 = vshll.u32 %v3988, 16
      %v4224 = vrot.slane %v4222, 5
      %v4225 = vsel %vm1823, %v4220, %v4224
      %v4227 = vshrl.u32 %v3989, 16
      %v4229 = vrot.slane %v4227, 4
      %v4230 = vshll.u32 %v3989, 16
      %v4232 = vrot.slane %v4230, 5
      %v4233 = vor.u32 %v4229, %v4232
      %v4234 = vrot.slane %v4233, 4
      %v4236 = vshll.u32 %v3990, 16
      %v4238 = vrot.slane %v4236, 5
      %v4239 = vsel %vm1823, %v4234, %v4238
      %v4240 = vshrl.u32 %v3990, 16
      %v4242 = vrot.slane %v4240, 4
      %v4243 = vor.u32 %v4242, %v4238
      %v4244 = vrot.slane %v4243, 4
      %v4246 = vshll.u32 %v3991, 16
      %v4248 = vrot.slane %v4246, 5
      %v4249 = vsel %vm1823, %v4244, %v4248
      %v4251 = vshrl.u32 %v3992, 16
      %v4253 = vrot.slane %v4251, 4
      %v4254 = vshll.u32 %v3992, 16
      %v4256 = vrot.slane %v4254, 5
      %v4257 = vor.u32 %v4253, %v4256
      %v4258 = vrot.slane %v4257, 4
      %v4260 = vshll.u32 %v3993, 16
      %v4262 = vrot.slane %v4260, 5
      %v4263 = vsel %vm1823, %v4258, %v4262
      %v4264 = vshrl.u32 %v3993, 16
      %v4266 = vrot.slane %v4264, 4
      %v4267 = vor.u32 %v4266, %v4262
      %v4268 = vrot.slane %v4267, 4
      %v4270 = vshll.u32 %v3994, 16
      %v4272 = vrot.slane %v4270, 5
      %v4273 = vsel %vm1823, %v4268, %v4272
      %v4275 = vshrl.u32 %v3995, 16
      %v4277 = vrot.slane %v4275, 4
      %v4278 = vshll.u32 %v3995, 16
      %v4280 = vrot.slane %v4278, 5
      %v4281 = vor.u32 %v4277, %v4280
      %v4282 = vrot.slane %v4281, 4
      %v4284 = vshll.u32 %v3996, 16
      %v4286 = vrot.slane %v4284, 5
      %v4287 = vsel %vm1823, %v4282, %v4286
      %v4288 = vshrl.u32 %v3996, 16
      %v4290 = vrot.slane %v4288, 4
      %v4291 = vor.u32 %v4290, %v4286
      %v4292 = vrot.slane %v4291, 4
      %v4294 = vshll.u32 %v3997, 16
      %v4296 = vrot.slane %v4294, 5
      %v4297 = vsel %vm1823, %v4292, %v4296
      %v4299 = vshrl.u32 %v3998, 16
      %v4301 = vrot.slane %v4299, 4
      %v4302 = vshll.u32 %v3998, 16
      %v4304 = vrot.slane %v4302, 5
      %v4305 = vor.u32 %v4301, %v4304
      %v4306 = vrot.slane %v4305, 4
      %v4308 = vshll.u32 %v3999, 16
      %v4310 = vrot.slane %v4308, 5
      %v4311 = vsel %vm1823, %v4306, %v4310
      %v4312 = vshrl.u32 %v3999, 16
      %v4314 = vrot.slane %v4312, 4
      %v4315 = vor.u32 %v4314, %v4310
      %v4316 = vrot.slane %v4315, 4
      %v4318 = vshll.u32 %v4000, 16
      %v4320 = vrot.slane %v4318, 5
      %v4321 = vsel %vm1823, %v4316, %v4320
      %v4323 = vshrl.u32 %v4001, 16
      %v4325 = vrot.slane %v4323, 4
      %v4326 = vshll.u32 %v4001, 16
      %v4328 = vrot.slane %v4326, 5
      %v4329 = vor.u32 %v4325, %v4328
      %v4330 = vrot.slane %v4329, 4
      %v4332 = vshll.u32 %v4002, 16
      %v4334 = vrot.slane %v4332, 5
      %v4335 = vsel %vm1823, %v4330, %v4334
      %v4336 = vshrl.u32 %v4002, 16
      %v4338 = vrot.slane %v4336, 4
      %v4339 = vor.u32 %v4338, %v4334
      %v4340 = vrot.slane %v4339, 4
      %v4342 = vshll.u32 %v4003, 16
      %v4344 = vrot.slane %v4342, 5
      %v4345 = vsel %vm1823, %v4340, %v4344
      %v4347 = vshrl.u32 %v4004, 16
      %v4349 = vrot.slane %v4347, 4
      %v4350 = vshll.u32 %v4004, 16
      %v4352 = vrot.slane %v4350, 5
      %v4353 = vor.u32 %v4349, %v4352
      %v4354 = vrot.slane %v4353, 4
      %v4356 = vshll.u32 %v4005, 16
      %v4358 = vrot.slane %v4356, 5
      %v4359 = vsel %vm1823, %v4354, %v4358
      %v4360 = vshrl.u32 %v4005, 16
      %v4362 = vrot.slane %v4360, 4
      %v4363 = vor.u32 %v4362, %v4358
      %v4364 = vrot.slane %v4363, 4
      %v4366 = vshll.u32 %v4006, 16
      %v4368 = vrot.slane %v4366, 5
      %v4369 = vsel %vm1823, %v4364, %v4368
      %v4371 = vshrl.u32 %v4007, 16
      %v4373 = vrot.slane %v4371, 4
      %v4374 = vshll.u32 %v4007, 16
      %v4376 = vrot.slane %v4374, 5
      %v4377 = vor.u32 %v4373, %v4376
      %v4378 = vrot.slane %v4377, 4
      %v4380 = vshll.u32 %v4008, 16
      %v4382 = vrot.slane %v4380, 5
      %v4383 = vsel %vm1823, %v4378, %v4382
      %v4384 = vshrl.u32 %v4008, 16
      %v4386 = vrot.slane %v4384, 4
      %v4387 = vor.u32 %v4386, %v4382
      %v4388 = vrot.slane %v4387, 4
      %v4390 = vshll.u32 %v4009, 16
      %v4392 = vrot.slane %v4390, 5
      %v4393 = vsel %vm1823, %v4388, %v4392
      %4394 = vrot.lane.b32.xlu0 %v4023, 56
      %v4395 = vpop.permute.xlu0 %4394
      %4396 = vrot.lane.b32.xlu0 %v4033, 56
      %v4397 = vpop.permute.xlu0 %4396
      %4398 = vrot.lane.b32.xlu0 %v4047, 56
      %v4399 = vpop.permute.xlu0 %4398
      %4400 = vrot.lane.b32.xlu0 %v4057, 56
      %v4401 = vpop.permute.xlu0 %4400
      %4402 = vrot.lane.b32.xlu0 %v4071, 56
      %v4403 = vpop.permute.xlu0 %4402
      %4404 = vrot.lane.b32.xlu0 %v4081, 56
      %v4405 = vpop.permute.xlu0 %4404
      %4406 = vrot.lane.b32.xlu0 %v4095, 56
      %v4407 = vpop.permute.xlu0 %4406
      %4408 = vrot.lane.b32.xlu0 %v4105, 56
      %v4409 = vpop.permute.xlu0 %4408
      %4410 = vrot.lane.b32.xlu0 %v4119, 56
      %v4411 = vpop.permute.xlu0 %4410
      %4412 = vrot.lane.b32.xlu0 %v4129, 56
      %v4413 = vpop.permute.xlu0 %4412
      %4414 = vrot.lane.b32.xlu0 %v4143, 56
      %v4415 = vpop.permute.xlu0 %4414
      %4416 = vrot.lane.b32.xlu0 %v4153, 56
      %v4417 = vpop.permute.xlu0 %4416
      %4418 = vrot.lane.b32.xlu0 %v4167, 56
      %v4419 = vpop.permute.xlu0 %4418
      %4420 = vrot.lane.b32.xlu0 %v4177, 56
      %v4421 = vpop.permute.xlu0 %4420
      %4422 = vrot.lane.b32.xlu0 %v4191, 56
      %v4423 = vpop.permute.xlu0 %4422
      %4424 = vrot.lane.b32.xlu0 %v4201, 56
      %v4425 = vpop.permute.xlu0 %4424
      %4426 = vrot.lane.b32.xlu0 %v4215, 56
      %v4427 = vpop.permute.xlu0 %4426
      %4428 = vrot.lane.b32.xlu0 %v4225, 56
      %v4429 = vpop.permute.xlu0 %4428
      %4430 = vrot.lane.b32.xlu0 %v4239, 56
      %v4431 = vpop.permute.xlu0 %4430
      %4432 = vrot.lane.b32.xlu0 %v4249, 56
      %v4433 = vpop.permute.xlu0 %4432
      %4434 = vrot.lane.b32.xlu0 %v4263, 56
      %v4435 = vpop.permute.xlu0 %4434
      %4436 = vrot.lane.b32.xlu0 %v4273, 56
      %v4437 = vpop.permute.xlu0 %4436
      %4438 = vrot.lane.b32.xlu0 %v4287, 56
      %v4439 = vpop.permute.xlu0 %4438
      %4440 = vrot.lane.b32.xlu0 %v4297, 56
      %v4441 = vpop.permute.xlu0 %4440
      %4442 = vrot.lane.b32.xlu0 %v4311, 56
      %v4443 = vpop.permute.xlu0 %4442
      %4444 = vrot.lane.b32.xlu0 %v4321, 56
      %v4445 = vpop.permute.xlu0 %4444
      %4446 = vrot.lane.b32.xlu0 %v4335, 56
      %v4447 = vpop.permute.xlu0 %4446
      %4448 = vrot.lane.b32.xlu0 %v4345, 56
      %v4449 = vpop.permute.xlu0 %4448
      %4450 = vrot.lane.b32.xlu0 %v4359, 56
      %v4451 = vpop.permute.xlu0 %4450
      %4452 = vrot.lane.b32.xlu0 %v4369, 56
      %v4453 = vpop.permute.xlu0 %4452
      %4454 = vrot.lane.b32.xlu0 %v4383, 56
      %v4455 = vpop.permute.xlu0 %4454
      %4456 = vrot.lane.b32.xlu0 %v4393, 56
      %v4457 = vpop.permute.xlu0 %4456
      %vm4490 = vcmask 519616
      %4491 = vst.msk [vmem:[#allocation3] sm:$0xf] %vm4490, %v4395
      %4492 = vst.msk [vmem:[#allocation3 + $0x4] sm:$0xf] %vm4490, %v4397
      %4493 = vst.msk [vmem:[#allocation3 + $0x8] sm:$0xf] %vm4490, %v4399
      %4494 = vst.msk [vmem:[#allocation3 + $0xc] sm:$0xf] %vm4490, %v4401
      %4495 = vst.msk [vmem:[#allocation3 + $0x10] sm:$0xf] %vm4490, %v4403
      %4496 = vst.msk [vmem:[#allocation3 + $0x14] sm:$0xf] %vm4490, %v4405
      %4497 = vst.msk [vmem:[#allocation3 + $0x18] sm:$0xf] %vm4490, %v4407
      %4498 = vst.msk [vmem:[#allocation3 + $0x1c] sm:$0xf] %vm4490, %v4409
      %4499 = vst.msk [vmem:[#allocation3 + $0x20] sm:$0xf] %vm4490, %v4411
      %4500 = vst.msk [vmem:[#allocation3 + $0x24] sm:$0xf] %vm4490, %v4413
      %4501 = vst.msk [vmem:[#allocation3 + $0x28] sm:$0xf] %vm4490, %v4415
      %4502 = vst.msk [vmem:[#allocation3 + $0x2c] sm:$0xf] %vm4490, %v4417
      %4503 = vst.msk [vmem:[#allocation3 + $0x30] sm:$0xf] %vm4490, %v4419
      %4504 = vst.msk [vmem:[#allocation3 + $0x34] sm:$0xf] %vm4490, %v4421
      %4505 = vst.msk [vmem:[#allocation3 + $0x38] sm:$0xf] %vm4490, %v4423
      %4506 = vst.msk [vmem:[#allocation3 + $0x3c] sm:$0xf] %vm4490, %v4425
      %4507 = vst.msk [vmem:[#allocation3 + $0x40] sm:$0xf] %vm4490, %v4427
      %4508 = vst.msk [vmem:[#allocation3 + $0x44] sm:$0xf] %vm4490, %v4429
      %4509 = vst.msk [vmem:[#allocation3 + $0x48] sm:$0xf] %vm4490, %v4431
      %4510 = vst.msk [vmem:[#allocation3 + $0x4c] sm:$0xf] %vm4490, %v4433
      %4511 = vst.msk [vmem:[#allocation3 + $0x50] sm:$0xf] %vm4490, %v4435
      %4512 = vst.msk [vmem:[#allocation3 + $0x54] sm:$0xf] %vm4490, %v4437
      %4513 = vst.msk [vmem:[#allocation3 + $0x58] sm:$0xf] %vm4490, %v4439
      %4514 = vst.msk [vmem:[#allocation3 + $0x5c] sm:$0xf] %vm4490, %v4441
      %4515 = vst.msk [vmem:[#allocation3 + $0x60] sm:$0xf] %vm4490, %v4443
      %4516 = vst.msk [vmem:[#allocation3 + $0x64] sm:$0xf] %vm4490, %v4445
      %4517 = vst.msk [vmem:[#allocation3 + $0x68] sm:$0xf] %vm4490, %v4447
      %4518 = vst.msk [vmem:[#allocation3 + $0x6c] sm:$0xf] %vm4490, %v4449
      %4519 = vst.msk [vmem:[#allocation3 + $0x70] sm:$0xf] %vm4490, %v4451
      %4520 = vst.msk [vmem:[#allocation3 + $0x74] sm:$0xf] %vm4490, %v4453
      %4521 = vst.msk [vmem:[#allocation3 + $0x78] sm:$0xf] %vm4490, %v4455
      %4522 = vst.msk [vmem:[#allocation3 + $0x7c] sm:$0xf] %vm4490, %v4457
      %v4523 = vld [vmem:[%s3768] sm:$0xe]
      %v4524 = vld [vmem:[%s3768 + $0x4] sm:$0xf]
      %v4525 = vld [vmem:[%s3768 + $0x8] sm:$0x1]
      %v4526 = vld [vmem:[%s3768 + $0xc] sm:$0xe]
      %v4527 = vld [vmem:[%s3768 + $0x10] sm:$0xf]
      %v4528 = vld [vmem:[%s3768 + $0x14] sm:$0x1]
      %v4529 = vld [vmem:[%s3768 + $0x18] sm:$0xe]
      %v4530 = vld [vmem:[%s3768 + $0x1c] sm:$0xf]
      %v4531 = vld [vmem:[%s3768 + $0x20] sm:$0x1]
      %v4532 = vld [vmem:[%s3768 + $0x24] sm:$0xe]
      %v4533 = vld [vmem:[%s3768 + $0x28] sm:$0xf]
      %v4534 = vld [vmem:[%s3768 + $0x2c] sm:$0x1]
      %v4535 = vld [vmem:[%s3768 + $0x30] sm:$0xe]
      %v4536 = vld [vmem:[%s3768 + $0x34] sm:$0xf]
      %v4537 = vld [vmem:[%s3768 + $0x38] sm:$0x1]
      %v4538 = vld [vmem:[%s3768 + $0x3c] sm:$0xe]
      %v4539 = vld [vmem:[%s3768 + $0x40] sm:$0xf]
      %v4540 = vld [vmem:[%s3768 + $0x44] sm:$0x1]
      %v4541 = vld [vmem:[%s3768 + $0x48] sm:$0xe]
      %v4542 = vld [vmem:[%s3768 + $0x4c] sm:$0xf]
      %v4543 = vld [vmem:[%s3768 + $0x50] sm:$0x1]
      %v4544 = vld [vmem:[%s3768 + $0x54] sm:$0xe]
      %v4545 = vld [vmem:[%s3768 + $0x58] sm:$0xf]
      %v4546 = vld [vmem:[%s3768 + $0x5c] sm:$0x1]
      %v4547 = vld [vmem:[%s3768 + $0x60] sm:$0xe]
      %v4548 = vld [vmem:[%s3768 + $0x64] sm:$0xf]
      %v4549 = vld [vmem:[%s3768 + $0x68] sm:$0x1]
      %v4550 = vld [vmem:[%s3768 + $0x6c] sm:$0xe]
      %v4551 = vld [vmem:[%s3768 + $0x70] sm:$0xf]
      %v4552 = vld [vmem:[%s3768 + $0x74] sm:$0x1]
      %v4553 = vld [vmem:[%s3768 + $0x78] sm:$0xe]
      %v4554 = vld [vmem:[%s3768 + $0x7c] sm:$0xf]
      %v4555 = vld [vmem:[%s3768 + $0x80] sm:$0x1]
      %v4556 = vld [vmem:[%s3768 + $0x84] sm:$0xe]
      %v4557 = vld [vmem:[%s3768 + $0x88] sm:$0xf]
      %v4558 = vld [vmem:[%s3768 + $0x8c] sm:$0x1]
      %v4559 = vld [vmem:[%s3768 + $0x90] sm:$0xe]
      %v4560 = vld [vmem:[%s3768 + $0x94] sm:$0xf]
      %v4561 = vld [vmem:[%s3768 + $0x98] sm:$0x1]
      %v4562 = vld [vmem:[%s3768 + $0x9c] sm:$0xe]
      %v4563 = vld [vmem:[%s3768 + $0xa0] sm:$0xf]
      %v4564 = vld [vmem:[%s3768 + $0xa4] sm:$0x1]
      %v4565 = vld [vmem:[%s3768 + $0xa8] sm:$0xe]
      %v4566 = vld [vmem:[%s3768 + $0xac] sm:$0xf]
      %v4567 = vld [vmem:[%s3768 + $0xb0] sm:$0x1]
      %v4568 = vld [vmem:[%s3768 + $0xb4] sm:$0xe]
      %v4569 = vld [vmem:[%s3768 + $0xb8] sm:$0xf]
      %v4570 = vld [vmem:[%s3768 + $0xbc] sm:$0x1]
      %v4619 = vrot.slane %v4523, 5
      %v4620 = vrot.slane %v4619, 4
      %v4621 = vrot.slane %v4524, 5
      %v4622 = vsel %vm2435, %v4620, %v4621
      %v4623 = vrot.slane %v4621, 4
      %v4624 = vrot.slane %v4525, 5
      %v4625 = vsel %vm2435, %v4623, %v4624
      %v4626 = vrot.slane %v4526, 5
      %v4627 = vrot.slane %v4626, 4
      %v4628 = vrot.slane %v4527, 5
      %v4629 = vsel %vm2435, %v4627, %v4628
      %v4630 = vrot.slane %v4628, 4
      %v4631 = vrot.slane %v4528, 5
      %v4632 = vsel %vm2435, %v4630, %v4631
      %v4633 = vrot.slane %v4529, 5
      %v4634 = vrot.slane %v4633, 4
      %v4635 = vrot.slane %v4530, 5
      %v4636 = vsel %vm2435, %v4634, %v4635
      %v4637 = vrot.slane %v4635, 4
      %v4638 = vrot.slane %v4531, 5
      %v4639 = vsel %vm2435, %v4637, %v4638
      %v4640 = vrot.slane %v4532, 5
      %v4641 = vrot.slane %v4640, 4
      %v4642 = vrot.slane %v4533, 5
      %v4643 = vsel %vm2435, %v4641, %v4642
      %v4644 = vrot.slane %v4642, 4
      %v4645 = vrot.slane %v4534, 5
      %v4646 = vsel %vm2435, %v4644, %v4645
      %v4647 = vrot.slane %v4535, 5
      %v4648 = vrot.slane %v4647, 4
      %v4649 = vrot.slane %v4536, 5
      %v4650 = vsel %vm2435, %v4648, %v4649
      %v4651 = vrot.slane %v4649, 4
      %v4652 = vrot.slane %v4537, 5
      %v4653 = vsel %vm2435, %v4651, %v4652
      %v4654 = vrot.slane %v4538, 5
      %v4655 = vrot.slane %v4654, 4
      %v4656 = vrot.slane %v4539, 5
      %v4657 = vsel %vm2435, %v4655, %v4656
      %v4658 = vrot.slane %v4656, 4
      %v4659 = vrot.slane %v4540, 5
      %v4660 = vsel %vm2435, %v4658, %v4659
      %v4661 = vrot.slane %v4541, 5
      %v4662 = vrot.slane %v4661, 4
      %v4663 = vrot.slane %v4542, 5
      %v4664 = vsel %vm2435, %v4662, %v4663
      %v4665 = vrot.slane %v4663, 4
      %v4666 = vrot.slane %v4543, 5
      %v4667 = vsel %vm2435, %v4665, %v4666
      %v4668 = vrot.slane %v4544, 5
      %v4669 = vrot.slane %v4668, 4
      %v4670 = vrot.slane %v4545, 5
      %v4671 = vsel %vm2435, %v4669, %v4670
      %v4672 = vrot.slane %v4670, 4
      %v4673 = vrot.slane %v4546, 5
      %v4674 = vsel %vm2435, %v4672, %v4673
      %v4675 = vrot.slane %v4547, 5
      %v4676 = vrot.slane %v4675, 4
      %v4677 = vrot.slane %v4548, 5
      %v4678 = vsel %vm2435, %v4676, %v4677
      %v4679 = vrot.slane %v4677, 4
      %v4680 = vrot.slane %v4549, 5
      %v4681 = vsel %vm2435, %v4679, %v4680
      %v4682 = vrot.slane %v4550, 5
      %v4683 = vrot.slane %v4682, 4
      %v4684 = vrot.slane %v4551, 5
      %v4685 = vsel %vm2435, %v4683, %v4684
      %v4686 = vrot.slane %v4684, 4
      %v4687 = vrot.slane %v4552, 5
      %v4688 = vsel %vm2435, %v4686, %v4687
      %v4689 = vrot.slane %v4553, 5
      %v4690 = vrot.slane %v4689, 4
      %v4691 = vrot.slane %v4554, 5
      %v4692 = vsel %vm2435, %v4690, %v4691
      %v4693 = vrot.slane %v4691, 4
      %v4694 = vrot.slane %v4555, 5
      %v4695 = vsel %vm2435, %v4693, %v4694
      %v4696 = vrot.slane %v4556, 5
      %v4697 = vrot.slane %v4696, 4
      %v4698 = vrot.slane %v4557, 5
      %v4699 = vsel %vm2435, %v4697, %v4698
      %v4700 = vrot.slane %v4698, 4
      %v4701 = vrot.slane %v4558, 5
      %v4702 = vsel %vm2435, %v4700, %v4701
      %v4703 = vrot.slane %v4559, 5
      %v4704 = vrot.slane %v4703, 4
      %v4705 = vrot.slane %v4560, 5
      %v4706 = vsel %vm2435, %v4704, %v4705
      %v4707 = vrot.slane %v4705, 4
      %v4708 = vrot.slane %v4561, 5
      %v4709 = vsel %vm2435, %v4707, %v4708
      %v4710 = vrot.slane %v4562, 5
      %v4711 = vrot.slane %v4710, 4
      %v4712 = vrot.slane %v4563, 5
      %v4713 = vsel %vm2435, %v4711, %v4712
      %v4714 = vrot.slane %v4712, 4
      %v4715 = vrot.slane %v4564, 5
      %v4716 = vsel %vm2435, %v4714, %v4715
      %v4717 = vrot.slane %v4565, 5
      %v4718 = vrot.slane %v4717, 4
      %v4719 = vrot.slane %v4566, 5
      %v4720 = vsel %vm2435, %v4718, %v4719
      %v4721 = vrot.slane %v4719, 4
      %v4722 = vrot.slane %v4567, 5
      %v4723 = vsel %vm2435, %v4721, %v4722
      %v4724 = vrot.slane %v4568, 5
      %v4725 = vrot.slane %v4724, 4
      %v4726 = vrot.slane %v4569, 5
      %v4727 = vsel %vm2435, %v4725, %v4726
      %v4728 = vrot.slane %v4726, 4
      %v4729 = vrot.slane %v4570, 5
      %v4730 = vsel %vm2435, %v4728, %v4729
      %4731 = vrot.lane.b32.xlu0 %v4622, 64
      %v4732 = vpop.permute.xlu0 %4731
      %4733 = vrot.lane.b32.xlu0 %v4625, 64
      %v4734 = vpop.permute.xlu0 %4733
      %4735 = vrot.lane.b32.xlu0 %v4629, 64
      %v4736 = vpop.permute.xlu0 %4735
      %4737 = vrot.lane.b32.xlu0 %v4632, 64
      %v4738 = vpop.permute.xlu0 %4737
      %4739 = vrot.lane.b32.xlu0 %v4636, 64
      %v4740 = vpop.permute.xlu0 %4739
      %4741 = vrot.lane.b32.xlu0 %v4639, 64
      %v4742 = vpop.permute.xlu0 %4741
      %4743 = vrot.lane.b32.xlu0 %v4643, 64
      %v4744 = vpop.permute.xlu0 %4743
      %4745 = vrot.lane.b32.xlu0 %v4646, 64
      %v4746 = vpop.permute.xlu0 %4745
      %4747 = vrot.lane.b32.xlu0 %v4650, 64
      %v4748 = vpop.permute.xlu0 %4747
      %4749 = vrot.lane.b32.xlu0 %v4653, 64
      %v4750 = vpop.permute.xlu0 %4749
      %4751 = vrot.lane.b32.xlu0 %v4657, 64
      %v4752 = vpop.permute.xlu0 %4751
      %4753 = vrot.lane.b32.xlu0 %v4660, 64
      %v4754 = vpop.permute.xlu0 %4753
      %4755 = vrot.lane.b32.xlu0 %v4664, 64
      %v4756 = vpop.permute.xlu0 %4755
      %4757 = vrot.lane.b32.xlu0 %v4667, 64
      %v4758 = vpop.permute.xlu0 %4757
      %4759 = vrot.lane.b32.xlu0 %v4671, 64
      %v4760 = vpop.permute.xlu0 %4759
      %4761 = vrot.lane.b32.xlu0 %v4674, 64
      %v4762 = vpop.permute.xlu0 %4761
      %4763 = vrot.lane.b32.xlu0 %v4678, 64
      %v4764 = vpop.permute.xlu0 %4763
      %4765 = vrot.lane.b32.xlu0 %v4681, 64
      %v4766 = vpop.permute.xlu0 %4765
      %4767 = vrot.lane.b32.xlu0 %v4685, 64
      %v4768 = vpop.permute.xlu0 %4767
      %4769 = vrot.lane.b32.xlu0 %v4688, 64
      %v4770 = vpop.permute.xlu0 %4769
      %4771 = vrot.lane.b32.xlu0 %v4692, 64
      %v4772 = vpop.permute.xlu0 %4771
      %4773 = vrot.lane.b32.xlu0 %v4695, 64
      %v4774 = vpop.permute.xlu0 %4773
      %4775 = vrot.lane.b32.xlu0 %v4699, 64
      %v4776 = vpop.permute.xlu0 %4775
      %4777 = vrot.lane.b32.xlu0 %v4702, 64
      %v4778 = vpop.permute.xlu0 %4777
      %4779 = vrot.lane.b32.xlu0 %v4706, 64
      %v4780 = vpop.permute.xlu0 %4779
      %4781 = vrot.lane.b32.xlu0 %v4709, 64
      %v4782 = vpop.permute.xlu0 %4781
      %4783 = vrot.lane.b32.xlu0 %v4713, 64
      %v4784 = vpop.permute.xlu0 %4783
      %4785 = vrot.lane.b32.xlu0 %v4716, 64
      %v4786 = vpop.permute.xlu0 %4785
      %4787 = vrot.lane.b32.xlu0 %v4720, 64
      %v4788 = vpop.permute.xlu0 %4787
      %4789 = vrot.lane.b32.xlu0 %v4723, 64
      %v4790 = vpop.permute.xlu0 %4789
      %4791 = vrot.lane.b32.xlu0 %v4727, 64
      %v4792 = vpop.permute.xlu0 %4791
      %4793 = vrot.lane.b32.xlu0 %v4730, 64
      %v4794 = vpop.permute.xlu0 %4793
      %vm4827 = vcmask 585216
      %4828 = vst.msk [vmem:[#allocation3] sm:$0xf] %vm4827, %v4732
      %4829 = vst.msk [vmem:[#allocation3 + $0x4] sm:$0xf] %vm4827, %v4734
      %4830 = vst.msk [vmem:[#allocation3 + $0x8] sm:$0xf] %vm4827, %v4736
      %4831 = vst.msk [vmem:[#allocation3 + $0xc] sm:$0xf] %vm4827, %v4738
      %4832 = vst.msk [vmem:[#allocation3 + $0x10] sm:$0xf] %vm4827, %v4740
      %4833 = vst.msk [vmem:[#allocation3 + $0x14] sm:$0xf] %vm4827, %v4742
      %4834 = vst.msk [vmem:[#allocation3 + $0x18] sm:$0xf] %vm4827, %v4744
      %4835 = vst.msk [vmem:[#allocation3 + $0x1c] sm:$0xf] %vm4827, %v4746
      %4836 = vst.msk [vmem:[#allocation3 + $0x20] sm:$0xf] %vm4827, %v4748
      %4837 = vst.msk [vmem:[#allocation3 + $0x24] sm:$0xf] %vm4827, %v4750
      %4838 = vst.msk [vmem:[#allocation3 + $0x28] sm:$0xf] %vm4827, %v4752
      %4839 = vst.msk [vmem:[#allocation3 + $0x2c] sm:$0xf] %vm4827, %v4754
      %4840 = vst.msk [vmem:[#allocation3 + $0x30] sm:$0xf] %vm4827, %v4756
      %4841 = vst.msk [vmem:[#allocation3 + $0x34] sm:$0xf] %vm4827, %v4758
      %4842 = vst.msk [vmem:[#allocation3 + $0x38] sm:$0xf] %vm4827, %v4760
      %4843 = vst.msk [vmem:[#allocation3 + $0x3c] sm:$0xf] %vm4827, %v4762
      %4844 = vst.msk [vmem:[#allocation3 + $0x40] sm:$0xf] %vm4827, %v4764
      %4845 = vst.msk [vmem:[#allocation3 + $0x44] sm:$0xf] %vm4827, %v4766
      %4846 = vst.msk [vmem:[#allocation3 + $0x48] sm:$0xf] %vm4827, %v4768
      %4847 = vst.msk [vmem:[#allocation3 + $0x4c] sm:$0xf] %vm4827, %v4770
      %4848 = vst.msk [vmem:[#allocation3 + $0x50] sm:$0xf] %vm4827, %v4772
      %4849 = vst.msk [vmem:[#allocation3 + $0x54] sm:$0xf] %vm4827, %v4774
      %4850 = vst.msk [vmem:[#allocation3 + $0x58] sm:$0xf] %vm4827, %v4776
      %4851 = vst.msk [vmem:[#allocation3 + $0x5c] sm:$0xf] %vm4827, %v4778
      %4852 = vst.msk [vmem:[#allocation3 + $0x60] sm:$0xf] %vm4827, %v4780
      %4853 = vst.msk [vmem:[#allocation3 + $0x64] sm:$0xf] %vm4827, %v4782
      %4854 = vst.msk [vmem:[#allocation3 + $0x68] sm:$0xf] %vm4827, %v4784
      %4855 = vst.msk [vmem:[#allocation3 + $0x6c] sm:$0xf] %vm4827, %v4786
      %4856 = vst.msk [vmem:[#allocation3 + $0x70] sm:$0xf] %vm4827, %v4788
      %4857 = vst.msk [vmem:[#allocation3 + $0x74] sm:$0xf] %vm4827, %v4790
      %4858 = vst.msk [vmem:[#allocation3 + $0x78] sm:$0xf] %vm4827, %v4792
      %4859 = vst.msk [vmem:[#allocation3 + $0x7c] sm:$0xf] %vm4827, %v4794
      %v4860 = vld [vmem:[#allocation3] sm:$0xf]
      %v4861 = vld [vmem:[#allocation3 + $0x4] sm:$0xf]
      %v4862 = vld [vmem:[#allocation3 + $0x8] sm:$0xf]
      %v4863 = vld [vmem:[#allocation3 + $0xc] sm:$0xf]
      %v4864 = vld [vmem:[#allocation3 + $0x10] sm:$0xf]
      %v4865 = vld [vmem:[#allocation3 + $0x14] sm:$0xf]
      %v4866 = vld [vmem:[#allocation3 + $0x18] sm:$0xf]
      %v4867 = vld [vmem:[#allocation3 + $0x1c] sm:$0xf]
      %v4868 = vld [vmem:[#allocation3 + $0x20] sm:$0xf]
      %v4869 = vld [vmem:[#allocation3 + $0x24] sm:$0xf]
      %v4870 = vld [vmem:[#allocation3 + $0x28] sm:$0xf]
      %v4871 = vld [vmem:[#allocation3 + $0x2c] sm:$0xf]
      %v4872 = vld [vmem:[#allocation3 + $0x30] sm:$0xf]
      %v4873 = vld [vmem:[#allocation3 + $0x34] sm:$0xf]
      %v4874 = vld [vmem:[#allocation3 + $0x38] sm:$0xf]
      %v4875 = vld [vmem:[#allocation3 + $0x3c] sm:$0xf]
      %v4876 = vld [vmem:[#allocation3 + $0x40] sm:$0xf]
      %v4877 = vld [vmem:[#allocation3 + $0x44] sm:$0xf]
      %v4878 = vld [vmem:[#allocation3 + $0x48] sm:$0xf]
      %v4879 = vld [vmem:[#allocation3 + $0x4c] sm:$0xf]
      %v4880 = vld [vmem:[#allocation3 + $0x50] sm:$0xf]
      %v4881 = vld [vmem:[#allocation3 + $0x54] sm:$0xf]
      %v4882 = vld [vmem:[#allocation3 + $0x58] sm:$0xf]
      %v4883 = vld [vmem:[#allocation3 + $0x5c] sm:$0xf]
      %v4884 = vld [vmem:[#allocation3 + $0x60] sm:$0xf]
      %v4885 = vld [vmem:[#allocation3 + $0x64] sm:$0xf]
      %v4886 = vld [vmem:[#allocation3 + $0x68] sm:$0xf]
      %v4887 = vld [vmem:[#allocation3 + $0x6c] sm:$0xf]
      %v4888 = vld [vmem:[#allocation3 + $0x70] sm:$0xf]
      %v4889 = vld [vmem:[#allocation3 + $0x74] sm:$0xf]
      %v4890 = vld [vmem:[#allocation3 + $0x78] sm:$0xf]
      %v4891 = vld [vmem:[#allocation3 + $0x7c] sm:$0xf]
      %v4892 = vld [vmem:[%s3] sm:$0xf]
      %v4893 = vld [vmem:[%s3 + $0x4] sm:$0xf]
      %v4894 = vld [vmem:[%s3 + $0x8] sm:$0xf]
      %v4895 = vld [vmem:[%s3 + $0xc] sm:$0xf]
      %v4896 = vld [vmem:[%s3 + $0x10] sm:$0xf]
      %v4897 = vld [vmem:[%s3 + $0x14] sm:$0xf]
      %v4898 = vld [vmem:[%s3 + $0x18] sm:$0xf]
      %v4899 = vld [vmem:[%s3 + $0x1c] sm:$0xf]
      %v4900 = vld [vmem:[%s3 + $0x20] sm:$0xf]
      %v4901 = vld [vmem:[%s4] sm:$0x1]
      %v4903 = vlaneseq
      %v4904 = vshrl.u32 %v4903, 7
      %v4905 = vsub.s32 0, %v4904
      %v4906 = vrot.slane %v4901, %v4905
      %v4940 = vunpack.c.l.b16 %v4860
      %v4941 = vunpack.c.l.b16 %v4861
      %v4942 = vunpack.c.l.b16 %v4862
      %v4943 = vunpack.c.l.b16 %v4863
      %v4944 = vunpack.c.l.b16 %v4864
      %v4945 = vunpack.c.l.b16 %v4865
      %v4946 = vunpack.c.l.b16 %v4866
      %v4947 = vunpack.c.l.b16 %v4867
      %v4948 = vunpack.c.l.b16 %v4868
      %v4949 = vunpack.c.l.b16 %v4869
      %v4950 = vunpack.c.l.b16 %v4870
      %v4951 = vunpack.c.l.b16 %v4871
      %v4952 = vunpack.c.l.b16 %v4872
      %v4953 = vunpack.c.l.b16 %v4873
      %v4954 = vunpack.c.l.b16 %v4874
      %v4955 = vunpack.c.l.b16 %v4875
      %v4956 = vunpack.c.l.b16 %v4876
      %v4957 = vunpack.c.l.b16 %v4877
      %v4958 = vunpack.c.l.b16 %v4878
      %v4959 = vunpack.c.l.b16 %v4879
      %v4960 = vunpack.c.l.b16 %v4880
      %v4961 = vunpack.c.l.b16 %v4881
      %v4962 = vunpack.c.l.b16 %v4882
      %v4963 = vunpack.c.l.b16 %v4883
      %v4964 = vunpack.c.l.b16 %v4884
      %v4965 = vunpack.c.l.b16 %v4885
      %v4966 = vunpack.c.l.b16 %v4886
      %v4967 = vunpack.c.l.b16 %v4887
      %v4968 = vunpack.c.l.b16 %v4888
      %v4969 = vunpack.c.l.b16 %v4889
      %v4970 = vunpack.c.l.b16 %v4890
      %v4971 = vunpack.c.l.b16 %v4891
      %v4972 = vpack.c.b16 %v4941, %v4940
      %v4973 = vpack.c.b16 %v4943, %v4942
      %v4974 = vpack.c.b16 %v4945, %v4944
      %v4975 = vpack.c.b16 %v4947, %v4946
      %v4976 = vpack.c.b16 %v4949, %v4948
      %v4977 = vpack.c.b16 %v4951, %v4950
      %v4978 = vpack.c.b16 %v4953, %v4952
      %v4979 = vpack.c.b16 %v4955, %v4954
      %v4980 = vpack.c.b16 %v4957, %v4956
      %v4981 = vpack.c.b16 %v4959, %v4958
      %v4982 = vpack.c.b16 %v4961, %v4960
      %v4983 = vpack.c.b16 %v4963, %v4962
      %v4984 = vpack.c.b16 %v4965, %v4964
      %v4985 = vpack.c.b16 %v4967, %v4966
      %v4986 = vpack.c.b16 %v4969, %v4968
      %v4987 = vpack.c.b16 %v4971, %v4970
      %v4997 = vunpack.c.l.b16 %v4892
      %v4998 = vunpack.c.l.b16 %v4893
      %v4999 = vunpack.c.l.b16 %v4894
      %v5000 = vunpack.c.l.b16 %v4895
      %v5001 = vunpack.c.l.b16 %v4896
      %v5002 = vunpack.c.l.b16 %v4897
      %v5003 = vunpack.c.l.b16 %v4898
      %v5004 = vunpack.c.l.b16 %v4899
      %v5005 = vunpack.c.l.b16 %v4900
      %v5006 = vpack.c.b16 %v4998, %v4997
      %v5007 = vpack.c.b16 %v5000, %v4999
      %v5008 = vpack.c.b16 %v5002, %v5001
      %v5009 = vpack.c.b16 %v5004, %v5003
      %v5010 = vpack.c.b16 %v5005, %v5005
      %vm5015 = vcmask 588800
      %v5017 = vsel %vm5015, %v4972, 0
      %v5020 = vsel %vm5015, %v4973, 0
      %v5023 = vsel %vm5015, %v4974, 0
      %v5026 = vsel %vm5015, %v4975, 0
      %v5029 = vsel %vm5015, %v4976, 0
      %v5032 = vsel %vm5015, %v4977, 0
      %v5035 = vsel %vm5015, %v4978, 0
      %v5038 = vsel %vm5015, %v4979, 0
      %v5041 = vsel %vm5015, %v4980, 0
      %v5044 = vsel %vm5015, %v4981, 0
      %v5047 = vsel %vm5015, %v4982, 0
      %v5050 = vsel %vm5015, %v4983, 0
      %v5053 = vsel %vm5015, %v4984, 0
      %v5056 = vsel %vm5015, %v4985, 0
      %v5059 = vsel %vm5015, %v4986, 0
      %v5062 = vsel %vm5015, %v4987, 0
      %v5065 = vsel %vm618, %v5010, 0
      %5067 = vmatprep.subr.bf16.mxu0 0
      %5068 = vmatpush1.bf16.msra.mxu0 0
      %5069 = vmatprep.subr.bf16.mxu0 0
      %5070 = vmatpush1.bf16.msra.mxu0 0
      %5071 = vmatprep.subr.bf16.mxu0 0
      %5072 = vmatpush1.bf16.msra.mxu0 0
      %5073 = vmatprep.subr.bf16.mxu0 0
      %5074 = vmatpush1.bf16.msra.mxu0 %v5065
      %5075 = vmatprep.subr.bf16.mxu0 0
      %5076 = vmatpush1.bf16.msra.mxu0 %v5009
      %5077 = vmatprep.subr.bf16.mxu0 0
      %5078 = vmatpush1.bf16.msra.mxu0 %v5008
      %5079 = vmatprep.subr.bf16.mxu0 0
      %5080 = vmatpush1.bf16.msra.mxu0 %v5007
      %5081 = vmatprep.subr.bf16.mxu0 0
      %5082 = vmatpush1.bf16.msra.mxu0 %v5006
      %5083 = vmatprep.subr.bf16.mxu0 0
      %5084 = vmatpush2.bf16.msra.mxu0 0
      %5085 = vmatprep.subr.bf16.mxu0 0
      %5086 = vmatpush2.bf16.msra.mxu0 0
      %5087 = vmatprep.subr.bf16.mxu0 0
      %5088 = vmatpush2.bf16.msra.mxu0 0
      %5089 = vmatprep.subr.bf16.mxu0 0
      %5090 = vmatpush2.bf16.msra.mxu0 0
      %5091 = vmatprep.subr.bf16.mxu0 0
      %5092 = vmatpush2.bf16.msra.mxu0 0
      %5093 = vmatprep.subr.bf16.mxu0 0
      %5094 = vmatpush2.bf16.msra.mxu0 0
      %5095 = vmatprep.subr.bf16.mxu0 0
      %5096 = vmatpush2.bf16.msra.mxu0 0
      %5097 = vmatprep.subr.bf16.mxu0 0
      %5098 = vmatpush2.bf16.msra.mxu0 0
      %5099 = vmatprep.mubr.bf16.mxu0 0
      %5100 = vmatmul.mubr.bf16.gmra.mxu0 %v5017
      %v5101 = vpop.f32.mrf.mxu0
      %v5102 = vadd.f32 %v4906, %v5101
      %v5103 = vpop.f32.mrf.mxu0
      %v5104 = vpop.f32.mrf.mxu0
      %v5105 = vadd.f32 %v4906, %v5104
      %v5106 = vpop.f32.mrf.mxu0
      %5107 = vmatprep.mubr.bf16.mxu0 0
      %5108 = vmatmul.mubr.bf16.gmra.mxu0 %v5020
      %v5109 = vpop.f32.mrf.mxu0
      %v5110 = vadd.f32 %v4906, %v5109
      %v5111 = vpop.f32.mrf.mxu0
      %v5112 = vpop.f32.mrf.mxu0
      %v5113 = vadd.f32 %v4906, %v5112
      %v5114 = vpop.f32.mrf.mxu0
      %5115 = vmatprep.mubr.bf16.mxu0 0
      %5116 = vmatmul.mubr.bf16.gmra.mxu0 %v5023
      %v5117 = vpop.f32.mrf.mxu0
      %v5118 = vadd.f32 %v4906, %v5117
      %v5119 = vpop.f32.mrf.mxu0
      %v5120 = vpop.f32.mrf.mxu0
      %v5121 = vadd.f32 %v4906, %v5120
      %v5122 = vpop.f32.mrf.mxu0
      %5123 = vmatprep.mubr.bf16.mxu0 0
      %5124 = vmatmul.mubr.bf16.gmra.mxu0 %v5026
      %v5125 = vpop.f32.mrf.mxu0
      %v5126 = vadd.f32 %v4906, %v5125
      %v5127 = vpop.f32.mrf.mxu0
      %v5128 = vpop.f32.mrf.mxu0
      %v5129 = vadd.f32 %v4906, %v5128
      %v5130 = vpop.f32.mrf.mxu0
      %5131 = vmatprep.mubr.bf16.mxu0 0
      %5132 = vmatmul.mubr.bf16.gmra.mxu0 %v5029
      %v5133 = vpop.f32.mrf.mxu0
      %v5134 = vadd.f32 %v4906, %v5133
      %v5135 = vpop.f32.mrf.mxu0
      %v5136 = vpop.f32.mrf.mxu0
      %v5137 = vadd.f32 %v4906, %v5136
      %v5138 = vpop.f32.mrf.mxu0
      %5139 = vmatprep.mubr.bf16.mxu0 0
      %5140 = vmatmul.mubr.bf16.gmra.mxu0 %v5032
      %v5141 = vpop.f32.mrf.mxu0
      %v5142 = vadd.f32 %v4906, %v5141
      %v5143 = vpop.f32.mrf.mxu0
      %v5144 = vpop.f32.mrf.mxu0
      %v5145 = vadd.f32 %v4906, %v5144
      %v5146 = vpop.f32.mrf.mxu0
      %5147 = vmatprep.mubr.bf16.mxu0 0
      %5148 = vmatmul.mubr.bf16.gmra.mxu0 %v5035
      %v5149 = vpop.f32.mrf.mxu0
      %v5150 = vadd.f32 %v4906, %v5149
      %v5151 = vpop.f32.mrf.mxu0
      %v5152 = vpop.f32.mrf.mxu0
      %v5153 = vadd.f32 %v4906, %v5152
      %v5154 = vpop.f32.mrf.mxu0
      %5155 = vmatprep.mubr.bf16.mxu0 0
      %5156 = vmatmul.mubr.bf16.gmra.mxu0 %v5038
      %v5157 = vpop.f32.mrf.mxu0
      %v5158 = vadd.f32 %v4906, %v5157
      %v5159 = vpop.f32.mrf.mxu0
      %v5160 = vpop.f32.mrf.mxu0
      %v5161 = vadd.f32 %v4906, %v5160
      %v5162 = vpop.f32.mrf.mxu0
      %5163 = vmatprep.mubr.bf16.mxu0 0
      %5164 = vmatmul.mubr.bf16.gmra.mxu0 %v5041
      %v5165 = vpop.f32.mrf.mxu0
      %v5166 = vadd.f32 %v4906, %v5165
      %v5167 = vpop.f32.mrf.mxu0
      %v5168 = vpop.f32.mrf.mxu0
      %v5169 = vadd.f32 %v4906, %v5168
      %v5170 = vpop.f32.mrf.mxu0
      %5171 = vmatprep.mubr.bf16.mxu0 0
      %5172 = vmatmul.mubr.bf16.gmra.mxu0 %v5044
      %v5173 = vpop.f32.mrf.mxu0
      %v5174 = vadd.f32 %v4906, %v5173
      %v5175 = vpop.f32.mrf.mxu0
      %v5176 = vpop.f32.mrf.mxu0
      %v5177 = vadd.f32 %v4906, %v5176
      %v5178 = vpop.f32.mrf.mxu0
      %5179 = vmatprep.mubr.bf16.mxu0 0
      %5180 = vmatmul.mubr.bf16.gmra.mxu0 %v5047
      %v5181 = vpop.f32.mrf.mxu0
      %v5182 = vadd.f32 %v4906, %v5181
      %v5183 = vpop.f32.mrf.mxu0
      %v5184 = vpop.f32.mrf.mxu0
      %v5185 = vadd.f32 %v4906, %v5184
      %v5186 = vpop.f32.mrf.mxu0
      %5187 = vmatprep.mubr.bf16.mxu0 0
      %5188 = vmatmul.mubr.bf16.gmra.mxu0 %v5050
      %v5189 = vpop.f32.mrf.mxu0
      %v5190 = vadd.f32 %v4906, %v5189
      %v5191 = vpop.f32.mrf.mxu0
      %v5192 = vpop.f32.mrf.mxu0
      %v5193 = vadd.f32 %v4906, %v5192
      %v5194 = vpop.f32.mrf.mxu0
      %5195 = vmatprep.mubr.bf16.mxu0 0
      %5196 = vmatmul.mubr.bf16.gmra.mxu0 %v5053
      %v5197 = vpop.f32.mrf.mxu0
      %v5198 = vadd.f32 %v4906, %v5197
      %v5199 = vpop.f32.mrf.mxu0
      %v5200 = vpop.f32.mrf.mxu0
      %v5201 = vadd.f32 %v4906, %v5200
      %v5202 = vpop.f32.mrf.mxu0
      %5203 = vmatprep.mubr.bf16.mxu0 0
      %5204 = vmatmul.mubr.bf16.gmra.mxu0 %v5056
      %v5205 = vpop.f32.mrf.mxu0
      %v5206 = vadd.f32 %v4906, %v5205
      %v5207 = vpop.f32.mrf.mxu0
      %v5208 = vpop.f32.mrf.mxu0
      %v5209 = vadd.f32 %v4906, %v5208
      %v5210 = vpop.f32.mrf.mxu0
      %5211 = vmatprep.mubr.bf16.mxu0 0
      %5212 = vmatmul.mubr.bf16.gmra.mxu0 %v5059
      %v5213 = vpop.f32.mrf.mxu0
      %v5214 = vadd.f32 %v4906, %v5213
      %v5215 = vpop.f32.mrf.mxu0
      %v5216 = vpop.f32.mrf.mxu0
      %v5217 = vadd.f32 %v4906, %v5216
      %v5218 = vpop.f32.mrf.mxu0
      %5219 = vmatprep.mubr.bf16.mxu0 0
      %5220 = vmatmul.mubr.bf16.gmra.mxu0 %v5062
      %v5221 = vpop.f32.mrf.mxu0
      %v5222 = vadd.f32 %v4906, %v5221
      %v5223 = vpop.f32.mrf.mxu0
      %v5224 = vpop.f32.mrf.mxu0
      %v5225 = vadd.f32 %v4906, %v5224
      %v5226 = vpop.f32.mrf.mxu0
      %5227 = vdwg.mxu0
      %v5228 = vmax.f32 %v5102, 0.0
      %v5229 = vmax.f32 %v5105, 0.0
      %v5230 = vmax.f32 %v5110, 0.0
      %v5231 = vmax.f32 %v5113, 0.0
      %v5232 = vmax.f32 %v5118, 0.0
      %v5233 = vmax.f32 %v5121, 0.0
      %v5234 = vmax.f32 %v5126, 0.0
      %v5235 = vmax.f32 %v5129, 0.0
      %v5236 = vmax.f32 %v5134, 0.0
      %v5237 = vmax.f32 %v5137, 0.0
      %v5238 = vmax.f32 %v5142, 0.0
      %v5239 = vmax.f32 %v5145, 0.0
      %v5240 = vmax.f32 %v5150, 0.0
      %v5241 = vmax.f32 %v5153, 0.0
      %v5242 = vmax.f32 %v5158, 0.0
      %v5243 = vmax.f32 %v5161, 0.0
      %v5244 = vmax.f32 %v5166, 0.0
      %v5245 = vmax.f32 %v5169, 0.0
      %v5246 = vmax.f32 %v5174, 0.0
      %v5247 = vmax.f32 %v5177, 0.0
      %v5248 = vmax.f32 %v5182, 0.0
      %v5249 = vmax.f32 %v5185, 0.0
      %v5250 = vmax.f32 %v5190, 0.0
      %v5251 = vmax.f32 %v5193, 0.0
      %v5252 = vmax.f32 %v5198, 0.0
      %v5253 = vmax.f32 %v5201, 0.0
      %v5254 = vmax.f32 %v5206, 0.0
      %v5255 = vmax.f32 %v5209, 0.0
      %v5256 = vmax.f32 %v5214, 0.0
      %v5257 = vmax.f32 %v5217, 0.0
      %v5258 = vmax.f32 %v5222, 0.0
      %v5259 = vmax.f32 %v5225, 0.0
      %v5260 = vpack.c.bf16 %v5229, %v5228
      %v5261 = vpack.c.bf16 %v5231, %v5230
      %v5262 = vpack.c.bf16 %v5233, %v5232
      %v5263 = vpack.c.bf16 %v5235, %v5234
      %v5264 = vpack.c.bf16 %v5237, %v5236
      %v5265 = vpack.c.bf16 %v5239, %v5238
      %v5266 = vpack.c.bf16 %v5241, %v5240
      %v5267 = vpack.c.bf16 %v5243, %v5242
      %v5268 = vpack.c.bf16 %v5245, %v5244
      %v5269 = vpack.c.bf16 %v5247, %v5246
      %v5270 = vpack.c.bf16 %v5249, %v5248
      %v5271 = vpack.c.bf16 %v5251, %v5250
      %v5272 = vpack.c.bf16 %v5253, %v5252
      %v5273 = vpack.c.bf16 %v5255, %v5254
      %v5274 = vpack.c.bf16 %v5257, %v5256
      %v5275 = vpack.c.bf16 %v5259, %v5258
      %v5276 = vld [vmem:[%s5] sm:$0xf]
      %v5277 = vld [vmem:[%s6] sm:$0x1]
      %v5279 = vlaneseq
      %v5280 = vshrl.u32 %v5279, 7
      %v5281 = vsub.s32 0, %v5280
      %v5282 = vrot.slane %v5277, %v5281
      %vm5284 = vcmask 64512
      %v5286 = vsel %vm5284, %v5260, 0
      %v5289 = vsel %vm5284, %v5261, 0
      %v5292 = vsel %vm5284, %v5262, 0
      %v5295 = vsel %vm5284, %v5263, 0
      %v5298 = vsel %vm5284, %v5264, 0
      %v5301 = vsel %vm5284, %v5265, 0
      %v5304 = vsel %vm5284, %v5266, 0
      %v5307 = vsel %vm5284, %v5267, 0
      %v5310 = vsel %vm5284, %v5268, 0
      %v5313 = vsel %vm5284, %v5269, 0
      %v5316 = vsel %vm5284, %v5270, 0
      %v5319 = vsel %vm5284, %v5271, 0
      %v5322 = vsel %vm5284, %v5272, 0
      %v5325 = vsel %vm5284, %v5273, 0
      %v5328 = vsel %vm5284, %v5274, 0
      %v5331 = vsel %vm5284, %v5275, 0
      %v5334 = vsel %vm618, %v5276, 0
      %5336 = vmatprep.subr.bf16.mxu0 0
      %5337 = vmatpush1.bf16.msra.mxu0 0
      %5338 = vmatprep.subr.bf16.mxu0 0
      %5339 = vmatpush1.bf16.msra.mxu0 0
      %5340 = vmatprep.subr.bf16.mxu0 0
      %5341 = vmatpush1.bf16.msra.mxu0 0
      %5342 = vmatprep.subr.bf16.mxu0 0
      %5343 = vmatpush1.bf16.msra.mxu0 0
      %5344 = vmatprep.subr.bf16.mxu0 0
      %5345 = vmatpush1.bf16.msra.mxu0 0
      %5346 = vmatprep.subr.bf16.mxu0 0
      %5347 = vmatpush1.bf16.msra.mxu0 0
      %5348 = vmatprep.subr.bf16.mxu0 0
      %5349 = vmatpush1.bf16.msra.mxu0 0
      %5350 = vmatprep.subr.bf16.mxu0 0
      %5351 = vmatpush1.bf16.msra.mxu0 %v5334
      %5352 = vmatprep.subr.bf16.mxu0 0
      %5353 = vmatpush2.bf16.msra.mxu0 0
      %5354 = vmatprep.subr.bf16.mxu0 0
      %5355 = vmatpush2.bf16.msra.mxu0 0
      %5356 = vmatprep.subr.bf16.mxu0 0
      %5357 = vmatpush2.bf16.msra.mxu0 0
      %5358 = vmatprep.subr.bf16.mxu0 0
      %5359 = vmatpush2.bf16.msra.mxu0 0
      %5360 = vmatprep.subr.bf16.mxu0 0
      %5361 = vmatpush2.bf16.msra.mxu0 0
      %5362 = vmatprep.subr.bf16.mxu0 0
      %5363 = vmatpush2.bf16.msra.mxu0 0
      %5364 = vmatprep.subr.bf16.mxu0 0
      %5365 = vmatpush2.bf16.msra.mxu0 0
      %5366 = vmatprep.subr.bf16.mxu0 0
      %5367 = vmatpush2.bf16.msra.mxu0 0
      %5368 = vmatprep.mubr.bf16.mxu0 0
      %5369 = vmatmul.mubr.bf16.gmra.mxu0 %v5286
      %v5370 = vpop.f32.mrf.mxu0
      %v5371 = vadd.f32 %v5282, %v5370
      %v5372 = vpop.f32.mrf.mxu0
      %v5373 = vpop.f32.mrf.mxu0
      %v5374 = vadd.f32 %v5282, %v5373
      %v5375 = vpop.f32.mrf.mxu0
      %5376 = vmatprep.mubr.bf16.mxu0 0
      %5377 = vmatmul.mubr.bf16.gmra.mxu0 %v5289
      %v5378 = vpop.f32.mrf.mxu0
      %v5379 = vadd.f32 %v5282, %v5378
      %v5380 = vpop.f32.mrf.mxu0
      %v5381 = vpop.f32.mrf.mxu0
      %v5382 = vadd.f32 %v5282, %v5381
      %v5383 = vpop.f32.mrf.mxu0
      %5384 = vmatprep.mubr.bf16.mxu0 0
      %5385 = vmatmul.mubr.bf16.gmra.mxu0 %v5292
      %v5386 = vpop.f32.mrf.mxu0
      %v5387 = vadd.f32 %v5282, %v5386
      %v5388 = vpop.f32.mrf.mxu0
      %v5389 = vpop.f32.mrf.mxu0
      %v5390 = vadd.f32 %v5282, %v5389
      %v5391 = vpop.f32.mrf.mxu0
      %5392 = vmatprep.mubr.bf16.mxu0 0
      %5393 = vmatmul.mubr.bf16.gmra.mxu0 %v5295
      %v5394 = vpop.f32.mrf.mxu0
      %v5395 = vadd.f32 %v5282, %v5394
      %v5396 = vpop.f32.mrf.mxu0
      %v5397 = vpop.f32.mrf.mxu0
      %v5398 = vadd.f32 %v5282, %v5397
      %v5399 = vpop.f32.mrf.mxu0
      %5400 = vmatprep.mubr.bf16.mxu0 0
      %5401 = vmatmul.mubr.bf16.gmra.mxu0 %v5298
      %v5402 = vpop.f32.mrf.mxu0
      %v5403 = vadd.f32 %v5282, %v5402
      %v5404 = vpop.f32.mrf.mxu0
      %v5405 = vpop.f32.mrf.mxu0
      %v5406 = vadd.f32 %v5282, %v5405
      %v5407 = vpop.f32.mrf.mxu0
      %5408 = vmatprep.mubr.bf16.mxu0 0
      %5409 = vmatmul.mubr.bf16.gmra.mxu0 %v5301
      %v5410 = vpop.f32.mrf.mxu0
      %v5411 = vadd.f32 %v5282, %v5410
      %v5412 = vpop.f32.mrf.mxu0
      %v5413 = vpop.f32.mrf.mxu0
      %v5414 = vadd.f32 %v5282, %v5413
      %v5415 = vpop.f32.mrf.mxu0
      %5416 = vmatprep.mubr.bf16.mxu0 0
      %5417 = vmatmul.mubr.bf16.gmra.mxu0 %v5304
      %v5418 = vpop.f32.mrf.mxu0
      %v5419 = vadd.f32 %v5282, %v5418
      %v5420 = vpop.f32.mrf.mxu0
      %v5421 = vpop.f32.mrf.mxu0
      %v5422 = vadd.f32 %v5282, %v5421
      %v5423 = vpop.f32.mrf.mxu0
      %5424 = vmatprep.mubr.bf16.mxu0 0
      %5425 = vmatmul.mubr.bf16.gmra.mxu0 %v5307
      %v5426 = vpop.f32.mrf.mxu0
      %v5427 = vadd.f32 %v5282, %v5426
      %v5428 = vpop.f32.mrf.mxu0
      %v5429 = vpop.f32.mrf.mxu0
      %v5430 = vadd.f32 %v5282, %v5429
      %v5431 = vpop.f32.mrf.mxu0
      %5432 = vmatprep.mubr.bf16.mxu0 0
      %5433 = vmatmul.mubr.bf16.gmra.mxu0 %v5310
      %v5434 = vpop.f32.mrf.mxu0
      %v5435 = vadd.f32 %v5282, %v5434
      %v5436 = vpop.f32.mrf.mxu0
      %v5437 = vpop.f32.mrf.mxu0
      %v5438 = vadd.f32 %v5282, %v5437
      %v5439 = vpop.f32.mrf.mxu0
      %5440 = vmatprep.mubr.bf16.mxu0 0
      %5441 = vmatmul.mubr.bf16.gmra.mxu0 %v5313
      %v5442 = vpop.f32.mrf.mxu0
      %v5443 = vadd.f32 %v5282, %v5442
      %v5444 = vpop.f32.mrf.mxu0
      %v5445 = vpop.f32.mrf.mxu0
      %v5446 = vadd.f32 %v5282, %v5445
      %v5447 = vpop.f32.mrf.mxu0
      %5448 = vmatprep.mubr.bf16.mxu0 0
      %5449 = vmatmul.mubr.bf16.gmra.mxu0 %v5316
      %v5450 = vpop.f32.mrf.mxu0
      %v5451 = vadd.f32 %v5282, %v5450
      %v5452 = vpop.f32.mrf.mxu0
      %v5453 = vpop.f32.mrf.mxu0
      %v5454 = vadd.f32 %v5282, %v5453
      %v5455 = vpop.f32.mrf.mxu0
      %5456 = vmatprep.mubr.bf16.mxu0 0
      %5457 = vmatmul.mubr.bf16.gmra.mxu0 %v5319
      %v5458 = vpop.f32.mrf.mxu0
      %v5459 = vadd.f32 %v5282, %v5458
      %v5460 = vpop.f32.mrf.mxu0
      %v5461 = vpop.f32.mrf.mxu0
      %v5462 = vadd.f32 %v5282, %v5461
      %v5463 = vpop.f32.mrf.mxu0
      %5464 = vmatprep.mubr.bf16.mxu0 0
      %5465 = vmatmul.mubr.bf16.gmra.mxu0 %v5322
      %v5466 = vpop.f32.mrf.mxu0
      %v5467 = vadd.f32 %v5282, %v5466
      %v5468 = vpop.f32.mrf.mxu0
      %v5469 = vpop.f32.mrf.mxu0
      %v5470 = vadd.f32 %v5282, %v5469
      %v5471 = vpop.f32.mrf.mxu0
      %5472 = vmatprep.mubr.bf16.mxu0 0
      %5473 = vmatmul.mubr.bf16.gmra.mxu0 %v5325
      %v5474 = vpop.f32.mrf.mxu0
      %v5475 = vadd.f32 %v5282, %v5474
      %v5476 = vpop.f32.mrf.mxu0
      %v5477 = vpop.f32.mrf.mxu0
      %v5478 = vadd.f32 %v5282, %v5477
      %v5479 = vpop.f32.mrf.mxu0
      %5480 = vmatprep.mubr.bf16.mxu0 0
      %5481 = vmatmul.mubr.bf16.gmra.mxu0 %v5328
      %v5482 = vpop.f32.mrf.mxu0
      %v5483 = vadd.f32 %v5282, %v5482
      %v5484 = vpop.f32.mrf.mxu0
      %v5485 = vpop.f32.mrf.mxu0
      %v5486 = vadd.f32 %v5282, %v5485
      %v5487 = vpop.f32.mrf.mxu0
      %5488 = vmatprep.mubr.bf16.mxu0 0
      %5489 = vmatmul.mubr.bf16.gmra.mxu0 %v5331
      %v5490 = vpop.f32.mrf.mxu0
      %v5491 = vadd.f32 %v5282, %v5490
      %v5492 = vpop.f32.mrf.mxu0
      %v5493 = vpop.f32.mrf.mxu0
      %v5494 = vadd.f32 %v5282, %v5493
      %v5495 = vpop.f32.mrf.mxu0
      %5496 = vdwg.mxu0
      %v5497 = vld [vmem:[%s11] sm:$0x3]
      %v5498 = vld [vmem:[%s12] sm:$0x1]
      %v5500 = vlaneseq
      %v5501 = vshrl.u32 %v5500, 7
      %v5502 = vsub.s32 0, %v5501
      %v5503 = vrot.slane %v5498, %v5502
      %v5506 = vsel %vm975, %v5497, 0
      %5508 = vmatprep.subr.bf16.mxu0 0
      %5509 = vmatpush1.bf16.msra.mxu0 0
      %5510 = vmatprep.subr.bf16.mxu0 0
      %5511 = vmatpush1.bf16.msra.mxu0 0
      %5512 = vmatprep.subr.bf16.mxu0 0
      %5513 = vmatpush1.bf16.msra.mxu0 0
      %5514 = vmatprep.subr.bf16.mxu0 0
      %5515 = vmatpush1.bf16.msra.mxu0 0
      %5516 = vmatprep.subr.bf16.mxu0 0
      %5517 = vmatpush1.bf16.msra.mxu0 0
      %5518 = vmatprep.subr.bf16.mxu0 0
      %5519 = vmatpush1.bf16.msra.mxu0 0
      %5520 = vmatprep.subr.bf16.mxu0 0
      %5521 = vmatpush1.bf16.msra.mxu0 0
      %5522 = vmatprep.subr.bf16.mxu0 0
      %5523 = vmatpush1.bf16.msra.mxu0 %v5506
      %5524 = vmatprep.subr.bf16.mxu0 0
      %5525 = vmatpush2.bf16.msra.mxu0 0
      %5526 = vmatprep.subr.bf16.mxu0 0
      %5527 = vmatpush2.bf16.msra.mxu0 0
      %5528 = vmatprep.subr.bf16.mxu0 0
      %5529 = vmatpush2.bf16.msra.mxu0 0
      %5530 = vmatprep.subr.bf16.mxu0 0
      %5531 = vmatpush2.bf16.msra.mxu0 0
      %5532 = vmatprep.subr.bf16.mxu0 0
      %5533 = vmatpush2.bf16.msra.mxu0 0
      %5534 = vmatprep.subr.bf16.mxu0 0
      %5535 = vmatpush2.bf16.msra.mxu0 0
      %5536 = vmatprep.subr.bf16.mxu0 0
      %5537 = vmatpush2.bf16.msra.mxu0 0
      %5538 = vmatprep.subr.bf16.mxu0 0
      %5539 = vmatpush2.bf16.msra.mxu0 0
      %5540 = vmatprep.mubr.bf16.mxu0 0
      %5541 = vmatmul.mubr.bf16.gmra.mxu0 %v928
      %v5542 = vpop.f32.mrf.mxu0
      %v5543 = vadd.f32 %v5503, %v5542
      %v5544 = vpop.f32.mrf.mxu0
      %v5545 = vpop.f32.mrf.mxu0
      %v5546 = vadd.f32 %v5503, %v5545
      %v5547 = vpop.f32.mrf.mxu0
      %5548 = vmatprep.mubr.bf16.mxu0 0
      %5549 = vmatmul.mubr.bf16.gmra.mxu0 %v931
      %v5550 = vpop.f32.mrf.mxu0
      %v5551 = vadd.f32 %v5503, %v5550
      %v5552 = vpop.f32.mrf.mxu0
      %v5553 = vpop.f32.mrf.mxu0
      %v5554 = vadd.f32 %v5503, %v5553
      %v5555 = vpop.f32.mrf.mxu0
      %5556 = vmatprep.mubr.bf16.mxu0 0
      %5557 = vmatmul.mubr.bf16.gmra.mxu0 %v934
      %v5558 = vpop.f32.mrf.mxu0
      %v5559 = vadd.f32 %v5503, %v5558
      %v5560 = vpop.f32.mrf.mxu0
      %v5561 = vpop.f32.mrf.mxu0
      %v5562 = vadd.f32 %v5503, %v5561
      %v5563 = vpop.f32.mrf.mxu0
      %5564 = vmatprep.mubr.bf16.mxu0 0
      %5565 = vmatmul.mubr.bf16.gmra.mxu0 %v937
      %v5566 = vpop.f32.mrf.mxu0
      %v5567 = vadd.f32 %v5503, %v5566
      %v5568 = vpop.f32.mrf.mxu0
      %v5569 = vpop.f32.mrf.mxu0
      %v5570 = vadd.f32 %v5503, %v5569
      %v5571 = vpop.f32.mrf.mxu0
      %5572 = vmatprep.mubr.bf16.mxu0 0
      %5573 = vmatmul.mubr.bf16.gmra.mxu0 %v940
      %v5574 = vpop.f32.mrf.mxu0
      %v5575 = vadd.f32 %v5503, %v5574
      %v5576 = vpop.f32.mrf.mxu0
      %v5577 = vpop.f32.mrf.mxu0
      %v5578 = vadd.f32 %v5503, %v5577
      %v5579 = vpop.f32.mrf.mxu0
      %5580 = vmatprep.mubr.bf16.mxu0 0
      %5581 = vmatmul.mubr.bf16.gmra.mxu0 %v943
      %v5582 = vpop.f32.mrf.mxu0
      %v5583 = vadd.f32 %v5503, %v5582
      %v5584 = vpop.f32.mrf.mxu0
      %v5585 = vpop.f32.mrf.mxu0
      %v5586 = vadd.f32 %v5503, %v5585
      %v5587 = vpop.f32.mrf.mxu0
      %5588 = vmatprep.mubr.bf16.mxu0 0
      %5589 = vmatmul.mubr.bf16.gmra.mxu0 %v946
      %v5590 = vpop.f32.mrf.mxu0
      %v5591 = vadd.f32 %v5503, %v5590
      %v5592 = vpop.f32.mrf.mxu0
      %v5593 = vpop.f32.mrf.mxu0
      %v5594 = vadd.f32 %v5503, %v5593
      %v5595 = vpop.f32.mrf.mxu0
      %5596 = vmatprep.mubr.bf16.mxu0 0
      %5597 = vmatmul.mubr.bf16.gmra.mxu0 %v949
      %v5598 = vpop.f32.mrf.mxu0
      %v5599 = vadd.f32 %v5503, %v5598
      %v5600 = vpop.f32.mrf.mxu0
      %v5601 = vpop.f32.mrf.mxu0
      %v5602 = vadd.f32 %v5503, %v5601
      %v5603 = vpop.f32.mrf.mxu0
      %5604 = vmatprep.mubr.bf16.mxu0 0
      %5605 = vmatmul.mubr.bf16.gmra.mxu0 %v952
      %v5606 = vpop.f32.mrf.mxu0
      %v5607 = vadd.f32 %v5503, %v5606
      %v5608 = vpop.f32.mrf.mxu0
      %v5609 = vpop.f32.mrf.mxu0
      %v5610 = vadd.f32 %v5503, %v5609
      %v5611 = vpop.f32.mrf.mxu0
      %5612 = vmatprep.mubr.bf16.mxu0 0
      %5613 = vmatmul.mubr.bf16.gmra.mxu0 %v955
      %v5614 = vpop.f32.mrf.mxu0
      %v5615 = vadd.f32 %v5503, %v5614
      %v5616 = vpop.f32.mrf.mxu0
      %v5617 = vpop.f32.mrf.mxu0
      %v5618 = vadd.f32 %v5503, %v5617
      %v5619 = vpop.f32.mrf.mxu0
      %5620 = vmatprep.mubr.bf16.mxu0 0
      %5621 = vmatmul.mubr.bf16.gmra.mxu0 %v958
      %v5622 = vpop.f32.mrf.mxu0
      %v5623 = vadd.f32 %v5503, %v5622
      %v5624 = vpop.f32.mrf.mxu0
      %v5625 = vpop.f32.mrf.mxu0
      %v5626 = vadd.f32 %v5503, %v5625
      %v5627 = vpop.f32.mrf.mxu0
      %5628 = vmatprep.mubr.bf16.mxu0 0
      %5629 = vmatmul.mubr.bf16.gmra.mxu0 %v961
      %v5630 = vpop.f32.mrf.mxu0
      %v5631 = vadd.f32 %v5503, %v5630
      %v5632 = vpop.f32.mrf.mxu0
      %v5633 = vpop.f32.mrf.mxu0
      %v5634 = vadd.f32 %v5503, %v5633
      %v5635 = vpop.f32.mrf.mxu0
      %5636 = vmatprep.mubr.bf16.mxu0 0
      %5637 = vmatmul.mubr.bf16.gmra.mxu0 %v964
      %v5638 = vpop.f32.mrf.mxu0
      %v5639 = vadd.f32 %v5503, %v5638
      %v5640 = vpop.f32.mrf.mxu0
      %v5641 = vpop.f32.mrf.mxu0
      %v5642 = vadd.f32 %v5503, %v5641
      %v5643 = vpop.f32.mrf.mxu0
      %5644 = vmatprep.mubr.bf16.mxu0 0
      %5645 = vmatmul.mubr.bf16.gmra.mxu0 %v967
      %v5646 = vpop.f32.mrf.mxu0
      %v5647 = vadd.f32 %v5503, %v5646
      %v5648 = vpop.f32.mrf.mxu0
      %v5649 = vpop.f32.mrf.mxu0
      %v5650 = vadd.f32 %v5503, %v5649
      %v5651 = vpop.f32.mrf.mxu0
      %5652 = vmatprep.mubr.bf16.mxu0 0
      %5653 = vmatmul.mubr.bf16.gmra.mxu0 %v970
      %v5654 = vpop.f32.mrf.mxu0
      %v5655 = vadd.f32 %v5503, %v5654
      %v5656 = vpop.f32.mrf.mxu0
      %v5657 = vpop.f32.mrf.mxu0
      %v5658 = vadd.f32 %v5503, %v5657
      %v5659 = vpop.f32.mrf.mxu0
      %5660 = vmatprep.mubr.bf16.mxu0 0
      %5661 = vmatmul.mubr.bf16.gmra.mxu0 %v973
      %v5662 = vpop.f32.mrf.mxu0
      %v5663 = vadd.f32 %v5503, %v5662
      %v5664 = vpop.f32.mrf.mxu0
      %v5665 = vpop.f32.mrf.mxu0
      %v5666 = vadd.f32 %v5503, %v5665
      %v5667 = vpop.f32.mrf.mxu0
      %5668 = vdwg.mxu0
      %s5669 = vtos %v779
      %v5670 = vstv %s5669
      %v5672 = vmul.f32 %v5371, %v5670
      %v5673 = vmul.f32 %v5374, %v5670
      %v5674 = vmul.f32 %v5379, %v5670
      %v5675 = vmul.f32 %v5382, %v5670
      %v5676 = vmul.f32 %v5387, %v5670
      %v5677 = vmul.f32 %v5390, %v5670
      %v5678 = vmul.f32 %v5395, %v5670
      %v5679 = vmul.f32 %v5398, %v5670
      %v5680 = vmul.f32 %v5403, %v5670
      %v5681 = vmul.f32 %v5406, %v5670
      %v5682 = vmul.f32 %v5411, %v5670
      %v5683 = vmul.f32 %v5414, %v5670
      %v5684 = vmul.f32 %v5419, %v5670
      %v5685 = vmul.f32 %v5422, %v5670
      %v5686 = vmul.f32 %v5427, %v5670
      %v5687 = vmul.f32 %v5430, %v5670
      %v5688 = vmul.f32 %v5435, %v5670
      %v5689 = vmul.f32 %v5438, %v5670
      %v5690 = vmul.f32 %v5443, %v5670
      %v5691 = vmul.f32 %v5446, %v5670
      %v5692 = vmul.f32 %v5451, %v5670
      %v5693 = vmul.f32 %v5454, %v5670
      %v5694 = vmul.f32 %v5459, %v5670
      %v5695 = vmul.f32 %v5462, %v5670
      %v5696 = vmul.f32 %v5467, %v5670
      %v5697 = vmul.f32 %v5470, %v5670
      %v5698 = vmul.f32 %v5475, %v5670
      %v5699 = vmul.f32 %v5478, %v5670
      %v5700 = vmul.f32 %v5483, %v5670
      %v5701 = vmul.f32 %v5486, %v5670
      %v5702 = vmul.f32 %v5491, %v5670
      %v5703 = vmul.f32 %v5494, %v5670
      %v5704 = vadd.f32 %v5543, %v5672
      %v5705 = vadd.f32 %v5546, %v5673
      %v5706 = vadd.f32 %v5551, %v5674
      %v5707 = vadd.f32 %v5554, %v5675
      %v5708 = vadd.f32 %v5559, %v5676
      %v5709 = vadd.f32 %v5562, %v5677
      %v5710 = vadd.f32 %v5567, %v5678
      %v5711 = vadd.f32 %v5570, %v5679
      %v5712 = vadd.f32 %v5575, %v5680
      %v5713 = vadd.f32 %v5578, %v5681
      %v5714 = vadd.f32 %v5583, %v5682
      %v5715 = vadd.f32 %v5586, %v5683
      %v5716 = vadd.f32 %v5591, %v5684
      %v5717 = vadd.f32 %v5594, %v5685
      %v5718 = vadd.f32 %v5599, %v5686
      %v5719 = vadd.f32 %v5602, %v5687
      %v5720 = vadd.f32 %v5607, %v5688
      %v5721 = vadd.f32 %v5610, %v5689
      %v5722 = vadd.f32 %v5615, %v5690
      %v5723 = vadd.f32 %v5618, %v5691
      %v5724 = vadd.f32 %v5623, %v5692
      %v5725 = vadd.f32 %v5626, %v5693
      %v5726 = vadd.f32 %v5631, %v5694
      %v5727 = vadd.f32 %v5634, %v5695
      %v5728 = vadd.f32 %v5639, %v5696
      %v5729 = vadd.f32 %v5642, %v5697
      %v5730 = vadd.f32 %v5647, %v5698
      %v5731 = vadd.f32 %v5650, %v5699
      %v5732 = vadd.f32 %v5655, %v5700
      %v5733 = vadd.f32 %v5658, %v5701
      %v5734 = vadd.f32 %v5663, %v5702
      %v5735 = vadd.f32 %v5666, %v5703
      %v5736 = vmax.f32 %v5704, 0.0
      %v5737 = vmax.f32 %v5705, 0.0
      %v5738 = vmax.f32 %v5706, 0.0
      %v5739 = vmax.f32 %v5707, 0.0
      %v5740 = vmax.f32 %v5708, 0.0
      %v5741 = vmax.f32 %v5709, 0.0
      %v5742 = vmax.f32 %v5710, 0.0
      %v5743 = vmax.f32 %v5711, 0.0
      %v5744 = vmax.f32 %v5712, 0.0
      %v5745 = vmax.f32 %v5713, 0.0
      %v5746 = vmax.f32 %v5714, 0.0
      %v5747 = vmax.f32 %v5715, 0.0
      %v5748 = vmax.f32 %v5716, 0.0
      %v5749 = vmax.f32 %v5717, 0.0
      %v5750 = vmax.f32 %v5718, 0.0
      %v5751 = vmax.f32 %v5719, 0.0
      %v5752 = vmax.f32 %v5720, 0.0
      %v5753 = vmax.f32 %v5721, 0.0
      %v5754 = vmax.f32 %v5722, 0.0
      %v5755 = vmax.f32 %v5723, 0.0
      %v5756 = vmax.f32 %v5724, 0.0
      %v5757 = vmax.f32 %v5725, 0.0
      %v5758 = vmax.f32 %v5726, 0.0
      %v5759 = vmax.f32 %v5727, 0.0
      %v5760 = vmax.f32 %v5728, 0.0
      %v5761 = vmax.f32 %v5729, 0.0
      %v5762 = vmax.f32 %v5730, 0.0
      %v5763 = vmax.f32 %v5731, 0.0
      %v5764 = vmax.f32 %v5732, 0.0
      %v5765 = vmax.f32 %v5733, 0.0
      %v5766 = vmax.f32 %v5734, 0.0
      %v5767 = vmax.f32 %v5735, 0.0
      %v5768 = vpack.c.bf16 %v5737, %v5736
      %v5769 = vpack.c.bf16 %v5739, %v5738
      %v5770 = vpack.c.bf16 %v5741, %v5740
      %v5771 = vpack.c.bf16 %v5743, %v5742
      %v5772 = vpack.c.bf16 %v5745, %v5744
      %v5773 = vpack.c.bf16 %v5747, %v5746
      %v5774 = vpack.c.bf16 %v5749, %v5748
      %v5775 = vpack.c.bf16 %v5751, %v5750
      %v5776 = vpack.c.bf16 %v5753, %v5752
      %v5777 = vpack.c.bf16 %v5755, %v5754
      %v5778 = vpack.c.bf16 %v5757, %v5756
      %v5779 = vpack.c.bf16 %v5759, %v5758
      %v5780 = vpack.c.bf16 %v5761, %v5760
      %v5781 = vpack.c.bf16 %v5763, %v5762
      %v5782 = vpack.c.bf16 %v5765, %v5764
      %v5783 = vpack.c.bf16 %v5767, %v5766
      %v5800 = vunpack.c.l.b16 %v5768
      %v5801 = vunpack.c.h.b16 %v5768
      %v5802 = vunpack.c.l.b16 %v5769
      %v5803 = vunpack.c.h.b16 %v5769
      %v5804 = vunpack.c.l.b16 %v5770
      %v5805 = vunpack.c.h.b16 %v5770
      %v5806 = vunpack.c.l.b16 %v5771
      %v5807 = vunpack.c.h.b16 %v5771
      %v5808 = vunpack.c.l.b16 %v5772
      %v5809 = vunpack.c.h.b16 %v5772
      %v5810 = vunpack.c.l.b16 %v5773
      %v5811 = vunpack.c.h.b16 %v5773
      %v5812 = vunpack.c.l.b16 %v5774
      %v5813 = vunpack.c.h.b16 %v5774
      %v5814 = vunpack.c.l.b16 %v5775
      %v5815 = vunpack.c.h.b16 %v5775
      %v5816 = vunpack.c.l.b16 %v5776
      %v5817 = vunpack.c.h.b16 %v5776
      %v5818 = vunpack.c.l.b16 %v5777
      %v5819 = vunpack.c.h.b16 %v5777
      %v5820 = vunpack.c.l.b16 %v5778
      %v5821 = vunpack.c.h.b16 %v5778
      %v5822 = vunpack.c.l.b16 %v5779
      %v5823 = vunpack.c.h.b16 %v5779
      %v5824 = vunpack.c.l.b16 %v5780
      %v5825 = vunpack.c.h.b16 %v5780
      %v5826 = vunpack.c.l.b16 %v5781
      %v5827 = vunpack.c.h.b16 %v5781
      %v5828 = vunpack.c.l.b16 %v5782
      %v5829 = vunpack.c.h.b16 %v5782
      %v5830 = vunpack.c.l.b16 %v5783
      %v5831 = vunpack.c.h.b16 %v5783
      %v5832 = vpack.c.b16 %v5800, %v5800
      %v5833 = vpack.c.b16 %v5801, %v5801
      %v5834 = vpack.c.b16 %v5802, %v5802
      %v5835 = vpack.c.b16 %v5803, %v5803
      %v5836 = vpack.c.b16 %v5804, %v5804
      %v5837 = vpack.c.b16 %v5805, %v5805
      %v5838 = vpack.c.b16 %v5806, %v5806
      %v5839 = vpack.c.b16 %v5807, %v5807
      %v5840 = vpack.c.b16 %v5808, %v5808
      %v5841 = vpack.c.b16 %v5809, %v5809
      %v5842 = vpack.c.b16 %v5810, %v5810
      %v5843 = vpack.c.b16 %v5811, %v5811
      %v5844 = vpack.c.b16 %v5812, %v5812
      %v5845 = vpack.c.b16 %v5813, %v5813
      %v5846 = vpack.c.b16 %v5814, %v5814
      %v5847 = vpack.c.b16 %v5815, %v5815
      %v5848 = vpack.c.b16 %v5816, %v5816
      %v5849 = vpack.c.b16 %v5817, %v5817
      %v5850 = vpack.c.b16 %v5818, %v5818
      %v5851 = vpack.c.b16 %v5819, %v5819
      %v5852 = vpack.c.b16 %v5820, %v5820
      %v5853 = vpack.c.b16 %v5821, %v5821
      %v5854 = vpack.c.b16 %v5822, %v5822
      %v5855 = vpack.c.b16 %v5823, %v5823
      %v5856 = vpack.c.b16 %v5824, %v5824
      %v5857 = vpack.c.b16 %v5825, %v5825
      %v5858 = vpack.c.b16 %v5826, %v5826
      %v5859 = vpack.c.b16 %v5827, %v5827
      %v5860 = vpack.c.b16 %v5828, %v5828
      %v5861 = vpack.c.b16 %v5829, %v5829
      %v5862 = vpack.c.b16 %v5830, %v5830
      %v5863 = vpack.c.b16 %v5831, %v5831
      %vm5896 = vcmask 125952
      %5897 = vst.msk [vmem:[%s473] sm:$0xf] %vm5896, %v5832
      %5898 = vst.msk [vmem:[%s473 + $0x4] sm:$0xf] %vm5896, %v5833
      %5899 = vst.msk [vmem:[%s473 + $0x8] sm:$0xf] %vm5896, %v5834
      %5900 = vst.msk [vmem:[%s473 + $0xc] sm:$0xf] %vm5896, %v5835
      %5901 = vst.msk [vmem:[%s473 + $0x10] sm:$0xf] %vm5896, %v5836
      %5902 = vst.msk [vmem:[%s473 + $0x14] sm:$0xf] %vm5896, %v5837
      %5903 = vst.msk [vmem:[%s473 + $0x18] sm:$0xf] %vm5896, %v5838
      %5904 = vst.msk [vmem:[%s473 + $0x1c] sm:$0xf] %vm5896, %v5839
      %5905 = vst.msk [vmem:[%s473 + $0x20] sm:$0xf] %vm5896, %v5840
      %5906 = vst.msk [vmem:[%s473 + $0x24] sm:$0xf] %vm5896, %v5841
      %5907 = vst.msk [vmem:[%s473 + $0x28] sm:$0xf] %vm5896, %v5842
      %5908 = vst.msk [vmem:[%s473 + $0x2c] sm:$0xf] %vm5896, %v5843
      %5909 = vst.msk [vmem:[%s473 + $0x30] sm:$0xf] %vm5896, %v5844
      %5910 = vst.msk [vmem:[%s473 + $0x34] sm:$0xf] %vm5896, %v5845
      %5911 = vst.msk [vmem:[%s473 + $0x38] sm:$0xf] %vm5896, %v5846
      %5912 = vst.msk [vmem:[%s473 + $0x3c] sm:$0xf] %vm5896, %v5847
      %5913 = vst.msk [vmem:[%s473 + $0x40] sm:$0xf] %vm5896, %v5848
      %5914 = vst.msk [vmem:[%s473 + $0x44] sm:$0xf] %vm5896, %v5849
      %5915 = vst.msk [vmem:[%s473 + $0x48] sm:$0xf] %vm5896, %v5850
      %5916 = vst.msk [vmem:[%s473 + $0x4c] sm:$0xf] %vm5896, %v5851
      %5917 = vst.msk [vmem:[%s473 + $0x50] sm:$0xf] %vm5896, %v5852
      %5918 = vst.msk [vmem:[%s473 + $0x54] sm:$0xf] %vm5896, %v5853
      %5919 = vst.msk [vmem:[%s473 + $0x58] sm:$0xf] %vm5896, %v5854
      %5920 = vst.msk [vmem:[%s473 + $0x5c] sm:$0xf] %vm5896, %v5855
      %5921 = vst.msk [vmem:[%s473 + $0x60] sm:$0xf] %vm5896, %v5856
      %5922 = vst.msk [vmem:[%s473 + $0x64] sm:$0xf] %vm5896, %v5857
      %5923 = vst.msk [vmem:[%s473 + $0x68] sm:$0xf] %vm5896, %v5858
      %5924 = vst.msk [vmem:[%s473 + $0x6c] sm:$0xf] %vm5896, %v5859
      %5925 = vst.msk [vmem:[%s473 + $0x70] sm:$0xf] %vm5896, %v5860
      %5926 = vst.msk [vmem:[%s473 + $0x74] sm:$0xf] %vm5896, %v5861
      %5927 = vst.msk [vmem:[%s473 + $0x78] sm:$0xf] %vm5896, %v5862
      %5928 = vst.msk [vmem:[%s473 + $0x7c] sm:$0xf] %vm5896, %v5863
      %p5929 = scmp.lt.s32.totalorder %s26, 1
      %s5930 = scalar_select %p5929, %s26, 1
      %s5931 = smul.addr %s5930, 32
      %s5932 = smul.addr %s5931, 4
      %s5933 = scalar_lea.vmem %s13, %s5932
      %p5934 = scmp.lt.s32.totalorder %s26, 1
      %s5935 = scalar_select %p5934, %s26, 1
      %s5936 = scalar_lea.vmem %s14, %s5935
      // Predicated region
      $region73: #{tpu_custom_call.1} parent=71 // pred_check
        %p5937 = pneg %p322
      $region74: #{tpu_custom_call.1} parent=71 // pred_check_branch
        %5939 = sbr.rel (%p5937) target = $region76
      $region75: #{tpu_custom_call.1} parent=71 // pred_region
        _
      $region76: #{tpu_custom_call.1} parent=71 // pred_fallthru
        _
      // Predicated region
      $region77: #{tpu_custom_call.1} parent=71 // pred_check
        %p5940 = pneg %p348
      $region78: #{tpu_custom_call.1} parent=71 // pred_check_branch
        %5942 = sbr.rel (%p5940) target = $region80
      $region79: #{tpu_custom_call.1} parent=71 // pred_region
        _
      $region80: #{tpu_custom_call.1} parent=71 // pred_fallthru
        _
    $region72: #{tpu_custom_call.1} parent=5 // pred_fallthru
      _
    %p5943 = scmp.le.s32.totalorder 2, %s21
    // Predicated region
    $region81: #{tpu_custom_call.1} parent=5 // pred_check
      %p5944 = pneg %p5943
    $region82: #{tpu_custom_call.1} parent=5 // pred_check_branch
      %5946 = sbr.rel (%p5944) target = $region84
    $region83: #{tpu_custom_call.1} parent=5 // pred_region
      %s5947 = ssub.s32 %s21, 2
      // Predicated region
      $region85: #{tpu_custom_call.1} parent=83 // pred_check
        %p5948 = pneg %p328
      $region86: #{tpu_custom_call.1} parent=83 // pred_check_branch
        %5950 = sbr.rel (%p5948) target = $region88
      $region87: #{tpu_custom_call.1} parent=83 // pred_region
        %p5951 = scmp.lt.s32.totalorder %s27, 1
        %s5952 = scalar_select %p5951, %s27, 1
        %s5953 = smul.addr %s5952, 32
        %s5954 = smul.addr %s5953, 4
        %s5955 = scalar_lea.vmem %s13, %s5954
      $region88: #{tpu_custom_call.1} parent=83 // pred_fallthru
        _
      // Predicated region
      $region89: #{tpu_custom_call.1} parent=83 // pred_check
        %p5956 = pneg %p354
      $region90: #{tpu_custom_call.1} parent=83 // pred_check_branch
        %5958 = sbr.rel (%p5956) target = $region92
      $region91: #{tpu_custom_call.1} parent=83 // pred_region
        %p5959 = scmp.lt.s32.totalorder %s27, 1
        %s5960 = scalar_select %p5959, %s27, 1
        %s5961 = scalar_lea.vmem %s14, %s5960
      $region92: #{tpu_custom_call.1} parent=83 // pred_fallthru
        _
    $region84: #{tpu_custom_call.1} parent=5 // pred_fallthru
      _
  $region6: #{tpu_custom_call.1} parent=0 // loop_footer
    %s25 = sadd.s32 1, %s21
  $region7: #{tpu_custom_call.1} parent=0 // loop_footer_branch
    %20 = sbr.rel target = $region3
  $region8: #{tpu_custom_call.1} parent=0 // loop_exit
    _

</llo_original>
